<compile_context>
chip_gen: v5e
topology: v5e:2x2
jax: 0.10.0
libtpu: 0.0.40
codegen_flags: <defaults>
</compile_context>

<pallas_src>
import math

import jax
import jax.numpy as jnp
from jax.experimental import pallas as pl
from jax.experimental.pallas import tpu as pltpu

# ----------------------------- configuration -------------------------------
TOKENS = 64
FEATURES = 32
HEADS = 4
ENC_LAYERS = 2
DEC_LAYERS = 2
FEED_FORWARD = 64
SRC_LEN = 8
TGT_LEN = 8
BATCH = 2

HEAD_DIM = FEATURES // HEADS
M_ROWS = SRC_LEN * BATCH            # flattened rows per stream (row = s * BATCH + n)
HM = HEADS * M_ROWS                 # all-head score columns
LN_EPS = 1e-5
NEG = -1e9                          # finite "minus infinity" (stacks safely, no NaN)
SCALE = 1.0 / math.sqrt(HEAD_DIM)   # folded into the Q columns of in_proj at init time

assert SRC_LEN == TGT_LEN           # kernel reuses one mask shape for both streams
LOG2_B = BATCH.bit_length() - 1
LOG2_M = M_ROWS.bit_length() - 1
LOG2_D = HEAD_DIM.bit_length() - 1
assert BATCH == 1 << LOG2_B and M_ROWS == 1 << LOG2_M and HEAD_DIM == 1 << LOG2_D

# ---- parameter enumeration (defines the packing order inside the slabs) ----
ATTN_NAMES = ["enc0.self", "enc1.self",
              "dec0.self", "dec0.cross", "dec1.self", "dec1.cross"]
ATTN_IDX = {n: i for i, n in enumerate(ATTN_NAMES)}
FFN_NAMES = ["enc0", "enc1", "dec0", "dec1"]
FFN_IDX = {n: i for i, n in enumerate(FFN_NAMES)}

# W96 slab (width 3E): attention in_proj weights, 32 rows each.
W96_ROWS = len(ATTN_NAMES) * FEATURES
# W64 slab (width 64): FFN linear1 weights + output head weight.
W64_LINOUT = len(FFN_NAMES) * FEATURES
W64_ROWS = W64_LINOUT + FEATURES
# W32 slab (width E): embedding, attention out_proj, FFN linear2, PE table.
W32_EMBED = 0
W32_OUT_W = W32_EMBED + TOKENS
W32_LIN2 = W32_OUT_W + len(ATTN_NAMES) * FEATURES
W32_PE = W32_LIN2 + len(FFN_NAMES) * FEED_FORWARD
W32_ROWS = W32_PE + 2 * M_ROWS


def _vec_names():
    names = []
    for l in range(ENC_LAYERS):
        p = f"enc{l}"
        names += [f"{p}.self.in_b", f"{p}.self.out_b", f"{p}.lin1_b", f"{p}.lin2_b",
                  f"{p}.norm1.g", f"{p}.norm1.b", f"{p}.norm2.g", f"{p}.norm2.b"]
    for l in range(DEC_LAYERS):
        p = f"dec{l}"
        names += [f"{p}.self.in_b", f"{p}.self.out_b",
                  f"{p}.cross.in_b", f"{p}.cross.out_b",
                  f"{p}.lin1_b", f"{p}.lin2_b",
                  f"{p}.norm1.g", f"{p}.norm1.b", f"{p}.norm2.g", f"{p}.norm2.b",
                  f"{p}.norm3.g", f"{p}.norm3.b"]
    names += ["enc_norm.g", "enc_norm.b", "dec_norm.g", "dec_norm.b", "lin_out_b"]
    return names


VEC_NAMES = _vec_names()
VEC_ROW = {n: i for i, n in enumerate(VEC_NAMES)}


# ------------------------------- the kernel ---------------------------------
def _frt_kernel(idx_ref, pad_ref, w96_ref, w64_ref, w32_ref, vec_ref, out_ref):
    f32 = jnp.float32
    E, FF = FEATURES, FEED_FORWARD

    # ---- constant block-placement patterns (iota; cheap VPU work) ----
    r = jax.lax.broadcasted_iota(jnp.int32, (HM, E), 0)
    c = jax.lax.broadcasted_iota(jnp.int32, (HM, E), 1)
    blk_kv = ((r >> LOG2_M) == (c >> LOG2_D)).astype(f32)        # (HM, E)

    r = jax.lax.broadcasted_iota(jnp.int32, (HM, HEADS), 0)
    c = jax.lax.broadcasted_iota(jnp.int32, (HM, HEADS), 1)
    blk_ind = ((r >> LOG2_M) == c).astype(f32)                   # (HM, HEADS)

    r = jax.lax.broadcasted_iota(jnp.int32, (HEADS, E), 0)
    c = jax.lax.broadcasted_iota(jnp.int32, (HEADS, E), 1)
    head_bcast = (r == (c >> LOG2_D)).astype(f32)                # (HEADS, E)

    # ---- additive attention masks, (M_ROWS, HM), built in-kernel ----
    rq = jax.lax.broadcasted_iota(jnp.int32, (M_ROWS, HM), 0)
    ck = jax.lax.broadcasted_iota(jnp.int32, (M_ROWS, HM), 1)
    kj = ck & (M_ROWS - 1)                    # key row index within one head block
    same_batch = (rq & (BATCH - 1)) == (kj & (BATCH - 1))
    causal_ok = (kj >> LOG2_B) <= (rq >> LOG2_B)
    enc_mask = jnp.where(same_batch, 0.0, NEG) + pad_ref[0, :]
    dec_self_mask = jnp.where(same_batch & causal_ok, 0.0, NEG) + pad_ref[1, :]
    dec_cross_mask = enc_mask                 # tgt queries over src keys: same structure

    # ---- packed-slab accessors (static offsets -> free ref views) ----
    def vec(name, width):
        return vec_ref[VEC_ROW[name], :width]

    def layernorm(x, name):
        mu = jnp.mean(x, axis=-1, keepdims=True)
        xc = x - mu
        var = jnp.mean(xc * xc, axis=-1, keepdims=True)
        return xc * jax.lax.rsqrt(var + LN_EPS) * vec(name + ".g", E) + vec(name + ".b", E)

    # ---- all-head attention via block-diagonal fused matmuls (no per-head loop) ----
    def attention(q, k, v, mask, name):
        a = ATTN_IDX[name]
        kblk = jnp.concatenate([k] * HEADS, axis=0) * blk_kv          # (HM, E) block-placed K
        vblk = jnp.concatenate([v] * HEADS, axis=0) * blk_kv          # (HM, E) block-placed V
        s = jax.lax.dot_general(q, kblk, (((1,), (1,)), ((), ())),
                                preferred_element_type=f32) + mask    # (M, HM) all-head scores
        p = jnp.exp(s - jnp.max(s, axis=-1, keepdims=True))
        denom = jnp.dot(p, blk_ind, preferred_element_type=f32)       # (M, HEADS) per-head sums
        o = jnp.dot(p, vblk, preferred_element_type=f32)              # (M, E) heads side by side
        o = o * pl.reciprocal(jnp.dot(denom, head_bcast,
                                      preferred_element_type=f32), approx=True)
        ow = w32_ref[W32_OUT_W + a * E: W32_OUT_W + (a + 1) * E, :]
        return jnp.dot(o, ow, preferred_element_type=f32) + vec(name + ".out_b", E)

    def mha_self(x, name, mask):
        a = ATTN_IDX[name]
        qkv = jnp.dot(x, w96_ref[a * E:(a + 1) * E, :],
                      preferred_element_type=f32) + vec(name + ".in_b", 3 * E)
        return attention(qkv[:, :E], qkv[:, E:2 * E], qkv[:, 2 * E:], mask, name)

    def mha_cross(x, mem, name, mask):
        a = ATTN_IDX[name]
        ib = vec(name + ".in_b", 3 * E)
        q = jnp.dot(x, w96_ref[a * E:(a + 1) * E, :E],
                    preferred_element_type=f32) + ib[:E]
        kv = jnp.dot(mem, w96_ref[a * E:(a + 1) * E, E:],
                     preferred_element_type=f32) + ib[E:]
        return attention(q, kv[:, :E], kv[:, E:], mask, name)

    def ffn(x, name):
        fi = FFN_IDX[name]
        h = jnp.dot(x, w64_ref[fi * E:(fi + 1) * E, :],
                    preferred_element_type=f32) + vec(name + ".lin1_b", FF)
        h = jnp.maximum(h, 0.0)
        w2 = w32_ref[W32_LIN2 + fi * FF: W32_LIN2 + (fi + 1) * FF, :]
        return jnp.dot(h, w2, preferred_element_type=f32) + vec(name + ".lin2_b", E)

    # TODO(synk): dropout (p=0.1) omitted — this is the eval-mode forward.

    # ---- embedding + positional encoding: src & tgt fused into one matmul ----
    tok = jax.lax.broadcasted_iota(jnp.int32, (2 * M_ROWS, TOKENS), 1)
    onehot = (idx_ref[...] == tok).astype(f32)                        # (2M, TOKENS)
    x_all = jnp.dot(onehot, w32_ref[W32_EMBED:W32_EMBED + TOKENS, :],
                    preferred_element_type=f32) + w32_ref[W32_PE:W32_PE + 2 * M_ROWS, :]
    src, tgt = x_all[:M_ROWS, :], x_all[M_ROWS:, :]

    # ---- encoder (post-norm, ReLU FFN, final LayerNorm) ----
    mem = src
    for l in range(ENC_LAYERS):
        pre = f"enc{l}"
        mem = layernorm(mem + mha_self(mem, pre + ".self", enc_mask), pre + ".norm1")
        mem = layernorm(mem + ffn(mem, pre), pre + ".norm2")
    mem = layernorm(mem, "enc_norm")

    # ---- decoder ----
    out = tgt
    for l in range(DEC_LAYERS):
        pre = f"dec{l}"
        out = layernorm(out + mha_self(out, pre + ".self", dec_self_mask), pre + ".norm1")
        out = layernorm(out + mha_cross(out, mem, pre + ".cross", dec_cross_mask),
                        pre + ".norm2")
        out = layernorm(out + ffn(out, pre), pre + ".norm3")
    out = layernorm(out, "dec_norm")

    # ---- output head + log-softmax on the full, aligned (M_ROWS, TOKENS) block ----
    logits = jnp.dot(out, w64_ref[W64_LINOUT:W64_LINOUT + E, :],
                     preferred_element_type=f32) + vec("lin_out_b", TOKENS)
    mx = jnp.max(logits, axis=-1, keepdims=True)
    lse = jnp.log(jnp.sum(jnp.exp(logits - mx), axis=-1, keepdims=True)) + mx
    out_ref[...] = logits - lse


# --------------------------- host-side glue ---------------------------------
@jax.jit
def frt_forward(slabs, src_idx, tgt_idx, src_padding_mask, tgt_padding_mask):
    """Fused FRT forward. Returns (log_probs[(TGT_LEN-1)*BATCH, TOKENS], tgt[1:])."""
    w96, w64, w32, vec = slabs

    idx_all = jnp.concatenate([src_idx.reshape(-1), tgt_idx.reshape(-1)]
                              ).astype(jnp.int32).reshape(2 * M_ROWS, 1)

    def key_pad_add(pm):                       # pm: (BATCH, LEN) bool, True = padded
        flat = jnp.where(pm.T.reshape(-1), NEG, 0.0).astype(jnp.float32)   # kj = s*B + n
        return jnp.tile(flat, HEADS)           # (HM,) per-head-tiled key padding penalty
    pad_add = jnp.stack([key_pad_add(src_padding_mask), key_pad_add(tgt_padding_mask)])

    vmem = pl.BlockSpec(memory_space=pltpu.MemorySpace.VMEM)
    lp = pl.pallas_call(
        _frt_kernel,
        out_shape=jax.ShapeDtypeStruct((M_ROWS, TOKENS), jnp.float32),
        in_specs=[vmem] * 6,
        out_specs=vmem,
    )(idx_all, pad_add, w96, w64, w32, vec)

    # Drop the last target position OUTSIDE the kernel (keeps the kernel store aligned).
    return lp[:(TGT_LEN - 1) * BATCH, :], tgt_idx[1:, :]


# ------------------------------ parameter init ------------------------------
def _pe_table(seq_len):
    pos = jnp.arange(seq_len, dtype=jnp.float32)[:, None]
    div = jnp.exp(jnp.arange(0, FEATURES, 2, dtype=jnp.float32)
                  * (-math.log(10000.0) / FEATURES))
    pe = jnp.zeros((seq_len, FEATURES), jnp.float32)
    pe = pe.at[:, 0::2].set(jnp.sin(pos * div))
    pe = pe.at[:, 1::2].set(jnp.cos(pos * div))
    return pe


def init_params(key):
    """Random init directly in kernel layout (x @ W), packed into 4 VMEM slabs."""
    keys = iter(jax.random.split(key, 64))

    def rnd(shape, std=0.02):
        return std * jax.random.normal(next(keys), shape, jnp.float32)

    # 1/sqrt(head_dim) folded into the Q part of every in_proj weight/bias.
    qkv_scale = jnp.concatenate([jnp.full((FEATURES,), SCALE, jnp.float32),
                                 jnp.ones((2 * FEATURES,), jnp.float32)])

    w96 = jnp.zeros((W96_ROWS, 3 * FEATURES), jnp.float32)
    w64 = jnp.zeros((W64_ROWS, FEED_FORWARD), jnp.float32)
    w32 = jnp.zeros((W32_ROWS, FEATURES), jnp.float32)
    vec = jnp.zeros((len(VEC_NAMES), 3 * FEATURES), jnp.float32)

    def setv(v, name, val):
        return v.at[VEC_ROW[name], :val.shape[0]].set(val)

    for a, name in enumerate(ATTN_NAMES):
        w96 = w96.at[a * FEATURES:(a + 1) * FEATURES, :].set(
            rnd((FEATURES, 3 * FEATURES)) * qkv_scale[None, :])
        w32 = w32.at[W32_OUT_W + a * FEATURES:W32_OUT_W + (a + 1) * FEATURES, :].set(
            rnd((FEATURES, FEATURES)))
        vec = setv(vec, name + ".in_b", rnd((3 * FEATURES,)) * qkv_scale)
        vec = setv(vec, name + ".out_b", rnd((FEATURES,)))

    for f, name in enumerate(FFN_NAMES):
        w64 = w64.at[f * FEATURES:(f + 1) * FEATURES, :].set(rnd((FEATURES, FEED_FORWARD)))
        w32 = w32.at[W32_LIN2 + f * FEED_FORWARD:W32_LIN2 + (f + 1) * FEED_FORWARD, :].set(
            rnd((FEED_FORWARD, FEATURES)))
        vec = setv(vec, name + ".lin1_b", rnd((FEED_FORWARD,)))
        vec = setv(vec, name + ".lin2_b", rnd((FEATURES,)))

    w32 = w32.at[W32_EMBED:W32_EMBED + TOKENS, :].set(rnd((TOKENS, FEATURES)))  # N(0, 0.02)
    w64 = w64.at[W64_LINOUT:W64_LINOUT + FEATURES, :].set(rnd((FEATURES, TOKENS)))
    vec = setv(vec, "lin_out_b", rnd((TOKENS,)))

    pe = jnp.concatenate([jnp.repeat(_pe_table(SRC_LEN), BATCH, axis=0),
                          jnp.repeat(_pe_table(TGT_LEN), BATCH, axis=0)], axis=0)
    w32 = w32.at[W32_PE:W32_PE + 2 * M_ROWS, :].set(pe)

    ln_names = []
    for l in range(ENC_LAYERS):
        ln_names += [f"enc{l}.norm1", f"enc{l}.norm2"]
    for l in range(DEC_LAYERS):
        ln_names += [f"dec{l}.norm1", f"dec{l}.norm2", f"dec{l}.norm3"]
    ln_names += ["enc_norm", "dec_norm"]
    for n in ln_names:                                   # LayerNorm scale = 1, offset = 0
        vec = setv(vec, n + ".g", jnp.ones((FEATURES,), jnp.float32))

    return (w96, w64, w32, vec)


# --------------------------- pure-JAX reference ------------------------------
def _ref_forward(slabs, src_idx, tgt_idx, src_pad, tgt_pad):
    """Straightforward per-head jnp reference using the same packed weights."""
    w96, w64, w32, vec = slabs
    E, H, D = FEATURES, HEADS, HEAD_DIM

    def vrow(name, w):
        return vec[VEC_ROW[name], :w]

    def ln(x, name):
        mu = x.mean(-1, keepdims=True)
        var = ((x - mu) ** 2).mean(-1, keepdims=True)
        return (x - mu) / jnp.sqrt(var + LN_EPS) * vrow(name + ".g", E) + vrow(name + ".b", E)

    def mha(xq, xkv, name, causal, key_pad):
        a = ATTN_IDX[name]
        iw = w96[a * E:(a + 1) * E, :]
        ib = vrow(name + ".in_b", 3 * E)
        q = xq @ iw[:, :E] + ib[:E]               # scaling pre-folded into the weights
        k = xkv @ iw[:, E:2 * E] + ib[E:2 * E]
        v = xkv @ iw[:, 2 * E:] + ib[2 * E:]
        Lq, Lk = xq.shape[0], xkv.shape[0]
        qh = q.reshape(Lq, BATCH, H, D)
        kh = k.reshape(Lk, BATCH, H, D)
        vh = v.reshape(Lk, BATCH, H, D)
        s = jnp.einsum("qnhd,knhd->nhqk", qh, kh)
        if causal:
            s = s + jnp.where(jnp.arange(Lk)[None, :] <= jnp.arange(Lq)[:, None], 0.0, NEG)
        s = s + jnp.where(key_pad, NEG, 0.0)[:, None, None, :]
        p = jax.nn.softmax(s, axis=-1)
        o = jnp.einsum("nhqk,knhd->qnhd", p, vh).reshape(Lq, BATCH, E)
        ow = w32[W32_OUT_W + a * E:W32_OUT_W + (a + 1) * E, :]
        return o @ ow + vrow(name + ".out_b", E)

    def ffn(x, name):
        fi = FFN_IDX[name]
        h = jnp.maximum(x @ w64[fi * E:(fi + 1) * E, :]
                        + vrow(name + ".lin1_b", FEED_FORWARD), 0.0)
        return (h @ w32[W32_LIN2 + fi * FEED_FORWARD:W32_LIN2 + (fi + 1) * FEED_FORWARD, :]
                + vrow(name + ".lin2_b", E))

    embed_w = w32[W32_EMBED:W32_EMBED + TOKENS, :]
    src = embed_w[src_idx] + _pe_table(SRC_LEN)[:, None, :]
    tgt = embed_w[tgt_idx] + _pe_table(TGT_LEN)[:, None, :]

    mem = src
    for l in range(ENC_LAYERS):
        pre = f"enc{l}"
        mem = ln(mem + mha(mem, mem, pre + ".self", False, src_pad), pre + ".norm1")
        mem = ln(mem + ffn(mem, pre), pre + ".norm2")
    mem = ln(mem, "enc_norm")

    out = tgt
    for l in range(DEC_LAYERS):
        pre = f"dec{l}"
        out = ln(out + mha(out, out, pre + ".self", True, tgt_pad), pre + ".norm1")
        out = ln(out + mha(out, mem, pre + ".cross", False, src_pad), pre + ".norm2")
        out = ln(out + ffn(out, pre), pre + ".norm3")
    out = ln(out, "dec_norm")

    logits = (out[:-1].reshape(-1, E) @ w64[W64_LINOUT:W64_LINOUT + E, :]
              + vrow("lin_out_b", TOKENS))
    return jax.nn.log_softmax(logits, axis=-1)


# ---------------------------------- main -------------------------------------
if __name__ == "__main__":
    root = jax.random.PRNGKey(0)
    k_params, k_src, k_tgt = jax.random.split(root, 3)

    slabs = init_params(k_params)

    # token indices, seq-first: (S, N)
    src_idx = jax.random.randint(k_src, (SRC_LEN, BATCH), 0, TOKENS, dtype=jnp.int32)
    tgt_idx = jax.random.randint(k_tgt, (TGT_LEN, BATCH), 0, TOKENS, dtype=jnp.int32)

    # key padding masks, (N, S), True = padded position (never fully-masked rows)
    src_lengths = jnp.array([SRC_LEN, SRC_LEN - 2])
    tgt_lengths = jnp.array([TGT_LEN, TGT_LEN - 1])
    src_padding_mask = jnp.arange(SRC_LEN)[None, :] >= src_lengths[:, None]
    tgt_padding_mask = jnp.arange(TGT_LEN)[None, :] >= tgt_lengths[:, None]

    log_probs, shifted_tgt = frt_forward(slabs, src_idx, tgt_idx,
                                         src_padding_mask, tgt_padding_mask)
    jax.block_until_ready(log_probs)
    jax.block_until_ready(shifted_tgt)

    assert log_probs.shape == ((TGT_LEN - 1) * BATCH, TOKENS)
    assert shifted_tgt.shape == (TGT_LEN - 1, BATCH)
    assert bool(jnp.all(jnp.isfinite(log_probs)))
    row_sums = jnp.exp(jax.scipy.special.logsumexp(log_probs, axis=-1))
    assert bool(jnp.allclose(row_sums, 1.0, atol=1e-4))

    ref = _ref_forward(slabs, src_idx, tgt_idx, src_padding_mask, tgt_padding_mask)
    assert bool(jnp.allclose(log_probs, ref, atol=5e-3)), \
        f"max |diff| = {float(jnp.max(jnp.abs(log_probs - ref)))}"

    print("KERNEL_OK")
</pallas_src>

<mosaic_0001>
module attributes {stable_mosaic.version = 11 : i64} {
  func.func @_frt_kernel(%arg0: memref<32x1xi32, #tpu.memory_space<vmem>>, %arg1: memref<2x64xf32, #tpu.memory_space<vmem>>, %arg2: memref<192x96xf32, #tpu.memory_space<vmem>>, %arg3: memref<160x64xf32, #tpu.memory_space<vmem>>, %arg4: memref<544x32xf32, #tpu.memory_space<vmem>>, %arg5: memref<45x96xf32, #tpu.memory_space<vmem>>, %arg6: memref<16x64xf32, #tpu.memory_space<vmem>>) attributes {dimension_semantics = [], scalar_prefetch = 0 : i64, scratch_operands = 0 : i64, tpu.core_type = #tpu.core_type<tc>} {
    %0 = tpu.iota {dimensions = array<i32: 0>} : vector<64x32xi32>
    %1 = tpu.iota {dimensions = array<i32: 1>} : vector<64x32xi32>
    %c4_i32 = arith.constant 4 : i32
    %2 = vector.broadcast %c4_i32 : i32 to vector<64x32xi32>
    %3 = arith.shrsi %0, %2 : vector<64x32xi32>
    %c3_i32 = arith.constant 3 : i32
    %4 = vector.broadcast %c3_i32 : i32 to vector<64x32xi32>
    %5 = arith.shrsi %1, %4 : vector<64x32xi32>
    %6 = arith.cmpi eq, %3, %5 : vector<64x32xi32>
    %7 = arith.extui %6 : vector<64x32xi1> to vector<64x32xi32>
    %8 = arith.sitofp %7 : vector<64x32xi32> to vector<64x32xf32>
    %9 = tpu.iota {dimensions = array<i32: 0>} : vector<64x4xi32>
    %10 = tpu.iota {dimensions = array<i32: 1>} : vector<64x4xi32>
    %c4_i32_0 = arith.constant 4 : i32
    %11 = vector.broadcast %c4_i32_0 : i32 to vector<64x4xi32>
    %12 = arith.shrsi %9, %11 : vector<64x4xi32>
    %13 = arith.cmpi eq, %12, %10 : vector<64x4xi32>
    %14 = arith.extui %13 : vector<64x4xi1> to vector<64x4xi32>
    %15 = arith.sitofp %14 : vector<64x4xi32> to vector<64x4xf32>
    %16 = tpu.iota {dimensions = array<i32: 0>} : vector<4x32xi32>
    %17 = tpu.iota {dimensions = array<i32: 1>} : vector<4x32xi32>
    %c3_i32_1 = arith.constant 3 : i32
    %18 = vector.broadcast %c3_i32_1 : i32 to vector<4x32xi32>
    %19 = arith.shrsi %17, %18 : vector<4x32xi32>
    %20 = arith.cmpi eq, %16, %19 : vector<4x32xi32>
    %21 = arith.extui %20 : vector<4x32xi1> to vector<4x32xi32>
    %22 = arith.sitofp %21 : vector<4x32xi32> to vector<4x32xf32>
    %23 = tpu.iota {dimensions = array<i32: 0>} : vector<16x64xi32>
    %24 = tpu.iota {dimensions = array<i32: 1>} : vector<16x64xi32>
    %c15_i32 = arith.constant 15 : i32
    %25 = vector.broadcast %c15_i32 : i32 to vector<16x64xi32>
    %26 = arith.andi %24, %25 : vector<16x64xi32>
    %c1_i32 = arith.constant 1 : i32
    %27 = vector.broadcast %c1_i32 : i32 to vector<16x64xi32>
    %28 = arith.andi %23, %27 : vector<16x64xi32>
    %c1_i32_2 = arith.constant 1 : i32
    %29 = vector.broadcast %c1_i32_2 : i32 to vector<16x64xi32>
    %30 = arith.andi %26, %29 : vector<16x64xi32>
    %31 = arith.cmpi eq, %28, %30 : vector<16x64xi32>
    %c1_i32_3 = arith.constant 1 : i32
    %32 = vector.broadcast %c1_i32_3 : i32 to vector<16x64xi32>
    %33 = arith.shrsi %26, %32 : vector<16x64xi32>
    %c1_i32_4 = arith.constant 1 : i32
    %34 = vector.broadcast %c1_i32_4 : i32 to vector<16x64xi32>
    %35 = arith.shrsi %23, %34 : vector<16x64xi32>
    %36 = arith.cmpi sle, %33, %35 : vector<16x64xi32>
    %cst = arith.constant 0.000000e+00 : f32
    %cst_5 = arith.constant -1.000000e+09 : f32
    %37 = vector.broadcast %cst : f32 to vector<16x64xf32>
    %38 = vector.broadcast %cst_5 : f32 to vector<16x64xf32>
    %39 = arith.select %31, %37, %38 : vector<16x64xi1>, vector<16x64xf32>
    %c0 = arith.constant 0 : index
    %c0_6 = arith.constant 0 : index
    %40 = vector.load %arg1[%c0, %c0_6] : memref<2x64xf32, #tpu.memory_space<vmem>>, vector<1x64xf32>
    %41 = vector.shape_cast %40 : vector<1x64xf32> to vector<64xf32>
    %42 = vector.shape_cast %41 : vector<64xf32> to vector<1x64xf32>
    %43 = vector.broadcast %42 : vector<1x64xf32> to vector<16x64xf32>
    %44 = arith.addf %39, %43 : vector<16x64xf32>
    %45 = arith.andi %31, %36 : vector<16x64xi1>
    %cst_7 = arith.constant 0.000000e+00 : f32
    %cst_8 = arith.constant -1.000000e+09 : f32
    %46 = vector.broadcast %cst_7 : f32 to vector<16x64xf32>
    %47 = vector.broadcast %cst_8 : f32 to vector<16x64xf32>
    %48 = arith.select %45, %46, %47 : vector<16x64xi1>, vector<16x64xf32>
    %c1 = arith.constant 1 : index
    %c0_9 = arith.constant 0 : index
    %49 = vector.load %arg1[%c1, %c0_9] : memref<2x64xf32, #tpu.memory_space<vmem>>, vector<1x64xf32>
    %50 = vector.shape_cast %49 : vector<1x64xf32> to vector<64xf32>
    %51 = vector.shape_cast %50 : vector<64xf32> to vector<1x64xf32>
    %52 = vector.broadcast %51 : vector<1x64xf32> to vector<16x64xf32>
    %53 = arith.addf %48, %52 : vector<16x64xf32>
    %54 = tpu.iota {dimensions = array<i32: 1>} : vector<32x64xi32>
    %c0_10 = arith.constant 0 : index
    %c0_11 = arith.constant 0 : index
    %55 = vector.load %arg0[%c0_10, %c0_11] : memref<32x1xi32, #tpu.memory_space<vmem>>, vector<32x1xi32>
    %56 = vector.broadcast %55 : vector<32x1xi32> to vector<32x64xi32>
    %57 = arith.cmpi eq, %56, %54 : vector<32x64xi32>
    %58 = arith.extui %57 : vector<32x64xi1> to vector<32x64xi32>
    %59 = arith.sitofp %58 : vector<32x64xi32> to vector<32x64xf32>
    %c0_12 = arith.constant 0 : index
    %c0_13 = arith.constant 0 : index
    %60 = vector.load %arg4[%c0_12, %c0_13] : memref<544x32xf32, #tpu.memory_space<vmem>>, vector<64x32xf32>
    %cst_14 = arith.constant dense<0.000000e+00> : vector<32x32xf32>
    %61 = tpu.matmul %59, %60, %cst_14 {dimension_numbers = #tpu.dot_dimension_numbers<[1], [0], [0], [1], [0, 0, 1, 1], [], []>} : vector<32x64xf32>, vector<64x32xf32>, vector<32x32xf32> -> vector<32x32xf32>
    %c512 = arith.constant 512 : index
    %c0_15 = arith.constant 0 : index
    %62 = vector.load %arg4[%c512, %c0_15] : memref<544x32xf32, #tpu.memory_space<vmem>>, vector<32x32xf32>
    %63 = arith.addf %61, %62 : vector<32x32xf32>
    %64 = vector.extract_strided_slice %63 {offsets = [0, 0], sizes = [16, 32], strides = [1, 1]} : vector<32x32xf32> to vector<16x32xf32>
    %65 = vector.extract_strided_slice %63 {offsets = [16, 0], sizes = [16, 32], strides = [1, 1]} : vector<32x32xf32> to vector<16x32xf32>
    %c0_16 = arith.constant 0 : index
    %c0_17 = arith.constant 0 : index
    %66 = vector.load %arg2[%c0_16, %c0_17] : memref<192x96xf32, #tpu.memory_space<vmem>>, vector<32x96xf32>
    %cst_18 = arith.constant dense<0.000000e+00> : vector<16x96xf32>
    %67 = tpu.matmul %64, %66, %cst_18 {dimension_numbers = #tpu.dot_dimension_numbers<[1], [0], [0], [1], [0, 0, 1, 1], [], []>} : vector<16x32xf32>, vector<32x96xf32>, vector<16x96xf32> -> vector<16x96xf32>
    %c0_19 = arith.constant 0 : index
    %c0_20 = arith.constant 0 : index
    %68 = vector.load %arg5[%c0_19, %c0_20] : memref<45x96xf32, #tpu.memory_space<vmem>>, vector<1x96xf32>
    %69 = vector.shape_cast %68 : vector<1x96xf32> to vector<96xf32>
    %70 = vector.shape_cast %69 : vector<96xf32> to vector<1x96xf32>
    %71 = vector.broadcast %70 : vector<1x96xf32> to vector<16x96xf32>
    %72 = arith.addf %67, %71 : vector<16x96xf32>
    %73 = vector.extract_strided_slice %72 {offsets = [0, 0], sizes = [16, 32], strides = [1, 1]} : vector<16x96xf32> to vector<16x32xf32>
    %74 = vector.extract_strided_slice %72 {offsets = [0, 32], sizes = [16, 32], strides = [1, 1]} : vector<16x96xf32> to vector<16x32xf32>
    %75 = vector.extract_strided_slice %72 {offsets = [0, 64], sizes = [16, 32], strides = [1, 1]} : vector<16x96xf32> to vector<16x32xf32>
    %76 = tpu.concatenate %74, %74, %74, %74 in 0 : vector<16x32xf32>, vector<16x32xf32>, vector<16x32xf32>, vector<16x32xf32> -> vector<64x32xf32>
    %77 = arith.mulf %76, %8 : vector<64x32xf32>
    %78 = tpu.concatenate %75, %75, %75, %75 in 0 : vector<16x32xf32>, vector<16x32xf32>, vector<16x32xf32>, vector<16x32xf32> -> vector<64x32xf32>
    %79 = arith.mulf %78, %8 : vector<64x32xf32>
    %cst_21 = arith.constant dense<0.000000e+00> : vector<16x64xf32>
    %80 = tpu.matmul %73, %77, %cst_21 {dimension_numbers = #tpu.dot_dimension_numbers<[1], [1], [0], [0], [0, 0, 1, 0], [], []>} : vector<16x32xf32>, vector<64x32xf32>, vector<16x64xf32> -> vector<16x64xf32>
    %81 = arith.addf %80, %44 : vector<16x64xf32>
    %cst_22 = arith.constant dense<0xFF800000> : vector<16xf32>
    %82 = vector.multi_reduction <maximumf>, %81, %cst_22 [1] : vector<16x64xf32> to vector<16xf32>
    %83 = vector.shape_cast %82 : vector<16xf32> to vector<16x1xf32>
    %84 = vector.broadcast %83 : vector<16x1xf32> to vector<16x64xf32>
    %85 = arith.subf %81, %84 : vector<16x64xf32>
    %86 = math.exp %85 : vector<16x64xf32>
    %cst_23 = arith.constant dense<0.000000e+00> : vector<16x4xf32>
    %87 = tpu.matmul %86, %15, %cst_23 {dimension_numbers = #tpu.dot_dimension_numbers<[1], [0], [0], [1], [0, 0, 1, 1], [], []>} : vector<16x64xf32>, vector<64x4xf32>, vector<16x4xf32> -> vector<16x4xf32>
    %cst_24 = arith.constant dense<0.000000e+00> : vector<16x32xf32>
    %88 = tpu.matmul %86, %79, %cst_24 {dimension_numbers = #tpu.dot_dimension_numbers<[1], [0], [0], [1], [0, 0, 1, 1], [], []>} : vector<16x64xf32>, vector<64x32xf32>, vector<16x32xf32> -> vector<16x32xf32>
    %cst_25 = arith.constant dense<0.000000e+00> : vector<16x32xf32>
    %89 = tpu.matmul %87, %22, %cst_25 {dimension_numbers = #tpu.dot_dimension_numbers<[1], [0], [0], [1], [0, 0, 1, 1], [], []>} : vector<16x4xf32>, vector<4x32xf32>, vector<16x32xf32> -> vector<16x32xf32>
    %90 = tpu.reciprocal %89 {approx = true} : vector<16x32xf32> -> vector<16x32xf32>
    %91 = arith.mulf %88, %90 : vector<16x32xf32>
    %c64 = arith.constant 64 : index
    %c0_26 = arith.constant 0 : index
    %92 = vector.load %arg4[%c64, %c0_26] : memref<544x32xf32, #tpu.memory_space<vmem>>, vector<32x32xf32>
    %cst_27 = arith.constant dense<0.000000e+00> : vector<16x32xf32>
    %93 = tpu.matmul %91, %92, %cst_27 {dimension_numbers = #tpu.dot_dimension_numbers<[1], [0], [0], [1], [0, 0, 1, 1], [], []>} : vector<16x32xf32>, vector<32x32xf32>, vector<16x32xf32> -> vector<16x32xf32>
    %c1_28 = arith.constant 1 : index
    %c0_29 = arith.constant 0 : index
    %94 = vector.load %arg5[%c1_28, %c0_29] : memref<45x96xf32, #tpu.memory_space<vmem>>, vector<1x32xf32>
    %95 = vector.shape_cast %94 : vector<1x32xf32> to vector<32xf32>
    %96 = vector.shape_cast %95 : vector<32xf32> to vector<1x32xf32>
    %97 = vector.broadcast %96 : vector<1x32xf32> to vector<16x32xf32>
    %98 = arith.addf %93, %97 : vector<16x32xf32>
    %99 = arith.addf %64, %98 : vector<16x32xf32>
    %cst_30 = arith.constant dense<0.000000e+00> : vector<16xf32>
    %100 = vector.multi_reduction <add>, %99, %cst_30 [1] : vector<16x32xf32> to vector<16xf32>
    %101 = vector.shape_cast %100 : vector<16xf32> to vector<16x1xf32>
    %cst_31 = arith.constant 3.200000e+01 : f32
    %102 = vector.broadcast %cst_31 : f32 to vector<16x1xf32>
    %103 = arith.divf %101, %102 : vector<16x1xf32>
    %104 = vector.broadcast %103 : vector<16x1xf32> to vector<16x32xf32>
    %105 = arith.subf %99, %104 : vector<16x32xf32>
    %106 = arith.mulf %105, %105 : vector<16x32xf32>
    %cst_32 = arith.constant dense<0.000000e+00> : vector<16xf32>
    %107 = vector.multi_reduction <add>, %106, %cst_32 [1] : vector<16x32xf32> to vector<16xf32>
    %108 = vector.shape_cast %107 : vector<16xf32> to vector<16x1xf32>
    %cst_33 = arith.constant 3.200000e+01 : f32
    %109 = vector.broadcast %cst_33 : f32 to vector<16x1xf32>
    %110 = arith.divf %108, %109 : vector<16x1xf32>
    %cst_34 = arith.constant 9.99999974E-6 : f32
    %111 = vector.broadcast %cst_34 : f32 to vector<16x1xf32>
    %112 = arith.addf %110, %111 : vector<16x1xf32>
    %113 = math.rsqrt %112 : vector<16x1xf32>
    %114 = vector.broadcast %113 : vector<16x1xf32> to vector<16x32xf32>
    %115 = arith.mulf %105, %114 : vector<16x32xf32>
    %c4 = arith.constant 4 : index
    %c0_35 = arith.constant 0 : index
    %116 = vector.load %arg5[%c4, %c0_35] : memref<45x96xf32, #tpu.memory_space<vmem>>, vector<1x32xf32>
    %117 = vector.shape_cast %116 : vector<1x32xf32> to vector<32xf32>
    %118 = vector.shape_cast %117 : vector<32xf32> to vector<1x32xf32>
    %119 = vector.broadcast %118 : vector<1x32xf32> to vector<16x32xf32>
    %120 = arith.mulf %115, %119 : vector<16x32xf32>
    %c5 = arith.constant 5 : index
    %c0_36 = arith.constant 0 : index
    %121 = vector.load %arg5[%c5, %c0_36] : memref<45x96xf32, #tpu.memory_space<vmem>>, vector<1x32xf32>
    %122 = vector.shape_cast %121 : vector<1x32xf32> to vector<32xf32>
    %123 = vector.shape_cast %122 : vector<32xf32> to vector<1x32xf32>
    %124 = vector.broadcast %123 : vector<1x32xf32> to vector<16x32xf32>
    %125 = arith.addf %120, %124 : vector<16x32xf32>
    %c0_37 = arith.constant 0 : index
    %c0_38 = arith.constant 0 : index
    %126 = vector.load %arg3[%c0_37, %c0_38] : memref<160x64xf32, #tpu.memory_space<vmem>>, vector<32x64xf32>
    %cst_39 = arith.constant dense<0.000000e+00> : vector<16x64xf32>
    %127 = tpu.matmul %125, %126, %cst_39 {dimension_numbers = #tpu.dot_dimension_numbers<[1], [0], [0], [1], [0, 0, 1, 1], [], []>} : vector<16x32xf32>, vector<32x64xf32>, vector<16x64xf32> -> vector<16x64xf32>
    %c2 = arith.constant 2 : index
    %c0_40 = arith.constant 0 : index
    %128 = vector.load %arg5[%c2, %c0_40] : memref<45x96xf32, #tpu.memory_space<vmem>>, vector<1x64xf32>
    %129 = vector.shape_cast %128 : vector<1x64xf32> to vector<64xf32>
    %130 = vector.shape_cast %129 : vector<64xf32> to vector<1x64xf32>
    %131 = vector.broadcast %130 : vector<1x64xf32> to vector<16x64xf32>
    %132 = arith.addf %127, %131 : vector<16x64xf32>
    %cst_41 = arith.constant 0.000000e+00 : f32
    %133 = vector.broadcast %cst_41 : f32 to vector<16x64xf32>
    %134 = arith.maximumf %132, %133 : vector<16x64xf32>
    %c256 = arith.constant 256 : index
    %c0_42 = arith.constant 0 : index
    %135 = vector.load %arg4[%c256, %c0_42] : memref<544x32xf32, #tpu.memory_space<vmem>>, vector<64x32xf32>
    %cst_43 = arith.constant dense<0.000000e+00> : vector<16x32xf32>
    %136 = tpu.matmul %134, %135, %cst_43 {dimension_numbers = #tpu.dot_dimension_numbers<[1], [0], [0], [1], [0, 0, 1, 1], [], []>} : vector<16x64xf32>, vector<64x32xf32>, vector<16x32xf32> -> vector<16x32xf32>
    %c3 = arith.constant 3 : index
    %c0_44 = arith.constant 0 : index
    %137 = vector.load %arg5[%c3, %c0_44] : memref<45x96xf32, #tpu.memory_space<vmem>>, vector<1x32xf32>
    %138 = vector.shape_cast %137 : vector<1x32xf32> to vector<32xf32>
    %139 = vector.shape_cast %138 : vector<32xf32> to vector<1x32xf32>
    %140 = vector.broadcast %139 : vector<1x32xf32> to vector<16x32xf32>
    %141 = arith.addf %136, %140 : vector<16x32xf32>
    %142 = arith.addf %125, %141 : vector<16x32xf32>
    %cst_45 = arith.constant dense<0.000000e+00> : vector<16xf32>
    %143 = vector.multi_reduction <add>, %142, %cst_45 [1] : vector<16x32xf32> to vector<16xf32>
    %144 = vector.shape_cast %143 : vector<16xf32> to vector<16x1xf32>
    %cst_46 = arith.constant 3.200000e+01 : f32
    %145 = vector.broadcast %cst_46 : f32 to vector<16x1xf32>
    %146 = arith.divf %144, %145 : vector<16x1xf32>
    %147 = vector.broadcast %146 : vector<16x1xf32> to vector<16x32xf32>
    %148 = arith.subf %142, %147 : vector<16x32xf32>
    %149 = arith.mulf %148, %148 : vector<16x32xf32>
    %cst_47 = arith.constant dense<0.000000e+00> : vector<16xf32>
    %150 = vector.multi_reduction <add>, %149, %cst_47 [1] : vector<16x32xf32> to vector<16xf32>
    %151 = vector.shape_cast %150 : vector<16xf32> to vector<16x1xf32>
    %cst_48 = arith.constant 3.200000e+01 : f32
    %152 = vector.broadcast %cst_48 : f32 to vector<16x1xf32>
    %153 = arith.divf %151, %152 : vector<16x1xf32>
    %cst_49 = arith.constant 9.99999974E-6 : f32
    %154 = vector.broadcast %cst_49 : f32 to vector<16x1xf32>
    %155 = arith.addf %153, %154 : vector<16x1xf32>
    %156 = math.rsqrt %155 : vector<16x1xf32>
    %157 = vector.broadcast %156 : vector<16x1xf32> to vector<16x32xf32>
    %158 = arith.mulf %148, %157 : vector<16x32xf32>
    %c6 = arith.constant 6 : index
    %c0_50 = arith.constant 0 : index
    %159 = vector.load %arg5[%c6, %c0_50] : memref<45x96xf32, #tpu.memory_space<vmem>>, vector<1x32xf32>
    %160 = vector.shape_cast %159 : vector<1x32xf32> to vector<32xf32>
    %161 = vector.shape_cast %160 : vector<32xf32> to vector<1x32xf32>
    %162 = vector.broadcast %161 : vector<1x32xf32> to vector<16x32xf32>
    %163 = arith.mulf %158, %162 : vector<16x32xf32>
    %c7 = arith.constant 7 : index
    %c0_51 = arith.constant 0 : index
    %164 = vector.load %arg5[%c7, %c0_51] : memref<45x96xf32, #tpu.memory_space<vmem>>, vector<1x32xf32>
    %165 = vector.shape_cast %164 : vector<1x32xf32> to vector<32xf32>
    %166 = vector.shape_cast %165 : vector<32xf32> to vector<1x32xf32>
    %167 = vector.broadcast %166 : vector<1x32xf32> to vector<16x32xf32>
    %168 = arith.addf %163, %167 : vector<16x32xf32>
    %c32 = arith.constant 32 : index
    %c0_52 = arith.constant 0 : index
    %169 = vector.load %arg2[%c32, %c0_52] : memref<192x96xf32, #tpu.memory_space<vmem>>, vector<32x96xf32>
    %cst_53 = arith.constant dense<0.000000e+00> : vector<16x96xf32>
    %170 = tpu.matmul %168, %169, %cst_53 {dimension_numbers = #tpu.dot_dimension_numbers<[1], [0], [0], [1], [0, 0, 1, 1], [], []>} : vector<16x32xf32>, vector<32x96xf32>, vector<16x96xf32> -> vector<16x96xf32>
    %c8 = arith.constant 8 : index
    %c0_54 = arith.constant 0 : index
    %171 = vector.load %arg5[%c8, %c0_54] : memref<45x96xf32, #tpu.memory_space<vmem>>, vector<1x96xf32>
    %172 = vector.shape_cast %171 : vector<1x96xf32> to vector<96xf32>
    %173 = vector.shape_cast %172 : vector<96xf32> to vector<1x96xf32>
    %174 = vector.broadcast %173 : vector<1x96xf32> to vector<16x96xf32>
    %175 = arith.addf %170, %174 : vector<16x96xf32>
    %176 = vector.extract_strided_slice %175 {offsets = [0, 0], sizes = [16, 32], strides = [1, 1]} : vector<16x96xf32> to vector<16x32xf32>
    %177 = vector.extract_strided_slice %175 {offsets = [0, 32], sizes = [16, 32], strides = [1, 1]} : vector<16x96xf32> to vector<16x32xf32>
    %178 = vector.extract_strided_slice %175 {offsets = [0, 64], sizes = [16, 32], strides = [1, 1]} : vector<16x96xf32> to vector<16x32xf32>
    %179 = tpu.concatenate %177, %177, %177, %177 in 0 : vector<16x32xf32>, vector<16x32xf32>, vector<16x32xf32>, vector<16x32xf32> -> vector<64x32xf32>
    %180 = arith.mulf %179, %8 : vector<64x32xf32>
    %181 = tpu.concatenate %178, %178, %178, %178 in 0 : vector<16x32xf32>, vector<16x32xf32>, vector<16x32xf32>, vector<16x32xf32> -> vector<64x32xf32>
    %182 = arith.mulf %181, %8 : vector<64x32xf32>
    %cst_55 = arith.constant dense<0.000000e+00> : vector<16x64xf32>
    %183 = tpu.matmul %176, %180, %cst_55 {dimension_numbers = #tpu.dot_dimension_numbers<[1], [1], [0], [0], [0, 0, 1, 0], [], []>} : vector<16x32xf32>, vector<64x32xf32>, vector<16x64xf32> -> vector<16x64xf32>
    %184 = arith.addf %183, %44 : vector<16x64xf32>
    %cst_56 = arith.constant dense<0xFF800000> : vector<16xf32>
    %185 = vector.multi_reduction <maximumf>, %184, %cst_56 [1] : vector<16x64xf32> to vector<16xf32>
    %186 = vector.shape_cast %185 : vector<16xf32> to vector<16x1xf32>
    %187 = vector.broadcast %186 : vector<16x1xf32> to vector<16x64xf32>
    %188 = arith.subf %184, %187 : vector<16x64xf32>
    %189 = math.exp %188 : vector<16x64xf32>
    %cst_57 = arith.constant dense<0.000000e+00> : vector<16x4xf32>
    %190 = tpu.matmul %189, %15, %cst_57 {dimension_numbers = #tpu.dot_dimension_numbers<[1], [0], [0], [1], [0, 0, 1, 1], [], []>} : vector<16x64xf32>, vector<64x4xf32>, vector<16x4xf32> -> vector<16x4xf32>
    %cst_58 = arith.constant dense<0.000000e+00> : vector<16x32xf32>
    %191 = tpu.matmul %189, %182, %cst_58 {dimension_numbers = #tpu.dot_dimension_numbers<[1], [0], [0], [1], [0, 0, 1, 1], [], []>} : vector<16x64xf32>, vector<64x32xf32>, vector<16x32xf32> -> vector<16x32xf32>
    %cst_59 = arith.constant dense<0.000000e+00> : vector<16x32xf32>
    %192 = tpu.matmul %190, %22, %cst_59 {dimension_numbers = #tpu.dot_dimension_numbers<[1], [0], [0], [1], [0, 0, 1, 1], [], []>} : vector<16x4xf32>, vector<4x32xf32>, vector<16x32xf32> -> vector<16x32xf32>
    %193 = tpu.reciprocal %192 {approx = true} : vector<16x32xf32> -> vector<16x32xf32>
    %194 = arith.mulf %191, %193 : vector<16x32xf32>
    %c96 = arith.constant 96 : index
    %c0_60 = arith.constant 0 : index
    %195 = vector.load %arg4[%c96, %c0_60] : memref<544x32xf32, #tpu.memory_space<vmem>>, vector<32x32xf32>
    %cst_61 = arith.constant dense<0.000000e+00> : vector<16x32xf32>
    %196 = tpu.matmul %194, %195, %cst_61 {dimension_numbers = #tpu.dot_dimension_numbers<[1], [0], [0], [1], [0, 0, 1, 1], [], []>} : vector<16x32xf32>, vector<32x32xf32>, vector<16x32xf32> -> vector<16x32xf32>
    %c9 = arith.constant 9 : index
    %c0_62 = arith.constant 0 : index
    %197 = vector.load %arg5[%c9, %c0_62] : memref<45x96xf32, #tpu.memory_space<vmem>>, vector<1x32xf32>
    %198 = vector.shape_cast %197 : vector<1x32xf32> to vector<32xf32>
    %199 = vector.shape_cast %198 : vector<32xf32> to vector<1x32xf32>
    %200 = vector.broadcast %199 : vector<1x32xf32> to vector<16x32xf32>
    %201 = arith.addf %196, %200 : vector<16x32xf32>
    %202 = arith.addf %168, %201 : vector<16x32xf32>
    %cst_63 = arith.constant dense<0.000000e+00> : vector<16xf32>
    %203 = vector.multi_reduction <add>, %202, %cst_63 [1] : vector<16x32xf32> to vector<16xf32>
    %204 = vector.shape_cast %203 : vector<16xf32> to vector<16x1xf32>
    %cst_64 = arith.constant 3.200000e+01 : f32
    %205 = vector.broadcast %cst_64 : f32 to vector<16x1xf32>
    %206 = arith.divf %204, %205 : vector<16x1xf32>
    %207 = vector.broadcast %206 : vector<16x1xf32> to vector<16x32xf32>
    %208 = arith.subf %202, %207 : vector<16x32xf32>
    %209 = arith.mulf %208, %208 : vector<16x32xf32>
    %cst_65 = arith.constant dense<0.000000e+00> : vector<16xf32>
    %210 = vector.multi_reduction <add>, %209, %cst_65 [1] : vector<16x32xf32> to vector<16xf32>
    %211 = vector.shape_cast %210 : vector<16xf32> to vector<16x1xf32>
    %cst_66 = arith.constant 3.200000e+01 : f32
    %212 = vector.broadcast %cst_66 : f32 to vector<16x1xf32>
    %213 = arith.divf %211, %212 : vector<16x1xf32>
    %cst_67 = arith.constant 9.99999974E-6 : f32
    %214 = vector.broadcast %cst_67 : f32 to vector<16x1xf32>
    %215 = arith.addf %213, %214 : vector<16x1xf32>
    %216 = math.rsqrt %215 : vector<16x1xf32>
    %217 = vector.broadcast %216 : vector<16x1xf32> to vector<16x32xf32>
    %218 = arith.mulf %208, %217 : vector<16x32xf32>
    %c12 = arith.constant 12 : index
    %c0_68 = arith.constant 0 : index
    %219 = vector.load %arg5[%c12, %c0_68] : memref<45x96xf32, #tpu.memory_space<vmem>>, vector<1x32xf32>
    %220 = vector.shape_cast %219 : vector<1x32xf32> to vector<32xf32>
    %221 = vector.shape_cast %220 : vector<32xf32> to vector<1x32xf32>
    %222 = vector.broadcast %221 : vector<1x32xf32> to vector<16x32xf32>
    %223 = arith.mulf %218, %222 : vector<16x32xf32>
    %c13 = arith.constant 13 : index
    %c0_69 = arith.constant 0 : index
    %224 = vector.load %arg5[%c13, %c0_69] : memref<45x96xf32, #tpu.memory_space<vmem>>, vector<1x32xf32>
    %225 = vector.shape_cast %224 : vector<1x32xf32> to vector<32xf32>
    %226 = vector.shape_cast %225 : vector<32xf32> to vector<1x32xf32>
    %227 = vector.broadcast %226 : vector<1x32xf32> to vector<16x32xf32>
    %228 = arith.addf %223, %227 : vector<16x32xf32>
    %c32_70 = arith.constant 32 : index
    %c0_71 = arith.constant 0 : index
    %229 = vector.load %arg3[%c32_70, %c0_71] : memref<160x64xf32, #tpu.memory_space<vmem>>, vector<32x64xf32>
    %cst_72 = arith.constant dense<0.000000e+00> : vector<16x64xf32>
    %230 = tpu.matmul %228, %229, %cst_72 {dimension_numbers = #tpu.dot_dimension_numbers<[1], [0], [0], [1], [0, 0, 1, 1], [], []>} : vector<16x32xf32>, vector<32x64xf32>, vector<16x64xf32> -> vector<16x64xf32>
    %c10 = arith.constant 10 : index
    %c0_73 = arith.constant 0 : index
    %231 = vector.load %arg5[%c10, %c0_73] : memref<45x96xf32, #tpu.memory_space<vmem>>, vector<1x64xf32>
    %232 = vector.shape_cast %231 : vector<1x64xf32> to vector<64xf32>
    %233 = vector.shape_cast %232 : vector<64xf32> to vector<1x64xf32>
    %234 = vector.broadcast %233 : vector<1x64xf32> to vector<16x64xf32>
    %235 = arith.addf %230, %234 : vector<16x64xf32>
    %cst_74 = arith.constant 0.000000e+00 : f32
    %236 = vector.broadcast %cst_74 : f32 to vector<16x64xf32>
    %237 = arith.maximumf %235, %236 : vector<16x64xf32>
    %c320 = arith.constant 320 : index
    %c0_75 = arith.constant 0 : index
    %238 = vector.load %arg4[%c320, %c0_75] : memref<544x32xf32, #tpu.memory_space<vmem>>, vector<64x32xf32>
    %cst_76 = arith.constant dense<0.000000e+00> : vector<16x32xf32>
    %239 = tpu.matmul %237, %238, %cst_76 {dimension_numbers = #tpu.dot_dimension_numbers<[1], [0], [0], [1], [0, 0, 1, 1], [], []>} : vector<16x64xf32>, vector<64x32xf32>, vector<16x32xf32> -> vector<16x32xf32>
    %c11 = arith.constant 11 : index
    %c0_77 = arith.constant 0 : index
    %240 = vector.load %arg5[%c11, %c0_77] : memref<45x96xf32, #tpu.memory_space<vmem>>, vector<1x32xf32>
    %241 = vector.shape_cast %240 : vector<1x32xf32> to vector<32xf32>
    %242 = vector.shape_cast %241 : vector<32xf32> to vector<1x32xf32>
    %243 = vector.broadcast %242 : vector<1x32xf32> to vector<16x32xf32>
    %244 = arith.addf %239, %243 : vector<16x32xf32>
    %245 = arith.addf %228, %244 : vector<16x32xf32>
    %cst_78 = arith.constant dense<0.000000e+00> : vector<16xf32>
    %246 = vector.multi_reduction <add>, %245, %cst_78 [1] : vector<16x32xf32> to vector<16xf32>
    %247 = vector.shape_cast %246 : vector<16xf32> to vector<16x1xf32>
    %cst_79 = arith.constant 3.200000e+01 : f32
    %248 = vector.broadcast %cst_79 : f32 to vector<16x1xf32>
    %249 = arith.divf %247, %248 : vector<16x1xf32>
    %250 = vector.broadcast %249 : vector<16x1xf32> to vector<16x32xf32>
    %251 = arith.subf %245, %250 : vector<16x32xf32>
    %252 = arith.mulf %251, %251 : vector<16x32xf32>
    %cst_80 = arith.constant dense<0.000000e+00> : vector<16xf32>
    %253 = vector.multi_reduction <add>, %252, %cst_80 [1] : vector<16x32xf32> to vector<16xf32>
    %254 = vector.shape_cast %253 : vector<16xf32> to vector<16x1xf32>
    %cst_81 = arith.constant 3.200000e+01 : f32
    %255 = vector.broadcast %cst_81 : f32 to vector<16x1xf32>
    %256 = arith.divf %254, %255 : vector<16x1xf32>
    %cst_82 = arith.constant 9.99999974E-6 : f32
    %257 = vector.broadcast %cst_82 : f32 to vector<16x1xf32>
    %258 = arith.addf %256, %257 : vector<16x1xf32>
    %259 = math.rsqrt %258 : vector<16x1xf32>
    %260 = vector.broadcast %259 : vector<16x1xf32> to vector<16x32xf32>
    %261 = arith.mulf %251, %260 : vector<16x32xf32>
    %c14 = arith.constant 14 : index
    %c0_83 = arith.constant 0 : index
    %262 = vector.load %arg5[%c14, %c0_83] : memref<45x96xf32, #tpu.memory_space<vmem>>, vector<1x32xf32>
    %263 = vector.shape_cast %262 : vector<1x32xf32> to vector<32xf32>
    %264 = vector.shape_cast %263 : vector<32xf32> to vector<1x32xf32>
    %265 = vector.broadcast %264 : vector<1x32xf32> to vector<16x32xf32>
    %266 = arith.mulf %261, %265 : vector<16x32xf32>
    %c15 = arith.constant 15 : index
    %c0_84 = arith.constant 0 : index
    %267 = vector.load %arg5[%c15, %c0_84] : memref<45x96xf32, #tpu.memory_space<vmem>>, vector<1x32xf32>
    %268 = vector.shape_cast %267 : vector<1x32xf32> to vector<32xf32>
    %269 = vector.shape_cast %268 : vector<32xf32> to vector<1x32xf32>
    %270 = vector.broadcast %269 : vector<1x32xf32> to vector<16x32xf32>
    %271 = arith.addf %266, %270 : vector<16x32xf32>
    %cst_85 = arith.constant dense<0.000000e+00> : vector<16xf32>
    %272 = vector.multi_reduction <add>, %271, %cst_85 [1] : vector<16x32xf32> to vector<16xf32>
    %273 = vector.shape_cast %272 : vector<16xf32> to vector<16x1xf32>
    %cst_86 = arith.constant 3.200000e+01 : f32
    %274 = vector.broadcast %cst_86 : f32 to vector<16x1xf32>
    %275 = arith.divf %273, %274 : vector<16x1xf32>
    %276 = vector.broadcast %275 : vector<16x1xf32> to vector<16x32xf32>
    %277 = arith.subf %271, %276 : vector<16x32xf32>
    %278 = arith.mulf %277, %277 : vector<16x32xf32>
    %cst_87 = arith.constant dense<0.000000e+00> : vector<16xf32>
    %279 = vector.multi_reduction <add>, %278, %cst_87 [1] : vector<16x32xf32> to vector<16xf32>
    %280 = vector.shape_cast %279 : vector<16xf32> to vector<16x1xf32>
    %cst_88 = arith.constant 3.200000e+01 : f32
    %281 = vector.broadcast %cst_88 : f32 to vector<16x1xf32>
    %282 = arith.divf %280, %281 : vector<16x1xf32>
    %cst_89 = arith.constant 9.99999974E-6 : f32
    %283 = vector.broadcast %cst_89 : f32 to vector<16x1xf32>
    %284 = arith.addf %282, %283 : vector<16x1xf32>
    %285 = math.rsqrt %284 : vector<16x1xf32>
    %286 = vector.broadcast %285 : vector<16x1xf32> to vector<16x32xf32>
    %287 = arith.mulf %277, %286 : vector<16x32xf32>
    %c40 = arith.constant 40 : index
    %c0_90 = arith.constant 0 : index
    %288 = vector.load %arg5[%c40, %c0_90] : memref<45x96xf32, #tpu.memory_space<vmem>>, vector<1x32xf32>
    %289 = vector.shape_cast %288 : vector<1x32xf32> to vector<32xf32>
    %290 = vector.shape_cast %289 : vector<32xf32> to vector<1x32xf32>
    %291 = vector.broadcast %290 : vector<1x32xf32> to vector<16x32xf32>
    %292 = arith.mulf %287, %291 : vector<16x32xf32>
    %c41 = arith.constant 41 : index
    %c0_91 = arith.constant 0 : index
    %293 = vector.load %arg5[%c41, %c0_91] : memref<45x96xf32, #tpu.memory_space<vmem>>, vector<1x32xf32>
    %294 = vector.shape_cast %293 : vector<1x32xf32> to vector<32xf32>
    %295 = vector.shape_cast %294 : vector<32xf32> to vector<1x32xf32>
    %296 = vector.broadcast %295 : vector<1x32xf32> to vector<16x32xf32>
    %297 = arith.addf %292, %296 : vector<16x32xf32>
    %c64_92 = arith.constant 64 : index
    %c0_93 = arith.constant 0 : index
    %298 = vector.load %arg2[%c64_92, %c0_93] : memref<192x96xf32, #tpu.memory_space<vmem>>, vector<32x96xf32>
    %cst_94 = arith.constant dense<0.000000e+00> : vector<16x96xf32>
    %299 = tpu.matmul %65, %298, %cst_94 {dimension_numbers = #tpu.dot_dimension_numbers<[1], [0], [0], [1], [0, 0, 1, 1], [], []>} : vector<16x32xf32>, vector<32x96xf32>, vector<16x96xf32> -> vector<16x96xf32>
    %c16 = arith.constant 16 : index
    %c0_95 = arith.constant 0 : index
    %300 = vector.load %arg5[%c16, %c0_95] : memref<45x96xf32, #tpu.memory_space<vmem>>, vector<1x96xf32>
    %301 = vector.shape_cast %300 : vector<1x96xf32> to vector<96xf32>
    %302 = vector.shape_cast %301 : vector<96xf32> to vector<1x96xf32>
    %303 = vector.broadcast %302 : vector<1x96xf32> to vector<16x96xf32>
    %304 = arith.addf %299, %303 : vector<16x96xf32>
    %305 = vector.extract_strided_slice %304 {offsets = [0, 0], sizes = [16, 32], strides = [1, 1]} : vector<16x96xf32> to vector<16x32xf32>
    %306 = vector.extract_strided_slice %304 {offsets = [0, 32], sizes = [16, 32], strides = [1, 1]} : vector<16x96xf32> to vector<16x32xf32>
    %307 = vector.extract_strided_slice %304 {offsets = [0, 64], sizes = [16, 32], strides = [1, 1]} : vector<16x96xf32> to vector<16x32xf32>
    %308 = tpu.concatenate %306, %306, %306, %306 in 0 : vector<16x32xf32>, vector<16x32xf32>, vector<16x32xf32>, vector<16x32xf32> -> vector<64x32xf32>
    %309 = arith.mulf %308, %8 : vector<64x32xf32>
    %310 = tpu.concatenate %307, %307, %307, %307 in 0 : vector<16x32xf32>, vector<16x32xf32>, vector<16x32xf32>, vector<16x32xf32> -> vector<64x32xf32>
    %311 = arith.mulf %310, %8 : vector<64x32xf32>
    %cst_96 = arith.constant dense<0.000000e+00> : vector<16x64xf32>
    %312 = tpu.matmul %305, %309, %cst_96 {dimension_numbers = #tpu.dot_dimension_numbers<[1], [1], [0], [0], [0, 0, 1, 0], [], []>} : vector<16x32xf32>, vector<64x32xf32>, vector<16x64xf32> -> vector<16x64xf32>
    %313 = arith.addf %312, %53 : vector<16x64xf32>
    %cst_97 = arith.constant dense<0xFF800000> : vector<16xf32>
    %314 = vector.multi_reduction <maximumf>, %313, %cst_97 [1] : vector<16x64xf32> to vector<16xf32>
    %315 = vector.shape_cast %314 : vector<16xf32> to vector<16x1xf32>
    %316 = vector.broadcast %315 : vector<16x1xf32> to vector<16x64xf32>
    %317 = arith.subf %313, %316 : vector<16x64xf32>
    %318 = math.exp %317 : vector<16x64xf32>
    %cst_98 = arith.constant dense<0.000000e+00> : vector<16x4xf32>
    %319 = tpu.matmul %318, %15, %cst_98 {dimension_numbers = #tpu.dot_dimension_numbers<[1], [0], [0], [1], [0, 0, 1, 1], [], []>} : vector<16x64xf32>, vector<64x4xf32>, vector<16x4xf32> -> vector<16x4xf32>
    %cst_99 = arith.constant dense<0.000000e+00> : vector<16x32xf32>
    %320 = tpu.matmul %318, %311, %cst_99 {dimension_numbers = #tpu.dot_dimension_numbers<[1], [0], [0], [1], [0, 0, 1, 1], [], []>} : vector<16x64xf32>, vector<64x32xf32>, vector<16x32xf32> -> vector<16x32xf32>
    %cst_100 = arith.constant dense<0.000000e+00> : vector<16x32xf32>
    %321 = tpu.matmul %319, %22, %cst_100 {dimension_numbers = #tpu.dot_dimension_numbers<[1], [0], [0], [1], [0, 0, 1, 1], [], []>} : vector<16x4xf32>, vector<4x32xf32>, vector<16x32xf32> -> vector<16x32xf32>
    %322 = tpu.reciprocal %321 {approx = true} : vector<16x32xf32> -> vector<16x32xf32>
    %323 = arith.mulf %320, %322 : vector<16x32xf32>
    %c128 = arith.constant 128 : index
    %c0_101 = arith.constant 0 : index
    %324 = vector.load %arg4[%c128, %c0_101] : memref<544x32xf32, #tpu.memory_space<vmem>>, vector<32x32xf32>
    %cst_102 = arith.constant dense<0.000000e+00> : vector<16x32xf32>
    %325 = tpu.matmul %323, %324, %cst_102 {dimension_numbers = #tpu.dot_dimension_numbers<[1], [0], [0], [1], [0, 0, 1, 1], [], []>} : vector<16x32xf32>, vector<32x32xf32>, vector<16x32xf32> -> vector<16x32xf32>
    %c17 = arith.constant 17 : index
    %c0_103 = arith.constant 0 : index
    %326 = vector.load %arg5[%c17, %c0_103] : memref<45x96xf32, #tpu.memory_space<vmem>>, vector<1x32xf32>
    %327 = vector.shape_cast %326 : vector<1x32xf32> to vector<32xf32>
    %328 = vector.shape_cast %327 : vector<32xf32> to vector<1x32xf32>
    %329 = vector.broadcast %328 : vector<1x32xf32> to vector<16x32xf32>
    %330 = arith.addf %325, %329 : vector<16x32xf32>
    %331 = arith.addf %65, %330 : vector<16x32xf32>
    %cst_104 = arith.constant dense<0.000000e+00> : vector<16xf32>
    %332 = vector.multi_reduction <add>, %331, %cst_104 [1] : vector<16x32xf32> to vector<16xf32>
    %333 = vector.shape_cast %332 : vector<16xf32> to vector<16x1xf32>
    %cst_105 = arith.constant 3.200000e+01 : f32
    %334 = vector.broadcast %cst_105 : f32 to vector<16x1xf32>
    %335 = arith.divf %333, %334 : vector<16x1xf32>
    %336 = vector.broadcast %335 : vector<16x1xf32> to vector<16x32xf32>
    %337 = arith.subf %331, %336 : vector<16x32xf32>
    %338 = arith.mulf %337, %337 : vector<16x32xf32>
    %cst_106 = arith.constant dense<0.000000e+00> : vector<16xf32>
    %339 = vector.multi_reduction <add>, %338, %cst_106 [1] : vector<16x32xf32> to vector<16xf32>
    %340 = vector.shape_cast %339 : vector<16xf32> to vector<16x1xf32>
    %cst_107 = arith.constant 3.200000e+01 : f32
    %341 = vector.broadcast %cst_107 : f32 to vector<16x1xf32>
    %342 = arith.divf %340, %341 : vector<16x1xf32>
    %cst_108 = arith.constant 9.99999974E-6 : f32
    %343 = vector.broadcast %cst_108 : f32 to vector<16x1xf32>
    %344 = arith.addf %342, %343 : vector<16x1xf32>
    %345 = math.rsqrt %344 : vector<16x1xf32>
    %346 = vector.broadcast %345 : vector<16x1xf32> to vector<16x32xf32>
    %347 = arith.mulf %337, %346 : vector<16x32xf32>
    %c22 = arith.constant 22 : index
    %c0_109 = arith.constant 0 : index
    %348 = vector.load %arg5[%c22, %c0_109] : memref<45x96xf32, #tpu.memory_space<vmem>>, vector<1x32xf32>
    %349 = vector.shape_cast %348 : vector<1x32xf32> to vector<32xf32>
    %350 = vector.shape_cast %349 : vector<32xf32> to vector<1x32xf32>
    %351 = vector.broadcast %350 : vector<1x32xf32> to vector<16x32xf32>
    %352 = arith.mulf %347, %351 : vector<16x32xf32>
    %c23 = arith.constant 23 : index
    %c0_110 = arith.constant 0 : index
    %353 = vector.load %arg5[%c23, %c0_110] : memref<45x96xf32, #tpu.memory_space<vmem>>, vector<1x32xf32>
    %354 = vector.shape_cast %353 : vector<1x32xf32> to vector<32xf32>
    %355 = vector.shape_cast %354 : vector<32xf32> to vector<1x32xf32>
    %356 = vector.broadcast %355 : vector<1x32xf32> to vector<16x32xf32>
    %357 = arith.addf %352, %356 : vector<16x32xf32>
    %c18 = arith.constant 18 : index
    %c0_111 = arith.constant 0 : index
    %358 = vector.load %arg5[%c18, %c0_111] : memref<45x96xf32, #tpu.memory_space<vmem>>, vector<1x96xf32>
    %359 = vector.shape_cast %358 : vector<1x96xf32> to vector<96xf32>
    %c96_112 = arith.constant 96 : index
    %c0_113 = arith.constant 0 : index
    %360 = vector.load %arg2[%c96_112, %c0_113] : memref<192x96xf32, #tpu.memory_space<vmem>>, vector<32x32xf32>
    %cst_114 = arith.constant dense<0.000000e+00> : vector<16x32xf32>
    %361 = tpu.matmul %357, %360, %cst_114 {dimension_numbers = #tpu.dot_dimension_numbers<[1], [0], [0], [1], [0, 0, 1, 1], [], []>} : vector<16x32xf32>, vector<32x32xf32>, vector<16x32xf32> -> vector<16x32xf32>
    %362 = vector.extract_strided_slice %359 {offsets = [0], sizes = [32], strides = [1]} : vector<96xf32> to vector<32xf32>
    %363 = vector.shape_cast %362 : vector<32xf32> to vector<1x32xf32>
    %364 = vector.broadcast %363 : vector<1x32xf32> to vector<16x32xf32>
    %365 = arith.addf %361, %364 : vector<16x32xf32>
    %c96_115 = arith.constant 96 : index
    %c32_116 = arith.constant 32 : index
    %366 = vector.load %arg2[%c96_115, %c32_116] : memref<192x96xf32, #tpu.memory_space<vmem>>, vector<32x64xf32>
    %cst_117 = arith.constant dense<0.000000e+00> : vector<16x64xf32>
    %367 = tpu.matmul %297, %366, %cst_117 {dimension_numbers = #tpu.dot_dimension_numbers<[1], [0], [0], [1], [0, 0, 1, 1], [], []>} : vector<16x32xf32>, vector<32x64xf32>, vector<16x64xf32> -> vector<16x64xf32>
    %368 = vector.extract_strided_slice %359 {offsets = [32], sizes = [64], strides = [1]} : vector<96xf32> to vector<64xf32>
    %369 = vector.shape_cast %368 : vector<64xf32> to vector<1x64xf32>
    %370 = vector.broadcast %369 : vector<1x64xf32> to vector<16x64xf32>
    %371 = arith.addf %367, %370 : vector<16x64xf32>
    %372 = vector.extract_strided_slice %371 {offsets = [0, 0], sizes = [16, 32], strides = [1, 1]} : vector<16x64xf32> to vector<16x32xf32>
    %373 = vector.extract_strided_slice %371 {offsets = [0, 32], sizes = [16, 32], strides = [1, 1]} : vector<16x64xf32> to vector<16x32xf32>
    %374 = tpu.concatenate %372, %372, %372, %372 in 0 : vector<16x32xf32>, vector<16x32xf32>, vector<16x32xf32>, vector<16x32xf32> -> vector<64x32xf32>
    %375 = arith.mulf %374, %8 : vector<64x32xf32>
    %376 = tpu.concatenate %373, %373, %373, %373 in 0 : vector<16x32xf32>, vector<16x32xf32>, vector<16x32xf32>, vector<16x32xf32> -> vector<64x32xf32>
    %377 = arith.mulf %376, %8 : vector<64x32xf32>
    %cst_118 = arith.constant dense<0.000000e+00> : vector<16x64xf32>
    %378 = tpu.matmul %365, %375, %cst_118 {dimension_numbers = #tpu.dot_dimension_numbers<[1], [1], [0], [0], [0, 0, 1, 0], [], []>} : vector<16x32xf32>, vector<64x32xf32>, vector<16x64xf32> -> vector<16x64xf32>
    %379 = arith.addf %378, %44 : vector<16x64xf32>
    %cst_119 = arith.constant dense<0xFF800000> : vector<16xf32>
    %380 = vector.multi_reduction <maximumf>, %379, %cst_119 [1] : vector<16x64xf32> to vector<16xf32>
    %381 = vector.shape_cast %380 : vector<16xf32> to vector<16x1xf32>
    %382 = vector.broadcast %381 : vector<16x1xf32> to vector<16x64xf32>
    %383 = arith.subf %379, %382 : vector<16x64xf32>
    %384 = math.exp %383 : vector<16x64xf32>
    %cst_120 = arith.constant dense<0.000000e+00> : vector<16x4xf32>
    %385 = tpu.matmul %384, %15, %cst_120 {dimension_numbers = #tpu.dot_dimension_numbers<[1], [0], [0], [1], [0, 0, 1, 1], [], []>} : vector<16x64xf32>, vector<64x4xf32>, vector<16x4xf32> -> vector<16x4xf32>
    %cst_121 = arith.constant dense<0.000000e+00> : vector<16x32xf32>
    %386 = tpu.matmul %384, %377, %cst_121 {dimension_numbers = #tpu.dot_dimension_numbers<[1], [0], [0], [1], [0, 0, 1, 1], [], []>} : vector<16x64xf32>, vector<64x32xf32>, vector<16x32xf32> -> vector<16x32xf32>
    %cst_122 = arith.constant dense<0.000000e+00> : vector<16x32xf32>
    %387 = tpu.matmul %385, %22, %cst_122 {dimension_numbers = #tpu.dot_dimension_numbers<[1], [0], [0], [1], [0, 0, 1, 1], [], []>} : vector<16x4xf32>, vector<4x32xf32>, vector<16x32xf32> -> vector<16x32xf32>
    %388 = tpu.reciprocal %387 {approx = true} : vector<16x32xf32> -> vector<16x32xf32>
    %389 = arith.mulf %386, %388 : vector<16x32xf32>
    %c160 = arith.constant 160 : index
    %c0_123 = arith.constant 0 : index
    %390 = vector.load %arg4[%c160, %c0_123] : memref<544x32xf32, #tpu.memory_space<vmem>>, vector<32x32xf32>
    %cst_124 = arith.constant dense<0.000000e+00> : vector<16x32xf32>
    %391 = tpu.matmul %389, %390, %cst_124 {dimension_numbers = #tpu.dot_dimension_numbers<[1], [0], [0], [1], [0, 0, 1, 1], [], []>} : vector<16x32xf32>, vector<32x32xf32>, vector<16x32xf32> -> vector<16x32xf32>
    %c19 = arith.constant 19 : index
    %c0_125 = arith.constant 0 : index
    %392 = vector.load %arg5[%c19, %c0_125] : memref<45x96xf32, #tpu.memory_space<vmem>>, vector<1x32xf32>
    %393 = vector.shape_cast %392 : vector<1x32xf32> to vector<32xf32>
    %394 = vector.shape_cast %393 : vector<32xf32> to vector<1x32xf32>
    %395 = vector.broadcast %394 : vector<1x32xf32> to vector<16x32xf32>
    %396 = arith.addf %391, %395 : vector<16x32xf32>
    %397 = arith.addf %357, %396 : vector<16x32xf32>
    %cst_126 = arith.constant dense<0.000000e+00> : vector<16xf32>
    %398 = vector.multi_reduction <add>, %397, %cst_126 [1] : vector<16x32xf32> to vector<16xf32>
    %399 = vector.shape_cast %398 : vector<16xf32> to vector<16x1xf32>
    %cst_127 = arith.constant 3.200000e+01 : f32
    %400 = vector.broadcast %cst_127 : f32 to vector<16x1xf32>
    %401 = arith.divf %399, %400 : vector<16x1xf32>
    %402 = vector.broadcast %401 : vector<16x1xf32> to vector<16x32xf32>
    %403 = arith.subf %397, %402 : vector<16x32xf32>
    %404 = arith.mulf %403, %403 : vector<16x32xf32>
    %cst_128 = arith.constant dense<0.000000e+00> : vector<16xf32>
    %405 = vector.multi_reduction <add>, %404, %cst_128 [1] : vector<16x32xf32> to vector<16xf32>
    %406 = vector.shape_cast %405 : vector<16xf32> to vector<16x1xf32>
    %cst_129 = arith.constant 3.200000e+01 : f32
    %407 = vector.broadcast %cst_129 : f32 to vector<16x1xf32>
    %408 = arith.divf %406, %407 : vector<16x1xf32>
    %cst_130 = arith.constant 9.99999974E-6 : f32
    %409 = vector.broadcast %cst_130 : f32 to vector<16x1xf32>
    %410 = arith.addf %408, %409 : vector<16x1xf32>
    %411 = math.rsqrt %410 : vector<16x1xf32>
    %412 = vector.broadcast %411 : vector<16x1xf32> to vector<16x32xf32>
    %413 = arith.mulf %403, %412 : vector<16x32xf32>
    %c24 = arith.constant 24 : index
    %c0_131 = arith.constant 0 : index
    %414 = vector.load %arg5[%c24, %c0_131] : memref<45x96xf32, #tpu.memory_space<vmem>>, vector<1x32xf32>
    %415 = vector.shape_cast %414 : vector<1x32xf32> to vector<32xf32>
    %416 = vector.shape_cast %415 : vector<32xf32> to vector<1x32xf32>
    %417 = vector.broadcast %416 : vector<1x32xf32> to vector<16x32xf32>
    %418 = arith.mulf %413, %417 : vector<16x32xf32>
    %c25 = arith.constant 25 : index
    %c0_132 = arith.constant 0 : index
    %419 = vector.load %arg5[%c25, %c0_132] : memref<45x96xf32, #tpu.memory_space<vmem>>, vector<1x32xf32>
    %420 = vector.shape_cast %419 : vector<1x32xf32> to vector<32xf32>
    %421 = vector.shape_cast %420 : vector<32xf32> to vector<1x32xf32>
    %422 = vector.broadcast %421 : vector<1x32xf32> to vector<16x32xf32>
    %423 = arith.addf %418, %422 : vector<16x32xf32>
    %c64_133 = arith.constant 64 : index
    %c0_134 = arith.constant 0 : index
    %424 = vector.load %arg3[%c64_133, %c0_134] : memref<160x64xf32, #tpu.memory_space<vmem>>, vector<32x64xf32>
    %cst_135 = arith.constant dense<0.000000e+00> : vector<16x64xf32>
    %425 = tpu.matmul %423, %424, %cst_135 {dimension_numbers = #tpu.dot_dimension_numbers<[1], [0], [0], [1], [0, 0, 1, 1], [], []>} : vector<16x32xf32>, vector<32x64xf32>, vector<16x64xf32> -> vector<16x64xf32>
    %c20 = arith.constant 20 : index
    %c0_136 = arith.constant 0 : index
    %426 = vector.load %arg5[%c20, %c0_136] : memref<45x96xf32, #tpu.memory_space<vmem>>, vector<1x64xf32>
    %427 = vector.shape_cast %426 : vector<1x64xf32> to vector<64xf32>
    %428 = vector.shape_cast %427 : vector<64xf32> to vector<1x64xf32>
    %429 = vector.broadcast %428 : vector<1x64xf32> to vector<16x64xf32>
    %430 = arith.addf %425, %429 : vector<16x64xf32>
    %cst_137 = arith.constant 0.000000e+00 : f32
    %431 = vector.broadcast %cst_137 : f32 to vector<16x64xf32>
    %432 = arith.maximumf %430, %431 : vector<16x64xf32>
    %c384 = arith.constant 384 : index
    %c0_138 = arith.constant 0 : index
    %433 = vector.load %arg4[%c384, %c0_138] : memref<544x32xf32, #tpu.memory_space<vmem>>, vector<64x32xf32>
    %cst_139 = arith.constant dense<0.000000e+00> : vector<16x32xf32>
    %434 = tpu.matmul %432, %433, %cst_139 {dimension_numbers = #tpu.dot_dimension_numbers<[1], [0], [0], [1], [0, 0, 1, 1], [], []>} : vector<16x64xf32>, vector<64x32xf32>, vector<16x32xf32> -> vector<16x32xf32>
    %c21 = arith.constant 21 : index
    %c0_140 = arith.constant 0 : index
    %435 = vector.load %arg5[%c21, %c0_140] : memref<45x96xf32, #tpu.memory_space<vmem>>, vector<1x32xf32>
    %436 = vector.shape_cast %435 : vector<1x32xf32> to vector<32xf32>
    %437 = vector.shape_cast %436 : vector<32xf32> to vector<1x32xf32>
    %438 = vector.broadcast %437 : vector<1x32xf32> to vector<16x32xf32>
    %439 = arith.addf %434, %438 : vector<16x32xf32>
    %440 = arith.addf %423, %439 : vector<16x32xf32>
    %cst_141 = arith.constant dense<0.000000e+00> : vector<16xf32>
    %441 = vector.multi_reduction <add>, %440, %cst_141 [1] : vector<16x32xf32> to vector<16xf32>
    %442 = vector.shape_cast %441 : vector<16xf32> to vector<16x1xf32>
    %cst_142 = arith.constant 3.200000e+01 : f32
    %443 = vector.broadcast %cst_142 : f32 to vector<16x1xf32>
    %444 = arith.divf %442, %443 : vector<16x1xf32>
    %445 = vector.broadcast %444 : vector<16x1xf32> to vector<16x32xf32>
    %446 = arith.subf %440, %445 : vector<16x32xf32>
    %447 = arith.mulf %446, %446 : vector<16x32xf32>
    %cst_143 = arith.constant dense<0.000000e+00> : vector<16xf32>
    %448 = vector.multi_reduction <add>, %447, %cst_143 [1] : vector<16x32xf32> to vector<16xf32>
    %449 = vector.shape_cast %448 : vector<16xf32> to vector<16x1xf32>
    %cst_144 = arith.constant 3.200000e+01 : f32
    %450 = vector.broadcast %cst_144 : f32 to vector<16x1xf32>
    %451 = arith.divf %449, %450 : vector<16x1xf32>
    %cst_145 = arith.constant 9.99999974E-6 : f32
    %452 = vector.broadcast %cst_145 : f32 to vector<16x1xf32>
    %453 = arith.addf %451, %452 : vector<16x1xf32>
    %454 = math.rsqrt %453 : vector<16x1xf32>
    %455 = vector.broadcast %454 : vector<16x1xf32> to vector<16x32xf32>
    %456 = arith.mulf %446, %455 : vector<16x32xf32>
    %c26 = arith.constant 26 : index
    %c0_146 = arith.constant 0 : index
    %457 = vector.load %arg5[%c26, %c0_146] : memref<45x96xf32, #tpu.memory_space<vmem>>, vector<1x32xf32>
    %458 = vector.shape_cast %457 : vector<1x32xf32> to vector<32xf32>
    %459 = vector.shape_cast %458 : vector<32xf32> to vector<1x32xf32>
    %460 = vector.broadcast %459 : vector<1x32xf32> to vector<16x32xf32>
    %461 = arith.mulf %456, %460 : vector<16x32xf32>
    %c27 = arith.constant 27 : index
    %c0_147 = arith.constant 0 : index
    %462 = vector.load %arg5[%c27, %c0_147] : memref<45x96xf32, #tpu.memory_space<vmem>>, vector<1x32xf32>
    %463 = vector.shape_cast %462 : vector<1x32xf32> to vector<32xf32>
    %464 = vector.shape_cast %463 : vector<32xf32> to vector<1x32xf32>
    %465 = vector.broadcast %464 : vector<1x32xf32> to vector<16x32xf32>
    %466 = arith.addf %461, %465 : vector<16x32xf32>
    %c128_148 = arith.constant 128 : index
    %c0_149 = arith.constant 0 : index
    %467 = vector.load %arg2[%c128_148, %c0_149] : memref<192x96xf32, #tpu.memory_space<vmem>>, vector<32x96xf32>
    %cst_150 = arith.constant dense<0.000000e+00> : vector<16x96xf32>
    %468 = tpu.matmul %466, %467, %cst_150 {dimension_numbers = #tpu.dot_dimension_numbers<[1], [0], [0], [1], [0, 0, 1, 1], [], []>} : vector<16x32xf32>, vector<32x96xf32>, vector<16x96xf32> -> vector<16x96xf32>
    %c28 = arith.constant 28 : index
    %c0_151 = arith.constant 0 : index
    %469 = vector.load %arg5[%c28, %c0_151] : memref<45x96xf32, #tpu.memory_space<vmem>>, vector<1x96xf32>
    %470 = vector.shape_cast %469 : vector<1x96xf32> to vector<96xf32>
    %471 = vector.shape_cast %470 : vector<96xf32> to vector<1x96xf32>
    %472 = vector.broadcast %471 : vector<1x96xf32> to vector<16x96xf32>
    %473 = arith.addf %468, %472 : vector<16x96xf32>
    %474 = vector.extract_strided_slice %473 {offsets = [0, 0], sizes = [16, 32], strides = [1, 1]} : vector<16x96xf32> to vector<16x32xf32>
    %475 = vector.extract_strided_slice %473 {offsets = [0, 32], sizes = [16, 32], strides = [1, 1]} : vector<16x96xf32> to vector<16x32xf32>
    %476 = vector.extract_strided_slice %473 {offsets = [0, 64], sizes = [16, 32], strides = [1, 1]} : vector<16x96xf32> to vector<16x32xf32>
    %477 = tpu.concatenate %475, %475, %475, %475 in 0 : vector<16x32xf32>, vector<16x32xf32>, vector<16x32xf32>, vector<16x32xf32> -> vector<64x32xf32>
    %478 = arith.mulf %477, %8 : vector<64x32xf32>
    %479 = tpu.concatenate %476, %476, %476, %476 in 0 : vector<16x32xf32>, vector<16x32xf32>, vector<16x32xf32>, vector<16x32xf32> -> vector<64x32xf32>
    %480 = arith.mulf %479, %8 : vector<64x32xf32>
    %cst_152 = arith.constant dense<0.000000e+00> : vector<16x64xf32>
    %481 = tpu.matmul %474, %478, %cst_152 {dimension_numbers = #tpu.dot_dimension_numbers<[1], [1], [0], [0], [0, 0, 1, 0], [], []>} : vector<16x32xf32>, vector<64x32xf32>, vector<16x64xf32> -> vector<16x64xf32>
    %482 = arith.addf %481, %53 : vector<16x64xf32>
    %cst_153 = arith.constant dense<0xFF800000> : vector<16xf32>
    %483 = vector.multi_reduction <maximumf>, %482, %cst_153 [1] : vector<16x64xf32> to vector<16xf32>
    %484 = vector.shape_cast %483 : vector<16xf32> to vector<16x1xf32>
    %485 = vector.broadcast %484 : vector<16x1xf32> to vector<16x64xf32>
    %486 = arith.subf %482, %485 : vector<16x64xf32>
    %487 = math.exp %486 : vector<16x64xf32>
    %cst_154 = arith.constant dense<0.000000e+00> : vector<16x4xf32>
    %488 = tpu.matmul %487, %15, %cst_154 {dimension_numbers = #tpu.dot_dimension_numbers<[1], [0], [0], [1], [0, 0, 1, 1], [], []>} : vector<16x64xf32>, vector<64x4xf32>, vector<16x4xf32> -> vector<16x4xf32>
    %cst_155 = arith.constant dense<0.000000e+00> : vector<16x32xf32>
    %489 = tpu.matmul %487, %480, %cst_155 {dimension_numbers = #tpu.dot_dimension_numbers<[1], [0], [0], [1], [0, 0, 1, 1], [], []>} : vector<16x64xf32>, vector<64x32xf32>, vector<16x32xf32> -> vector<16x32xf32>
    %cst_156 = arith.constant dense<0.000000e+00> : vector<16x32xf32>
    %490 = tpu.matmul %488, %22, %cst_156 {dimension_numbers = #tpu.dot_dimension_numbers<[1], [0], [0], [1], [0, 0, 1, 1], [], []>} : vector<16x4xf32>, vector<4x32xf32>, vector<16x32xf32> -> vector<16x32xf32>
    %491 = tpu.reciprocal %490 {approx = true} : vector<16x32xf32> -> vector<16x32xf32>
    %492 = arith.mulf %489, %491 : vector<16x32xf32>
    %c192 = arith.constant 192 : index
    %c0_157 = arith.constant 0 : index
    %493 = vector.load %arg4[%c192, %c0_157] : memref<544x32xf32, #tpu.memory_space<vmem>>, vector<32x32xf32>
    %cst_158 = arith.constant dense<0.000000e+00> : vector<16x32xf32>
    %494 = tpu.matmul %492, %493, %cst_158 {dimension_numbers = #tpu.dot_dimension_numbers<[1], [0], [0], [1], [0, 0, 1, 1], [], []>} : vector<16x32xf32>, vector<32x32xf32>, vector<16x32xf32> -> vector<16x32xf32>
    %c29 = arith.constant 29 : index
    %c0_159 = arith.constant 0 : index
    %495 = vector.load %arg5[%c29, %c0_159] : memref<45x96xf32, #tpu.memory_space<vmem>>, vector<1x32xf32>
    %496 = vector.shape_cast %495 : vector<1x32xf32> to vector<32xf32>
    %497 = vector.shape_cast %496 : vector<32xf32> to vector<1x32xf32>
    %498 = vector.broadcast %497 : vector<1x32xf32> to vector<16x32xf32>
    %499 = arith.addf %494, %498 : vector<16x32xf32>
    %500 = arith.addf %466, %499 : vector<16x32xf32>
    %cst_160 = arith.constant dense<0.000000e+00> : vector<16xf32>
    %501 = vector.multi_reduction <add>, %500, %cst_160 [1] : vector<16x32xf32> to vector<16xf32>
    %502 = vector.shape_cast %501 : vector<16xf32> to vector<16x1xf32>
    %cst_161 = arith.constant 3.200000e+01 : f32
    %503 = vector.broadcast %cst_161 : f32 to vector<16x1xf32>
    %504 = arith.divf %502, %503 : vector<16x1xf32>
    %505 = vector.broadcast %504 : vector<16x1xf32> to vector<16x32xf32>
    %506 = arith.subf %500, %505 : vector<16x32xf32>
    %507 = arith.mulf %506, %506 : vector<16x32xf32>
    %cst_162 = arith.constant dense<0.000000e+00> : vector<16xf32>
    %508 = vector.multi_reduction <add>, %507, %cst_162 [1] : vector<16x32xf32> to vector<16xf32>
    %509 = vector.shape_cast %508 : vector<16xf32> to vector<16x1xf32>
    %cst_163 = arith.constant 3.200000e+01 : f32
    %510 = vector.broadcast %cst_163 : f32 to vector<16x1xf32>
    %511 = arith.divf %509, %510 : vector<16x1xf32>
    %cst_164 = arith.constant 9.99999974E-6 : f32
    %512 = vector.broadcast %cst_164 : f32 to vector<16x1xf32>
    %513 = arith.addf %511, %512 : vector<16x1xf32>
    %514 = math.rsqrt %513 : vector<16x1xf32>
    %515 = vector.broadcast %514 : vector<16x1xf32> to vector<16x32xf32>
    %516 = arith.mulf %506, %515 : vector<16x32xf32>
    %c34 = arith.constant 34 : index
    %c0_165 = arith.constant 0 : index
    %517 = vector.load %arg5[%c34, %c0_165] : memref<45x96xf32, #tpu.memory_space<vmem>>, vector<1x32xf32>
    %518 = vector.shape_cast %517 : vector<1x32xf32> to vector<32xf32>
    %519 = vector.shape_cast %518 : vector<32xf32> to vector<1x32xf32>
    %520 = vector.broadcast %519 : vector<1x32xf32> to vector<16x32xf32>
    %521 = arith.mulf %516, %520 : vector<16x32xf32>
    %c35 = arith.constant 35 : index
    %c0_166 = arith.constant 0 : index
    %522 = vector.load %arg5[%c35, %c0_166] : memref<45x96xf32, #tpu.memory_space<vmem>>, vector<1x32xf32>
    %523 = vector.shape_cast %522 : vector<1x32xf32> to vector<32xf32>
    %524 = vector.shape_cast %523 : vector<32xf32> to vector<1x32xf32>
    %525 = vector.broadcast %524 : vector<1x32xf32> to vector<16x32xf32>
    %526 = arith.addf %521, %525 : vector<16x32xf32>
    %c30 = arith.constant 30 : index
    %c0_167 = arith.constant 0 : index
    %527 = vector.load %arg5[%c30, %c0_167] : memref<45x96xf32, #tpu.memory_space<vmem>>, vector<1x96xf32>
    %528 = vector.shape_cast %527 : vector<1x96xf32> to vector<96xf32>
    %c160_168 = arith.constant 160 : index
    %c0_169 = arith.constant 0 : index
    %529 = vector.load %arg2[%c160_168, %c0_169] : memref<192x96xf32, #tpu.memory_space<vmem>>, vector<32x32xf32>
    %cst_170 = arith.constant dense<0.000000e+00> : vector<16x32xf32>
    %530 = tpu.matmul %526, %529, %cst_170 {dimension_numbers = #tpu.dot_dimension_numbers<[1], [0], [0], [1], [0, 0, 1, 1], [], []>} : vector<16x32xf32>, vector<32x32xf32>, vector<16x32xf32> -> vector<16x32xf32>
    %531 = vector.extract_strided_slice %528 {offsets = [0], sizes = [32], strides = [1]} : vector<96xf32> to vector<32xf32>
    %532 = vector.shape_cast %531 : vector<32xf32> to vector<1x32xf32>
    %533 = vector.broadcast %532 : vector<1x32xf32> to vector<16x32xf32>
    %534 = arith.addf %530, %533 : vector<16x32xf32>
    %c160_171 = arith.constant 160 : index
    %c32_172 = arith.constant 32 : index
    %535 = vector.load %arg2[%c160_171, %c32_172] : memref<192x96xf32, #tpu.memory_space<vmem>>, vector<32x64xf32>
    %cst_173 = arith.constant dense<0.000000e+00> : vector<16x64xf32>
    %536 = tpu.matmul %297, %535, %cst_173 {dimension_numbers = #tpu.dot_dimension_numbers<[1], [0], [0], [1], [0, 0, 1, 1], [], []>} : vector<16x32xf32>, vector<32x64xf32>, vector<16x64xf32> -> vector<16x64xf32>
    %537 = vector.extract_strided_slice %528 {offsets = [32], sizes = [64], strides = [1]} : vector<96xf32> to vector<64xf32>
    %538 = vector.shape_cast %537 : vector<64xf32> to vector<1x64xf32>
    %539 = vector.broadcast %538 : vector<1x64xf32> to vector<16x64xf32>
    %540 = arith.addf %536, %539 : vector<16x64xf32>
    %541 = vector.extract_strided_slice %540 {offsets = [0, 0], sizes = [16, 32], strides = [1, 1]} : vector<16x64xf32> to vector<16x32xf32>
    %542 = vector.extract_strided_slice %540 {offsets = [0, 32], sizes = [16, 32], strides = [1, 1]} : vector<16x64xf32> to vector<16x32xf32>
    %543 = tpu.concatenate %541, %541, %541, %541 in 0 : vector<16x32xf32>, vector<16x32xf32>, vector<16x32xf32>, vector<16x32xf32> -> vector<64x32xf32>
    %544 = arith.mulf %543, %8 : vector<64x32xf32>
    %545 = tpu.concatenate %542, %542, %542, %542 in 0 : vector<16x32xf32>, vector<16x32xf32>, vector<16x32xf32>, vector<16x32xf32> -> vector<64x32xf32>
    %546 = arith.mulf %545, %8 : vector<64x32xf32>
    %cst_174 = arith.constant dense<0.000000e+00> : vector<16x64xf32>
    %547 = tpu.matmul %534, %544, %cst_174 {dimension_numbers = #tpu.dot_dimension_numbers<[1], [1], [0], [0], [0, 0, 1, 0], [], []>} : vector<16x32xf32>, vector<64x32xf32>, vector<16x64xf32> -> vector<16x64xf32>
    %548 = arith.addf %547, %44 : vector<16x64xf32>
    %cst_175 = arith.constant dense<0xFF800000> : vector<16xf32>
    %549 = vector.multi_reduction <maximumf>, %548, %cst_175 [1] : vector<16x64xf32> to vector<16xf32>
    %550 = vector.shape_cast %549 : vector<16xf32> to vector<16x1xf32>
    %551 = vector.broadcast %550 : vector<16x1xf32> to vector<16x64xf32>
    %552 = arith.subf %548, %551 : vector<16x64xf32>
    %553 = math.exp %552 : vector<16x64xf32>
    %cst_176 = arith.constant dense<0.000000e+00> : vector<16x4xf32>
    %554 = tpu.matmul %553, %15, %cst_176 {dimension_numbers = #tpu.dot_dimension_numbers<[1], [0], [0], [1], [0, 0, 1, 1], [], []>} : vector<16x64xf32>, vector<64x4xf32>, vector<16x4xf32> -> vector<16x4xf32>
    %cst_177 = arith.constant dense<0.000000e+00> : vector<16x32xf32>
    %555 = tpu.matmul %553, %546, %cst_177 {dimension_numbers = #tpu.dot_dimension_numbers<[1], [0], [0], [1], [0, 0, 1, 1], [], []>} : vector<16x64xf32>, vector<64x32xf32>, vector<16x32xf32> -> vector<16x32xf32>
    %cst_178 = arith.constant dense<0.000000e+00> : vector<16x32xf32>
    %556 = tpu.matmul %554, %22, %cst_178 {dimension_numbers = #tpu.dot_dimension_numbers<[1], [0], [0], [1], [0, 0, 1, 1], [], []>} : vector<16x4xf32>, vector<4x32xf32>, vector<16x32xf32> -> vector<16x32xf32>
    %557 = tpu.reciprocal %556 {approx = true} : vector<16x32xf32> -> vector<16x32xf32>
    %558 = arith.mulf %555, %557 : vector<16x32xf32>
    %c224 = arith.constant 224 : index
    %c0_179 = arith.constant 0 : index
    %559 = vector.load %arg4[%c224, %c0_179] : memref<544x32xf32, #tpu.memory_space<vmem>>, vector<32x32xf32>
    %cst_180 = arith.constant dense<0.000000e+00> : vector<16x32xf32>
    %560 = tpu.matmul %558, %559, %cst_180 {dimension_numbers = #tpu.dot_dimension_numbers<[1], [0], [0], [1], [0, 0, 1, 1], [], []>} : vector<16x32xf32>, vector<32x32xf32>, vector<16x32xf32> -> vector<16x32xf32>
    %c31 = arith.constant 31 : index
    %c0_181 = arith.constant 0 : index
    %561 = vector.load %arg5[%c31, %c0_181] : memref<45x96xf32, #tpu.memory_space<vmem>>, vector<1x32xf32>
    %562 = vector.shape_cast %561 : vector<1x32xf32> to vector<32xf32>
    %563 = vector.shape_cast %562 : vector<32xf32> to vector<1x32xf32>
    %564 = vector.broadcast %563 : vector<1x32xf32> to vector<16x32xf32>
    %565 = arith.addf %560, %564 : vector<16x32xf32>
    %566 = arith.addf %526, %565 : vector<16x32xf32>
    %cst_182 = arith.constant dense<0.000000e+00> : vector<16xf32>
    %567 = vector.multi_reduction <add>, %566, %cst_182 [1] : vector<16x32xf32> to vector<16xf32>
    %568 = vector.shape_cast %567 : vector<16xf32> to vector<16x1xf32>
    %cst_183 = arith.constant 3.200000e+01 : f32
    %569 = vector.broadcast %cst_183 : f32 to vector<16x1xf32>
    %570 = arith.divf %568, %569 : vector<16x1xf32>
    %571 = vector.broadcast %570 : vector<16x1xf32> to vector<16x32xf32>
    %572 = arith.subf %566, %571 : vector<16x32xf32>
    %573 = arith.mulf %572, %572 : vector<16x32xf32>
    %cst_184 = arith.constant dense<0.000000e+00> : vector<16xf32>
    %574 = vector.multi_reduction <add>, %573, %cst_184 [1] : vector<16x32xf32> to vector<16xf32>
    %575 = vector.shape_cast %574 : vector<16xf32> to vector<16x1xf32>
    %cst_185 = arith.constant 3.200000e+01 : f32
    %576 = vector.broadcast %cst_185 : f32 to vector<16x1xf32>
    %577 = arith.divf %575, %576 : vector<16x1xf32>
    %cst_186 = arith.constant 9.99999974E-6 : f32
    %578 = vector.broadcast %cst_186 : f32 to vector<16x1xf32>
    %579 = arith.addf %577, %578 : vector<16x1xf32>
    %580 = math.rsqrt %579 : vector<16x1xf32>
    %581 = vector.broadcast %580 : vector<16x1xf32> to vector<16x32xf32>
    %582 = arith.mulf %572, %581 : vector<16x32xf32>
    %c36 = arith.constant 36 : index
    %c0_187 = arith.constant 0 : index
    %583 = vector.load %arg5[%c36, %c0_187] : memref<45x96xf32, #tpu.memory_space<vmem>>, vector<1x32xf32>
    %584 = vector.shape_cast %583 : vector<1x32xf32> to vector<32xf32>
    %585 = vector.shape_cast %584 : vector<32xf32> to vector<1x32xf32>
    %586 = vector.broadcast %585 : vector<1x32xf32> to vector<16x32xf32>
    %587 = arith.mulf %582, %586 : vector<16x32xf32>
    %c37 = arith.constant 37 : index
    %c0_188 = arith.constant 0 : index
    %588 = vector.load %arg5[%c37, %c0_188] : memref<45x96xf32, #tpu.memory_space<vmem>>, vector<1x32xf32>
    %589 = vector.shape_cast %588 : vector<1x32xf32> to vector<32xf32>
    %590 = vector.shape_cast %589 : vector<32xf32> to vector<1x32xf32>
    %591 = vector.broadcast %590 : vector<1x32xf32> to vector<16x32xf32>
    %592 = arith.addf %587, %591 : vector<16x32xf32>
    %c96_189 = arith.constant 96 : index
    %c0_190 = arith.constant 0 : index
    %593 = vector.load %arg3[%c96_189, %c0_190] : memref<160x64xf32, #tpu.memory_space<vmem>>, vector<32x64xf32>
    %cst_191 = arith.constant dense<0.000000e+00> : vector<16x64xf32>
    %594 = tpu.matmul %592, %593, %cst_191 {dimension_numbers = #tpu.dot_dimension_numbers<[1], [0], [0], [1], [0, 0, 1, 1], [], []>} : vector<16x32xf32>, vector<32x64xf32>, vector<16x64xf32> -> vector<16x64xf32>
    %c32_192 = arith.constant 32 : index
    %c0_193 = arith.constant 0 : index
    %595 = vector.load %arg5[%c32_192, %c0_193] : memref<45x96xf32, #tpu.memory_space<vmem>>, vector<1x64xf32>
    %596 = vector.shape_cast %595 : vector<1x64xf32> to vector<64xf32>
    %597 = vector.shape_cast %596 : vector<64xf32> to vector<1x64xf32>
    %598 = vector.broadcast %597 : vector<1x64xf32> to vector<16x64xf32>
    %599 = arith.addf %594, %598 : vector<16x64xf32>
    %cst_194 = arith.constant 0.000000e+00 : f32
    %600 = vector.broadcast %cst_194 : f32 to vector<16x64xf32>
    %601 = arith.maximumf %599, %600 : vector<16x64xf32>
    %c448 = arith.constant 448 : index
    %c0_195 = arith.constant 0 : index
    %602 = vector.load %arg4[%c448, %c0_195] : memref<544x32xf32, #tpu.memory_space<vmem>>, vector<64x32xf32>
    %cst_196 = arith.constant dense<0.000000e+00> : vector<16x32xf32>
    %603 = tpu.matmul %601, %602, %cst_196 {dimension_numbers = #tpu.dot_dimension_numbers<[1], [0], [0], [1], [0, 0, 1, 1], [], []>} : vector<16x64xf32>, vector<64x32xf32>, vector<16x32xf32> -> vector<16x32xf32>
    %c33 = arith.constant 33 : index
    %c0_197 = arith.constant 0 : index
    %604 = vector.load %arg5[%c33, %c0_197] : memref<45x96xf32, #tpu.memory_space<vmem>>, vector<1x32xf32>
    %605 = vector.shape_cast %604 : vector<1x32xf32> to vector<32xf32>
    %606 = vector.shape_cast %605 : vector<32xf32> to vector<1x32xf32>
    %607 = vector.broadcast %606 : vector<1x32xf32> to vector<16x32xf32>
    %608 = arith.addf %603, %607 : vector<16x32xf32>
    %609 = arith.addf %592, %608 : vector<16x32xf32>
    %cst_198 = arith.constant dense<0.000000e+00> : vector<16xf32>
    %610 = vector.multi_reduction <add>, %609, %cst_198 [1] : vector<16x32xf32> to vector<16xf32>
    %611 = vector.shape_cast %610 : vector<16xf32> to vector<16x1xf32>
    %cst_199 = arith.constant 3.200000e+01 : f32
    %612 = vector.broadcast %cst_199 : f32 to vector<16x1xf32>
    %613 = arith.divf %611, %612 : vector<16x1xf32>
    %614 = vector.broadcast %613 : vector<16x1xf32> to vector<16x32xf32>
    %615 = arith.subf %609, %614 : vector<16x32xf32>
    %616 = arith.mulf %615, %615 : vector<16x32xf32>
    %cst_200 = arith.constant dense<0.000000e+00> : vector<16xf32>
    %617 = vector.multi_reduction <add>, %616, %cst_200 [1] : vector<16x32xf32> to vector<16xf32>
    %618 = vector.shape_cast %617 : vector<16xf32> to vector<16x1xf32>
    %cst_201 = arith.constant 3.200000e+01 : f32
    %619 = vector.broadcast %cst_201 : f32 to vector<16x1xf32>
    %620 = arith.divf %618, %619 : vector<16x1xf32>
    %cst_202 = arith.constant 9.99999974E-6 : f32
    %621 = vector.broadcast %cst_202 : f32 to vector<16x1xf32>
    %622 = arith.addf %620, %621 : vector<16x1xf32>
    %623 = math.rsqrt %622 : vector<16x1xf32>
    %624 = vector.broadcast %623 : vector<16x1xf32> to vector<16x32xf32>
    %625 = arith.mulf %615, %624 : vector<16x32xf32>
    %c38 = arith.constant 38 : index
    %c0_203 = arith.constant 0 : index
    %626 = vector.load %arg5[%c38, %c0_203] : memref<45x96xf32, #tpu.memory_space<vmem>>, vector<1x32xf32>
    %627 = vector.shape_cast %626 : vector<1x32xf32> to vector<32xf32>
    %628 = vector.shape_cast %627 : vector<32xf32> to vector<1x32xf32>
    %629 = vector.broadcast %628 : vector<1x32xf32> to vector<16x32xf32>
    %630 = arith.mulf %625, %629 : vector<16x32xf32>
    %c39 = arith.constant 39 : index
    %c0_204 = arith.constant 0 : index
    %631 = vector.load %arg5[%c39, %c0_204] : memref<45x96xf32, #tpu.memory_space<vmem>>, vector<1x32xf32>
    %632 = vector.shape_cast %631 : vector<1x32xf32> to vector<32xf32>
    %633 = vector.shape_cast %632 : vector<32xf32> to vector<1x32xf32>
    %634 = vector.broadcast %633 : vector<1x32xf32> to vector<16x32xf32>
    %635 = arith.addf %630, %634 : vector<16x32xf32>
    %cst_205 = arith.constant dense<0.000000e+00> : vector<16xf32>
    %636 = vector.multi_reduction <add>, %635, %cst_205 [1] : vector<16x32xf32> to vector<16xf32>
    %637 = vector.shape_cast %636 : vector<16xf32> to vector<16x1xf32>
    %cst_206 = arith.constant 3.200000e+01 : f32
    %638 = vector.broadcast %cst_206 : f32 to vector<16x1xf32>
    %639 = arith.divf %637, %638 : vector<16x1xf32>
    %640 = vector.broadcast %639 : vector<16x1xf32> to vector<16x32xf32>
    %641 = arith.subf %635, %640 : vector<16x32xf32>
    %642 = arith.mulf %641, %641 : vector<16x32xf32>
    %cst_207 = arith.constant dense<0.000000e+00> : vector<16xf32>
    %643 = vector.multi_reduction <add>, %642, %cst_207 [1] : vector<16x32xf32> to vector<16xf32>
    %644 = vector.shape_cast %643 : vector<16xf32> to vector<16x1xf32>
    %cst_208 = arith.constant 3.200000e+01 : f32
    %645 = vector.broadcast %cst_208 : f32 to vector<16x1xf32>
    %646 = arith.divf %644, %645 : vector<16x1xf32>
    %cst_209 = arith.constant 9.99999974E-6 : f32
    %647 = vector.broadcast %cst_209 : f32 to vector<16x1xf32>
    %648 = arith.addf %646, %647 : vector<16x1xf32>
    %649 = math.rsqrt %648 : vector<16x1xf32>
    %650 = vector.broadcast %649 : vector<16x1xf32> to vector<16x32xf32>
    %651 = arith.mulf %641, %650 : vector<16x32xf32>
    %c42 = arith.constant 42 : index
    %c0_210 = arith.constant 0 : index
    %652 = vector.load %arg5[%c42, %c0_210] : memref<45x96xf32, #tpu.memory_space<vmem>>, vector<1x32xf32>
    %653 = vector.shape_cast %652 : vector<1x32xf32> to vector<32xf32>
    %654 = vector.shape_cast %653 : vector<32xf32> to vector<1x32xf32>
    %655 = vector.broadcast %654 : vector<1x32xf32> to vector<16x32xf32>
    %656 = arith.mulf %651, %655 : vector<16x32xf32>
    %c43 = arith.constant 43 : index
    %c0_211 = arith.constant 0 : index
    %657 = vector.load %arg5[%c43, %c0_211] : memref<45x96xf32, #tpu.memory_space<vmem>>, vector<1x32xf32>
    %658 = vector.shape_cast %657 : vector<1x32xf32> to vector<32xf32>
    %659 = vector.shape_cast %658 : vector<32xf32> to vector<1x32xf32>
    %660 = vector.broadcast %659 : vector<1x32xf32> to vector<16x32xf32>
    %661 = arith.addf %656, %660 : vector<16x32xf32>
    %c128_212 = arith.constant 128 : index
    %c0_213 = arith.constant 0 : index
    %662 = vector.load %arg3[%c128_212, %c0_213] : memref<160x64xf32, #tpu.memory_space<vmem>>, vector<32x64xf32>
    %cst_214 = arith.constant dense<0.000000e+00> : vector<16x64xf32>
    %663 = tpu.matmul %661, %662, %cst_214 {dimension_numbers = #tpu.dot_dimension_numbers<[1], [0], [0], [1], [0, 0, 1, 1], [], []>} : vector<16x32xf32>, vector<32x64xf32>, vector<16x64xf32> -> vector<16x64xf32>
    %c44 = arith.constant 44 : index
    %c0_215 = arith.constant 0 : index
    %664 = vector.load %arg5[%c44, %c0_215] : memref<45x96xf32, #tpu.memory_space<vmem>>, vector<1x64xf32>
    %665 = vector.shape_cast %664 : vector<1x64xf32> to vector<64xf32>
    %666 = vector.shape_cast %665 : vector<64xf32> to vector<1x64xf32>
    %667 = vector.broadcast %666 : vector<1x64xf32> to vector<16x64xf32>
    %668 = arith.addf %663, %667 : vector<16x64xf32>
    %cst_216 = arith.constant dense<0xFF800000> : vector<16xf32>
    %669 = vector.multi_reduction <maximumf>, %668, %cst_216 [1] : vector<16x64xf32> to vector<16xf32>
    %670 = vector.shape_cast %669 : vector<16xf32> to vector<16x1xf32>
    %671 = vector.broadcast %670 : vector<16x1xf32> to vector<16x64xf32>
    %672 = arith.subf %668, %671 : vector<16x64xf32>
    %673 = math.exp %672 : vector<16x64xf32>
    %cst_217 = arith.constant dense<0.000000e+00> : vector<16xf32>
    %674 = vector.multi_reduction <add>, %673, %cst_217 [1] : vector<16x64xf32> to vector<16xf32>
    %675 = vector.shape_cast %674 : vector<16xf32> to vector<16x1xf32>
    %676 = math.log %675 : vector<16x1xf32>
    %677 = arith.addf %676, %670 : vector<16x1xf32>
    %678 = vector.broadcast %677 : vector<16x1xf32> to vector<16x64xf32>
    %679 = arith.subf %668, %678 : vector<16x64xf32>
    %c0_218 = arith.constant 0 : index
    %c0_219 = arith.constant 0 : index
    %680 = vector.load %arg6[%c0_218, %c0_219] : memref<16x64xf32, #tpu.memory_space<vmem>>, vector<16x64xf32>
    tpu.vector_store %arg6[%c0_218, %c0_219], %679 {strides = array<i32>} : memref<16x64xf32, #tpu.memory_space<vmem>>, vector<16x64xf32>,
    return
  }
}

</mosaic_0001>

<llo_original>
// kernel: tile.13
$region0: #{tile.13}
  #allocation0 [shape = 's32[1]{0}', space=sflag, size = 0x4, scoped, tag = 'scoped memory for tile.13']
  %s0 = inlined_call_operand.vmem [shape: f32[16], index: 0, kind: input, shape index: {}]
  %s1 = inlined_call_operand.vmem [shape: f32[4,16], index: 1, kind: output, shape index: {}]
  // Predicated region
  $region2: #{tile.13} parent=0 // pred_check
    _
  $region3: #{tile.13} parent=0 // pred_check_branch
    %3 = sbr.rel (0) target = $region5
  $region4: #{tile.13} parent=0 // pred_region
    _
  $region5: #{tile.13} parent=0 // pred_fallthru
    _
  %v4 = vld [vmem:[%s0] ss:$0 sm:$0xff]
  %5 = vst [vmem:[%s1] sm:$0xf] %v4

// kernel: tile.18
$region0: #{tile.18}
  %s0 = inlined_call_operand.vmem [shape: f32[4,16], index: 0, kind: input, shape index: {}]
  %s1 = inlined_call_operand.vmem [shape: f32[1,64], index: 1, kind: output, shape index: {}]
  $region1: #{tile.18} parent=0
    #allocation0 [shape = 'u8[4096]{0}', space=vmem, size = 0x1000, scoped, tag = 'scoped mem for output reshape']
    #allocation1 [shape = 'u8[4096]{0}', space=vmem, size = 0x1000, scoped, tag = 'scoped mem for input reshape']
    %s3 = ssub.s32 16, 1
    %v4 = vld [vmem:[%s0] sm:%s3]
    %5 = vst [vmem:[#allocation1] sm:%s3] %v4
    %v6 = vld [vmem:[#allocation1] sm:$0x1]
    %vm7 = vcmask 130048
    %8 = vst.msk [vmem:[#allocation0] sm:$0x1] %vm7, %v6
    %s9 = scalar_lea.vmem [#allocation1], 3
    %v10 = vld [vmem:[%s9] sm:$0x1]
    %11 = vrot.lane.b32.xlu0 %v10, 48
    %v12 = vpop.permute.xlu0 %11
    %vm13 = vcmask 523648
    %14 = vst.msk [vmem:[#allocation0] sm:$0x1] %vm13, %v12
    %s15 = scalar_lea.vmem [#allocation1], 2
    %v16 = vld [vmem:[%s15] sm:$0x1]
    %17 = vrot.lane.b32.xlu0 %v16, 32
    %v18 = vpop.permute.xlu0 %17
    %vm19 = vcmask 392448
    %20 = vst.msk [vmem:[#allocation0] sm:$0x1] %vm19, %v18
    %s21 = scalar_lea.vmem [#allocation1], 1
    %v22 = vld [vmem:[%s21] sm:$0x1]
    %23 = vrot.lane.b32.xlu0 %v22, 16
    %v24 = vpop.permute.xlu0 %23
    %vm25 = vcmask 261248
    %26 = vst.msk [vmem:[#allocation0] sm:$0x1] %vm25, %v24
    %s28 = ssub.s32 2, 1
    %v29 = vld [vmem:[#allocation0] sm:%s28]
    %s31 = ssub.s32 2, 1
    %32 = vst [vmem:[%s1] sm:%s31] %v29

// kernel: frt_forward.1
$region0: #{frt_forward.1}
  #allocation0 [shape = 'u32[]', space=smem, size = 0x4, offset = 0x4, fixed_abs, tag = 'smem constant byte address 0x4 - core index']
  #allocation1 [shape = 'u32[72,128]{1,0:T(1,128)}', space=vmem, size = 0x9000, scoped, tag = 'internal scratch']
  %s0 = inlined_call_operand.vmem [shape: s32[32,1], index: 0, kind: input, shape index: {}]
  %s1 = inlined_call_operand.vmem [shape: f32[2,64], index: 1, kind: input, shape index: {}]
  %s2 = inlined_call_operand.vmem [shape: f32[192,96], index: 2, kind: input, shape index: {}]
  %s3 = inlined_call_operand.vmem [shape: f32[160,64], index: 3, kind: input, shape index: {}]
  %s4 = inlined_call_operand.vmem [shape: f32[544,32], index: 4, kind: input, shape index: {}]
  %s5 = inlined_call_operand.vmem [shape: f32[45,96], index: 5, kind: input, shape index: {}]
  %s6 = inlined_call_operand.hbm [shape: f32[16,64], index: 6, kind: output, shape index: {}]
  %s7 = sld [smem:[#allocation0]]
  $region34: #{frt_forward.1} parent=0
    _
  %s9 = ssub.s32 1, %s7
  %s10 = scalar_select 0, %s9, %s7
  $region1: #{frt_forward.1} parent=0
    #allocation2 [shape = 'u8[8192]{0}', space=vmem, size = 0x2000, scoped, tag = 'output window, operand 0, single buffered']
    #allocation3 [shape = 's32[1]{0}', space=sflag, size = 0x4, scoped, tag = 'scoped memory for frt_forward.1']
    %11 = vsyncpa [#allocation3], 0
    // Predicated region
    $region2: #{frt_forward.1} parent=1 // pred_check
      _
    $region3: #{frt_forward.1} parent=1 // pred_check_branch
      %13 = sbr.rel (0) target = $region5
    $region4: #{frt_forward.1} parent=1 // pred_region
      _
    $region5: #{frt_forward.1} parent=1 // pred_fallthru
      _
    // Predicated region
    $region6: #{frt_forward.1} parent=1 // pred_check
      _
    $region7: #{frt_forward.1} parent=1 // pred_check_branch
      %15 = sbr.rel (0) target = $region9
    $region8: #{frt_forward.1} parent=1 // pred_region
      _
    $region9: #{frt_forward.1} parent=1 // pred_fallthru
      _
    // Predicated region
    $region10: #{frt_forward.1} parent=1 // pred_check
      _
    $region11: #{frt_forward.1} parent=1 // pred_check_branch
      %17 = sbr.rel (0) target = $region13
    $region12: #{frt_forward.1} parent=1 // pred_region
      _
    $region13: #{frt_forward.1} parent=1 // pred_fallthru
      _
    // Predicated region
    $region14: #{frt_forward.1} parent=1 // pred_check
      _
    $region15: #{frt_forward.1} parent=1 // pred_check_branch
      %19 = sbr.rel (0) target = $region17
    $region16: #{frt_forward.1} parent=1 // pred_region
      _
    $region17: #{frt_forward.1} parent=1 // pred_fallthru
      _
    // Predicated region
    $region18: #{frt_forward.1} parent=1 // pred_check
      _
    $region19: #{frt_forward.1} parent=1 // pred_check_branch
      %21 = sbr.rel (0) target = $region21
    $region20: #{frt_forward.1} parent=1 // pred_region
      _
    $region21: #{frt_forward.1} parent=1 // pred_fallthru
      _
    // Predicated region
    $region22: #{frt_forward.1} parent=1 // pred_check
      _
    $region23: #{frt_forward.1} parent=1 // pred_check_branch
      %23 = sbr.rel (0) target = $region25
    $region24: #{frt_forward.1} parent=1 // pred_region
      _
    $region25: #{frt_forward.1} parent=1 // pred_fallthru
      _
    %v24 = vlaneseq
    %v25 = vshrl.u32 %v24, 7
    %v26 = vadd.s32 %v25, 8
    %v27 = vadd.s32 %v25, 16
    %v28 = vadd.s32 %v25, 24
    %v29 = vadd.s32 %v25, 32
    %v30 = vadd.s32 %v25, 40
    %v31 = vadd.s32 %v25, 48
    %v32 = vadd.s32 %v25, 56
    %v33 = vlaneseq
    %v34 = vand.u32 %v33, 127
    %v35 = vshra.s32 %v25, 4
    %v36 = vshra.s32 %v26, 4
    %v37 = vshra.s32 %v27, 4
    %v38 = vshra.s32 %v28, 4
    %v39 = vshra.s32 %v29, 4
    %v40 = vshra.s32 %v30, 4
    %v41 = vshra.s32 %v31, 4
    %v42 = vshra.s32 %v32, 4
    %v43 = vshra.s32 %v34, 3
    %vm44 = vcmp.eq.s32.totalorder %v35, %v43
    %vm45 = vcmp.eq.s32.totalorder %v36, %v43
    %vm46 = vcmp.eq.s32.totalorder %v37, %v43
    %vm47 = vcmp.eq.s32.totalorder %v38, %v43
    %vm48 = vcmp.eq.s32.totalorder %v39, %v43
    %vm49 = vcmp.eq.s32.totalorder %v40, %v43
    %vm50 = vcmp.eq.s32.totalorder %v41, %v43
    %vm51 = vcmp.eq.s32.totalorder %v42, %v43
    %v52 = vsel %vm44, 1, 0
    %v53 = vsel %vm45, 1, 0
    %v54 = vsel %vm46, 1, 0
    %v55 = vsel %vm47, 1, 0
    %v56 = vsel %vm48, 1, 0
    %v57 = vsel %vm49, 1, 0
    %v58 = vsel %vm50, 1, 0
    %v59 = vsel %vm51, 1, 0
    %v60 = vcvt.s32.f32 %v52
    %v61 = vcvt.s32.f32 %v53
    %v62 = vcvt.s32.f32 %v54
    %v63 = vcvt.s32.f32 %v55
    %v64 = vcvt.s32.f32 %v56
    %v65 = vcvt.s32.f32 %v57
    %v66 = vcvt.s32.f32 %v58
    %v67 = vcvt.s32.f32 %v59
    %vm68 = vcmp.eq.s32.totalorder %v35, %v34
    %vm69 = vcmp.eq.s32.totalorder %v36, %v34
    %vm70 = vcmp.eq.s32.totalorder %v37, %v34
    %vm71 = vcmp.eq.s32.totalorder %v38, %v34
    %vm72 = vcmp.eq.s32.totalorder %v39, %v34
    %vm73 = vcmp.eq.s32.totalorder %v40, %v34
    %vm74 = vcmp.eq.s32.totalorder %v41, %v34
    %vm75 = vcmp.eq.s32.totalorder %v42, %v34
    %v76 = vsel %vm68, 1, 0
    %v77 = vsel %vm69, 1, 0
    %v78 = vsel %vm70, 1, 0
    %v79 = vsel %vm71, 1, 0
    %v80 = vsel %vm72, 1, 0
    %v81 = vsel %vm73, 1, 0
    %v82 = vsel %vm74, 1, 0
    %v83 = vsel %vm75, 1, 0
    %v84 = vcvt.s32.f32 %v76
    %v85 = vcvt.s32.f32 %v77
    %v86 = vcvt.s32.f32 %v78
    %v87 = vcvt.s32.f32 %v79
    %v88 = vcvt.s32.f32 %v80
    %v89 = vcvt.s32.f32 %v81
    %v90 = vcvt.s32.f32 %v82
    %v91 = vcvt.s32.f32 %v83
    %vm92 = vcmp.eq.s32.totalorder %v25, %v43
    %v93 = vsel %vm92, 1, 0
    %v94 = vcvt.s32.f32 %v93
    %v95 = vand.u32 %v34, 15
    %v96 = vand.u32 %v25, 1
    %v97 = vand.u32 %v26, 1
    %v98 = vand.u32 %v95, 1
    %vm99 = vcmp.eq.s32.totalorder %v96, %v98
    %vm100 = vcmp.eq.s32.totalorder %v97, %v98
    %v101 = vshra.s32 %v95, 1
    %v102 = vshra.s32 %v25, 1
    %v103 = vshra.s32 %v26, 1
    %vm104 = vcmp.le.s32.totalorder %v101, %v102
    %vm105 = vcmp.le.s32.totalorder %v101, %v103
    %v106 = vsel %vm99, 0.0, -1e+09
    %v107 = vsel %vm100, 0.0, -1e+09
    %v108 = vld [vmem:[%s1] sm:$0x1]
    %v109 = vperm.slane %v108, 0
    %v110 = vadd.f32 %v106, %v109
    %v111 = vadd.f32 %v107, %v109
    %vm112 = vmand %vm99, %vm104
    %vm113 = vmand %vm100, %vm105
    %v114 = vsel %vm112, 0.0, -1e+09
    %v115 = vsel %vm113, 0.0, -1e+09
    %v116 = vld [vmem:[%s1 + $0x1] sm:$0x1]
    %v117 = vperm.slane %v116, 0
    %v118 = vadd.f32 %v114, %v117
    %v119 = vadd.f32 %v115, %v117
    %v120 = vld [vmem:[%s0] sm:$0xff]
    %v121 = vld [vmem:[%s0 + $0x8] sm:$0xff]
    %v122 = vld [vmem:[%s0 + $0x10] sm:$0xff]
    %v123 = vld [vmem:[%s0 + $0x18] sm:$0xff]
    %124 = vset.pattern.permute.xlu0 0
    %125 = vperm.xlu0 %124, %v120
    %v126 = vpop.permute.xlu0 %125
    %127 = vset.pattern.permute.xlu0 0
    %128 = vperm.xlu0 %127, %v121
    %v129 = vpop.permute.xlu0 %128
    %130 = vset.pattern.permute.xlu0 0
    %131 = vperm.xlu0 %130, %v122
    %v132 = vpop.permute.xlu0 %131
    %133 = vset.pattern.permute.xlu0 0
    %134 = vperm.xlu0 %133, %v123
    %v135 = vpop.permute.xlu0 %134
    %vm136 = vcmp.eq.s32.totalorder %v126, %v34
    %vm137 = vcmp.eq.s32.totalorder %v129, %v34
    %vm138 = vcmp.eq.s32.totalorder %v132, %v34
    %vm139 = vcmp.eq.s32.totalorder %v135, %v34
    %v140 = vsel %vm136, 1, 0
    %v141 = vsel %vm137, 1, 0
    %v142 = vsel %vm138, 1, 0
    %v143 = vsel %vm139, 1, 0
    %v144 = vcvt.s32.f32 %v140
    %v145 = vcvt.s32.f32 %v141
    %v146 = vcvt.s32.f32 %v142
    %v147 = vcvt.s32.f32 %v143
    %v148 = vld [vmem:[%s4] sm:$0xff]
    %v149 = vld [vmem:[%s4 + $0x8] sm:$0xff]
    %v150 = vld [vmem:[%s4 + $0x10] sm:$0xff]
    %v151 = vld [vmem:[%s4 + $0x18] sm:$0xff]
    %v152 = vld [vmem:[%s4 + $0x20] sm:$0xff]
    %v153 = vld [vmem:[%s4 + $0x28] sm:$0xff]
    %v154 = vld [vmem:[%s4 + $0x30] sm:$0xff]
    %v155 = vld [vmem:[%s4 + $0x38] sm:$0xff]
    %v156 = vld [vmem:[%s4 + $0x200] sm:$0xff]
    %v157 = vld [vmem:[%s4 + $0x208] sm:$0xff]
    %v158 = vld [vmem:[%s4 + $0x210] sm:$0xff]
    %v159 = vld [vmem:[%s4 + $0x218] sm:$0xff]
    %vm160 = vcmask 523264
    %v162 = vsel %vm160, %v144, 0
    %v165 = vsel %vm160, %v145, 0
    %v168 = vsel %vm160, %v146, 0
    %v171 = vsel %vm160, %v147, 0
    %173 = vmatpush.msra.mxu0 0.0
    %174 = vmatpush.msra.mxu0 0.0
    %175 = vmatpush.msra.mxu0 0.0
    %176 = vmatpush.msra.mxu0 0.0
    %177 = vmatpush.msra.mxu0 0.0
    %178 = vmatpush.msra.mxu0 0.0
    %179 = vmatpush.msra.mxu0 0.0
    %180 = vmatpush.msra.mxu0 0.0
    %181 = vmatpush.msra.mxu0 %v155
    %182 = vmatpush.msra.mxu0 %v154
    %183 = vmatpush.msra.mxu0 %v153
    %184 = vmatpush.msra.mxu0 %v152
    %185 = vmatpush.msra.mxu0 %v151
    %186 = vmatpush.msra.mxu0 %v150
    %187 = vmatpush.msra.mxu0 %v149
    %188 = vmatpush.msra.mxu0 %v148
    %189 = vmatmul.f32.gmra.mxu0 %v162
    %v190 = vpop.f32.mrf.mxu0
    %v191 = vadd.f32 %v156, %v190
    %192 = vmatmul.f32.gmra.mxu0 %v165
    %v193 = vpop.f32.mrf.mxu0
    %v194 = vadd.f32 %v157, %v193
    %195 = vmatmul.f32.gmra.mxu0 %v168
    %v196 = vpop.f32.mrf.mxu0
    %v197 = vadd.f32 %v158, %v196
    %198 = vmatmul.f32.gmra.mxu0 %v171
    %v199 = vpop.f32.mrf.mxu0
    %v200 = vadd.f32 %v159, %v199
    %201 = vdwg.mxu0
    %v202 = vld [vmem:[%s2] sm:$0xff]
    %v203 = vld [vmem:[%s2 + $0x8] sm:$0xff]
    %v204 = vld [vmem:[%s2 + $0x10] sm:$0xff]
    %v205 = vld [vmem:[%s2 + $0x18] sm:$0xff]
    %v206 = vld [vmem:[%s5] sm:$0x1]
    %v207 = vperm.slane %v206, 0
    %vm208 = vcmask 261120
    %v210 = vsel %vm208, %v191, 0
    %v213 = vsel %vm208, %v194, 0
    %215 = vmatpush.msra.mxu0 0.0
    %216 = vmatpush.msra.mxu0 0.0
    %217 = vmatpush.msra.mxu0 0.0
    %218 = vmatpush.msra.mxu0 0.0
    %219 = vmatpush.msra.mxu0 0.0
    %220 = vmatpush.msra.mxu0 0.0
    %221 = vmatpush.msra.mxu0 0.0
    %222 = vmatpush.msra.mxu0 0.0
    %223 = vmatpush.msra.mxu0 0.0
    %224 = vmatpush.msra.mxu0 0.0
    %225 = vmatpush.msra.mxu0 0.0
    %226 = vmatpush.msra.mxu0 0.0
    %227 = vmatpush.msra.mxu0 %v205
    %228 = vmatpush.msra.mxu0 %v204
    %229 = vmatpush.msra.mxu0 %v203
    %230 = vmatpush.msra.mxu0 %v202
    %231 = vmatmul.f32.gmra.mxu0 %v210
    %v232 = vpop.f32.mrf.mxu0
    %v233 = vadd.f32 %v207, %v232
    %234 = vmatmul.f32.gmra.mxu0 %v213
    %v235 = vpop.f32.mrf.mxu0
    %v236 = vadd.f32 %v207, %v235
    %237 = vdwg.mxu0
    %246 = vrot.lane.b32.xlu0 %v60, 32
    %v247 = vpop.permute.xlu0 %246
    %248 = vrot.lane.b32.xlu0 %v61, 32
    %v249 = vpop.permute.xlu0 %248
    %250 = vrot.lane.b32.xlu0 %v62, 32
    %v251 = vpop.permute.xlu0 %250
    %252 = vrot.lane.b32.xlu0 %v63, 32
    %v253 = vpop.permute.xlu0 %252
    %254 = vrot.lane.b32.xlu0 %v64, 32
    %v255 = vpop.permute.xlu0 %254
    %256 = vrot.lane.b32.xlu0 %v65, 32
    %v257 = vpop.permute.xlu0 %256
    %258 = vrot.lane.b32.xlu0 %v66, 32
    %v259 = vpop.permute.xlu0 %258
    %260 = vrot.lane.b32.xlu0 %v67, 32
    %v261 = vpop.permute.xlu0 %260
    %v270 = vmul.f32 %v233, %v247
    %v271 = vmul.f32 %v236, %v249
    %v272 = vmul.f32 %v233, %v251
    %v273 = vmul.f32 %v236, %v253
    %v274 = vmul.f32 %v233, %v255
    %v275 = vmul.f32 %v236, %v257
    %v276 = vmul.f32 %v233, %v259
    %v277 = vmul.f32 %v236, %v261
    %278 = vrot.lane.b32.xlu0 %v60, 64
    %v279 = vpop.permute.xlu0 %278
    %280 = vrot.lane.b32.xlu0 %v61, 64
    %v281 = vpop.permute.xlu0 %280
    %282 = vrot.lane.b32.xlu0 %v62, 64
    %v283 = vpop.permute.xlu0 %282
    %284 = vrot.lane.b32.xlu0 %v63, 64
    %v285 = vpop.permute.xlu0 %284
    %286 = vrot.lane.b32.xlu0 %v64, 64
    %v287 = vpop.permute.xlu0 %286
    %288 = vrot.lane.b32.xlu0 %v65, 64
    %v289 = vpop.permute.xlu0 %288
    %290 = vrot.lane.b32.xlu0 %v66, 64
    %v291 = vpop.permute.xlu0 %290
    %292 = vrot.lane.b32.xlu0 %v67, 64
    %v293 = vpop.permute.xlu0 %292
    %v302 = vmul.f32 %v233, %v279
    %v303 = vmul.f32 %v236, %v281
    %v304 = vmul.f32 %v233, %v283
    %v305 = vmul.f32 %v236, %v285
    %v306 = vmul.f32 %v233, %v287
    %v307 = vmul.f32 %v236, %v289
    %v308 = vmul.f32 %v233, %v291
    %v309 = vmul.f32 %v236, %v293
    %318 = vrot.lane.b32.xlu0 %v270, 96
    %v319 = vpop.permute.xlu0 %318
    %320 = vrot.lane.b32.xlu0 %v271, 96
    %v321 = vpop.permute.xlu0 %320
    %322 = vrot.lane.b32.xlu0 %v272, 96
    %v323 = vpop.permute.xlu0 %322
    %324 = vrot.lane.b32.xlu0 %v273, 96
    %v325 = vpop.permute.xlu0 %324
    %326 = vrot.lane.b32.xlu0 %v274, 96
    %v327 = vpop.permute.xlu0 %326
    %328 = vrot.lane.b32.xlu0 %v275, 96
    %v329 = vpop.permute.xlu0 %328
    %330 = vrot.lane.b32.xlu0 %v276, 96
    %v331 = vpop.permute.xlu0 %330
    %332 = vrot.lane.b32.xlu0 %v277, 96
    %v333 = vpop.permute.xlu0 %332
    %v335 = vsel %vm208, %v233, 0
    %v338 = vsel %vm208, %v236, 0
    %v340 = vsel %vm208, %v319, 0
    %v342 = vsel %vm208, %v321, 0
    %v344 = vsel %vm208, %v323, 0
    %v346 = vsel %vm208, %v325, 0
    %v348 = vsel %vm208, %v327, 0
    %v350 = vsel %vm208, %v329, 0
    %v352 = vsel %vm208, %v331, 0
    %v354 = vsel %vm208, %v333, 0
    %356 = vmatpush.xpose.msra.mxu0 0.0
    %357 = vmatpush.xpose.msra.mxu0 0.0
    %358 = vmatpush.xpose.msra.mxu0 0.0
    %359 = vmatpush.xpose.msra.mxu0 0.0
    %360 = vmatpush.xpose.msra.mxu0 0.0
    %361 = vmatpush.xpose.msra.mxu0 0.0
    %362 = vmatpush.xpose.msra.mxu0 0.0
    %363 = vmatpush.xpose.msra.mxu0 0.0
    %364 = vmatpush.xpose.msra.mxu0 %v354
    %365 = vmatpush.xpose.msra.mxu0 %v352
    %366 = vmatpush.xpose.msra.mxu0 %v350
    %367 = vmatpush.xpose.msra.mxu0 %v348
    %368 = vmatpush.xpose.msra.mxu0 %v346
    %369 = vmatpush.xpose.msra.mxu0 %v344
    %370 = vmatpush.xpose.msra.mxu0 %v342
    %371 = vmatpush.xpose.msra.mxu0 %v340
    %372 = vmatmul.f32.gmra.mxu0 %v335
    %v373 = vpop.f32.mrf.mxu0
    %v374 = vadd.f32 %v110, %v373
    %375 = vmatmul.f32.gmra.mxu0 %v338
    %v376 = vpop.f32.mrf.mxu0
    %v377 = vadd.f32 %v111, %v376
    %378 = vdwg.mxu0
    %v379 = vsel %vm160, %v374, -inf
    %380 = vmax.xlane.f32.xlu0 %v379
    %v381 = vpop.xlane.xlu0 %380
    %v382 = vsel %vm160, %v377, -inf
    %383 = vmax.xlane.f32.xlu0 %v382
    %v384 = vpop.xlane.xlu0 %383
    %v385 = vsub.f32 %v374, %v381
    %v386 = vsub.f32 %v377, %v384
    %v387 = vmul.f32 %v385, 1.442695
    %v388 = vpow.pop %v387
    %v389 = vmul.f32 %v386, 1.442695
    %v390 = vpow.pop %v389
    %v392 = vsel %vm160, %v388, 0
    %v395 = vsel %vm160, %v390, 0
    %397 = vmatpush.msra.mxu0 0.0
    %398 = vmatpush.msra.mxu0 0.0
    %399 = vmatpush.msra.mxu0 0.0
    %400 = vmatpush.msra.mxu0 0.0
    %401 = vmatpush.msra.mxu0 0.0
    %402 = vmatpush.msra.mxu0 0.0
    %403 = vmatpush.msra.mxu0 0.0
    %404 = vmatpush.msra.mxu0 0.0
    %405 = vmatpush.msra.mxu0 %v91
    %406 = vmatpush.msra.mxu0 %v90
    %407 = vmatpush.msra.mxu0 %v89
    %408 = vmatpush.msra.mxu0 %v88
    %409 = vmatpush.msra.mxu0 %v87
    %410 = vmatpush.msra.mxu0 %v86
    %411 = vmatpush.msra.mxu0 %v85
    %412 = vmatpush.msra.mxu0 %v84
    %413 = vmatmul.f32.gmra.mxu0 %v392
    %v414 = vpop.f32.mrf.mxu0
    %v415 = vadd.f32 0.0, %v414
    %416 = vmatmul.f32.gmra.mxu0 %v395
    %v417 = vpop.f32.mrf.mxu0
    %v418 = vadd.f32 0.0, %v417
    %419 = vdwg.mxu0
    %428 = vrot.lane.b32.xlu0 %v302, 64
    %v429 = vpop.permute.xlu0 %428
    %430 = vrot.lane.b32.xlu0 %v303, 64
    %v431 = vpop.permute.xlu0 %430
    %432 = vrot.lane.b32.xlu0 %v304, 64
    %v433 = vpop.permute.xlu0 %432
    %434 = vrot.lane.b32.xlu0 %v305, 64
    %v435 = vpop.permute.xlu0 %434
    %436 = vrot.lane.b32.xlu0 %v306, 64
    %v437 = vpop.permute.xlu0 %436
    %438 = vrot.lane.b32.xlu0 %v307, 64
    %v439 = vpop.permute.xlu0 %438
    %440 = vrot.lane.b32.xlu0 %v308, 64
    %v441 = vpop.permute.xlu0 %440
    %442 = vrot.lane.b32.xlu0 %v309, 64
    %v443 = vpop.permute.xlu0 %442
    %452 = vmatpush.msra.mxu0 0.0
    %453 = vmatpush.msra.mxu0 0.0
    %454 = vmatpush.msra.mxu0 0.0
    %455 = vmatpush.msra.mxu0 0.0
    %456 = vmatpush.msra.mxu0 0.0
    %457 = vmatpush.msra.mxu0 0.0
    %458 = vmatpush.msra.mxu0 0.0
    %459 = vmatpush.msra.mxu0 0.0
    %460 = vmatpush.msra.mxu0 %v443
    %461 = vmatpush.msra.mxu0 %v441
    %462 = vmatpush.msra.mxu0 %v439
    %463 = vmatpush.msra.mxu0 %v437
    %464 = vmatpush.msra.mxu0 %v435
    %465 = vmatpush.msra.mxu0 %v433
    %466 = vmatpush.msra.mxu0 %v431
    %467 = vmatpush.msra.mxu0 %v429
    %468 = vmatmul.f32.gmra.mxu0 %v392
    %v469 = vpop.f32.mrf.mxu0
    %v470 = vadd.f32 0.0, %v469
    %471 = vmatmul.f32.gmra.mxu0 %v395
    %v472 = vpop.f32.mrf.mxu0
    %v473 = vadd.f32 0.0, %v472
    %474 = vdwg.mxu0
    %vm475 = vcmask 31744
    %v477 = vsel %vm475, %v415, 0
    %v480 = vsel %vm475, %v418, 0
    %vm482 = vcmask 1043456
    %v484 = vsel %vm482, %v94, 0
    %486 = vmatpush.msra.mxu0 0.0
    %487 = vmatpush.msra.mxu0 0.0
    %488 = vmatpush.msra.mxu0 0.0
    %489 = vmatpush.msra.mxu0 0.0
    %490 = vmatpush.msra.mxu0 0.0
    %491 = vmatpush.msra.mxu0 0.0
    %492 = vmatpush.msra.mxu0 0.0
    %493 = vmatpush.msra.mxu0 0.0
    %494 = vmatpush.msra.mxu0 0.0
    %495 = vmatpush.msra.mxu0 0.0
    %496 = vmatpush.msra.mxu0 0.0
    %497 = vmatpush.msra.mxu0 0.0
    %498 = vmatpush.msra.mxu0 0.0
    %499 = vmatpush.msra.mxu0 0.0
    %500 = vmatpush.msra.mxu0 0.0
    %501 = vmatpush.msra.mxu0 %v484
    %502 = vmatmul.f32.gmra.mxu0 %v477
    %v503 = vpop.f32.mrf.mxu0
    %v504 = vadd.f32 0.0, %v503
    %505 = vmatmul.f32.gmra.mxu0 %v480
    %v506 = vpop.f32.mrf.mxu0
    %v507 = vadd.f32 0.0, %v506
    %508 = vdwg.mxu0
    %v509 = vrcp.pop %v504
    %v510 = vrcp.pop %v507
    %v511 = vmul.f32 %v470, %v509
    %v512 = vmul.f32 %v473, %v510
    %v513 = vld [vmem:[%s4 + $0x40] sm:$0xff]
    %v514 = vld [vmem:[%s4 + $0x48] sm:$0xff]
    %v515 = vld [vmem:[%s4 + $0x50] sm:$0xff]
    %v516 = vld [vmem:[%s4 + $0x58] sm:$0xff]
    %v517 = vld [vmem:[%s5 + $0x1] sm:$0x1]
    %v518 = vperm.slane %v517, 0
    %v520 = vsel %vm208, %v511, 0
    %v523 = vsel %vm208, %v512, 0
    %525 = vmatpush.msra.mxu0 0.0
    %526 = vmatpush.msra.mxu0 0.0
    %527 = vmatpush.msra.mxu0 0.0
    %528 = vmatpush.msra.mxu0 0.0
    %529 = vmatpush.msra.mxu0 0.0
    %530 = vmatpush.msra.mxu0 0.0
    %531 = vmatpush.msra.mxu0 0.0
    %532 = vmatpush.msra.mxu0 0.0
    %533 = vmatpush.msra.mxu0 0.0
    %534 = vmatpush.msra.mxu0 0.0
    %535 = vmatpush.msra.mxu0 0.0
    %536 = vmatpush.msra.mxu0 0.0
    %537 = vmatpush.msra.mxu0 %v516
    %538 = vmatpush.msra.mxu0 %v515
    %539 = vmatpush.msra.mxu0 %v514
    %540 = vmatpush.msra.mxu0 %v513
    %541 = vmatmul.f32.gmra.mxu0 %v520
    %v542 = vpop.f32.mrf.mxu0
    %v543 = vadd.f32 %v518, %v542
    %544 = vmatmul.f32.gmra.mxu0 %v523
    %v545 = vpop.f32.mrf.mxu0
    %v546 = vadd.f32 %v518, %v545
    %547 = vdwg.mxu0
    %v548 = vadd.f32 %v191, %v543
    %v549 = vadd.f32 %v194, %v546
    %v550 = vsel %vm208, %v548, 0.0
    %551 = vadd.xlane.f32.xlu0 %v550
    %v552 = vpop.xlane.xlu0 %551
    %v553 = vsel %vm208, %v549, 0.0
    %554 = vadd.xlane.f32.xlu0 %v553
    %v555 = vpop.xlane.xlu0 %554
    %v556 = vrcp.pop 32.0
    %v557 = vmul.f32 32.0, %v556
    %v558 = vsub.f32 1.0, %v557
    %v559 = vmul.f32 %v556, %v558
    %v560 = vadd.f32 %v556, %v559
    %vm561 = vweird.f32 %v556
    %v562 = vsel %vm561, %v556, %v560
    %v563 = vmul.f32 %v552, %v562
    %v564 = vmul.f32 %v555, %v562
    %v565 = vsub.f32 %v548, %v563
    %v566 = vsub.f32 %v549, %v564
    %v567 = vmul.f32 %v565, %v565
    %v568 = vmul.f32 %v566, %v566
    %v569 = vsel %vm208, %v567, 0.0
    %570 = vadd.xlane.f32.xlu0 %v569
    %v571 = vpop.xlane.xlu0 %570
    %v572 = vsel %vm208, %v568, 0.0
    %573 = vadd.xlane.f32.xlu0 %v572
    %v574 = vpop.xlane.xlu0 %573
    %v575 = vmul.f32 %v571, %v562
    %v576 = vmul.f32 %v574, %v562
    %v577 = vadd.f32 %v575, 1e-05
    %v578 = vadd.f32 %v576, 1e-05
    %v579 = vrsqrt.pop %v577
    %v580 = vmul.f32 %v579, %v577
    %v581 = vmul.f32 %v580, %v579
    %v582 = vmul.f32 0.5, %v581
    %v583 = vsub.f32 1.5, %v582
    %v584 = vmul.f32 %v579, %v583
    %vm585 = vweird.f32 %v577
    %vm586 = vweird.f32 %v579
    %vm587 = vmor %vm585, %vm586
    %v588 = vsel %vm587, %v579, %v584
    %v589 = vrsqrt.pop %v578
    %v590 = vmul.f32 %v589, %v578
    %v591 = vmul.f32 %v590, %v589
    %v592 = vmul.f32 0.5, %v591
    %v593 = vsub.f32 1.5, %v592
    %v594 = vmul.f32 %v589, %v593
    %vm595 = vweird.f32 %v578
    %vm596 = vweird.f32 %v589
    %vm597 = vmor %vm595, %vm596
    %v598 = vsel %vm597, %v589, %v594
    %v599 = vmul.f32 %v565, %v588
    %v600 = vmul.f32 %v566, %v598
    %v601 = vld [vmem:[%s5 + $0x4] sm:$0x1]
    %v602 = vperm.slane %v601, 0
    %v603 = vmul.f32 %v599, %v602
    %v604 = vmul.f32 %v600, %v602
    %v605 = vld [vmem:[%s5 + $0x5] sm:$0x1]
    %v606 = vperm.slane %v605, 0
    %v607 = vadd.f32 %v603, %v606
    %v608 = vadd.f32 %v604, %v606
    %v609 = vld [vmem:[%s3] sm:$0xff]
    %v610 = vld [vmem:[%s3 + $0x8] sm:$0xff]
    %v611 = vld [vmem:[%s3 + $0x10] sm:$0xff]
    %v612 = vld [vmem:[%s3 + $0x18] sm:$0xff]
    %v613 = vld [vmem:[%s5 + $0x2] sm:$0x1]
    %v614 = vperm.slane %v613, 0
    %v616 = vsel %vm208, %v607, 0
    %v619 = vsel %vm208, %v608, 0
    %621 = vmatpush.msra.mxu0 0.0
    %622 = vmatpush.msra.mxu0 0.0
    %623 = vmatpush.msra.mxu0 0.0
    %624 = vmatpush.msra.mxu0 0.0
    %625 = vmatpush.msra.mxu0 0.0
    %626 = vmatpush.msra.mxu0 0.0
    %627 = vmatpush.msra.mxu0 0.0
    %628 = vmatpush.msra.mxu0 0.0
    %629 = vmatpush.msra.mxu0 0.0
    %630 = vmatpush.msra.mxu0 0.0
    %631 = vmatpush.msra.mxu0 0.0
    %632 = vmatpush.msra.mxu0 0.0
    %633 = vmatpush.msra.mxu0 %v612
    %634 = vmatpush.msra.mxu0 %v611
    %635 = vmatpush.msra.mxu0 %v610
    %636 = vmatpush.msra.mxu0 %v609
    %637 = vmatmul.f32.gmra.mxu0 %v616
    %v638 = vpop.f32.mrf.mxu0
    %v639 = vadd.f32 %v614, %v638
    %640 = vmatmul.f32.gmra.mxu0 %v619
    %v641 = vpop.f32.mrf.mxu0
    %v642 = vadd.f32 %v614, %v641
    %643 = vdwg.mxu0
    %v644 = vmax.f32 %v639, 0.0
    %v645 = vmax.f32 %v642, 0.0
    %v646 = vld [vmem:[%s4 + $0x100] sm:$0xff]
    %v647 = vld [vmem:[%s4 + $0x108] sm:$0xff]
    %v648 = vld [vmem:[%s4 + $0x110] sm:$0xff]
    %v649 = vld [vmem:[%s4 + $0x118] sm:$0xff]
    %v650 = vld [vmem:[%s4 + $0x120] sm:$0xff]
    %v651 = vld [vmem:[%s4 + $0x128] sm:$0xff]
    %v652 = vld [vmem:[%s4 + $0x130] sm:$0xff]
    %v653 = vld [vmem:[%s4 + $0x138] sm:$0xff]
    %v654 = vld [vmem:[%s5 + $0x3] sm:$0x1]
    %v655 = vperm.slane %v654, 0
    %v657 = vsel %vm160, %v644, 0
    %v660 = vsel %vm160, %v645, 0
    %662 = vmatpush.msra.mxu0 0.0
    %663 = vmatpush.msra.mxu0 0.0
    %664 = vmatpush.msra.mxu0 0.0
    %665 = vmatpush.msra.mxu0 0.0
    %666 = vmatpush.msra.mxu0 0.0
    %667 = vmatpush.msra.mxu0 0.0
    %668 = vmatpush.msra.mxu0 0.0
    %669 = vmatpush.msra.mxu0 0.0
    %670 = vmatpush.msra.mxu0 %v653
    %671 = vmatpush.msra.mxu0 %v652
    %672 = vmatpush.msra.mxu0 %v651
    %673 = vmatpush.msra.mxu0 %v650
    %674 = vmatpush.msra.mxu0 %v649
    %675 = vmatpush.msra.mxu0 %v648
    %676 = vmatpush.msra.mxu0 %v647
    %677 = vmatpush.msra.mxu0 %v646
    %678 = vmatmul.f32.gmra.mxu0 %v657
    %v679 = vpop.f32.mrf.mxu0
    %v680 = vadd.f32 %v655, %v679
    %681 = vmatmul.f32.gmra.mxu0 %v660
    %v682 = vpop.f32.mrf.mxu0
    %v683 = vadd.f32 %v655, %v682
    %684 = vdwg.mxu0
    %v685 = vadd.f32 %v607, %v680
    %v686 = vadd.f32 %v608, %v683
    %v687 = vsel %vm208, %v685, 0.0
    %688 = vadd.xlane.f32.xlu0 %v687
    %v689 = vpop.xlane.xlu0 %688
    %v690 = vsel %vm208, %v686, 0.0
    %691 = vadd.xlane.f32.xlu0 %v690
    %v692 = vpop.xlane.xlu0 %691
    %v693 = vmul.f32 %v689, %v562
    %v694 = vmul.f32 %v692, %v562
    %v695 = vsub.f32 %v685, %v693
    %v696 = vsub.f32 %v686, %v694
    %v697 = vmul.f32 %v695, %v695
    %v698 = vmul.f32 %v696, %v696
    %v699 = vsel %vm208, %v697, 0.0
    %700 = vadd.xlane.f32.xlu0 %v699
    %v701 = vpop.xlane.xlu0 %700
    %v702 = vsel %vm208, %v698, 0.0
    %703 = vadd.xlane.f32.xlu0 %v702
    %v704 = vpop.xlane.xlu0 %703
    %v705 = vmul.f32 %v701, %v562
    %v706 = vmul.f32 %v704, %v562
    %v707 = vadd.f32 %v705, 1e-05
    %v708 = vadd.f32 %v706, 1e-05
    %v709 = vrsqrt.pop %v707
    %v710 = vmul.f32 %v709, %v707
    %v711 = vmul.f32 %v710, %v709
    %v712 = vmul.f32 0.5, %v711
    %v713 = vsub.f32 1.5, %v712
    %v714 = vmul.f32 %v709, %v713
    %vm715 = vweird.f32 %v707
    %vm716 = vweird.f32 %v709
    %vm717 = vmor %vm715, %vm716
    %v718 = vsel %vm717, %v709, %v714
    %v719 = vrsqrt.pop %v708
    %v720 = vmul.f32 %v719, %v708
    %v721 = vmul.f32 %v720, %v719
    %v722 = vmul.f32 0.5, %v721
    %v723 = vsub.f32 1.5, %v722
    %v724 = vmul.f32 %v719, %v723
    %vm725 = vweird.f32 %v708
    %vm726 = vweird.f32 %v719
    %vm727 = vmor %vm725, %vm726
    %v728 = vsel %vm727, %v719, %v724
    %v729 = vmul.f32 %v695, %v718
    %v730 = vmul.f32 %v696, %v728
    %v731 = vld [vmem:[%s5 + $0x6] sm:$0x1]
    %v732 = vperm.slane %v731, 0
    %v733 = vmul.f32 %v729, %v732
    %v734 = vmul.f32 %v730, %v732
    %v735 = vld [vmem:[%s5 + $0x7] sm:$0x1]
    %v736 = vperm.slane %v735, 0
    %v737 = vadd.f32 %v733, %v736
    %v738 = vadd.f32 %v734, %v736
    %v739 = vld [vmem:[%s2 + $0x20] sm:$0xff]
    %v740 = vld [vmem:[%s2 + $0x28] sm:$0xff]
    %v741 = vld [vmem:[%s2 + $0x30] sm:$0xff]
    %v742 = vld [vmem:[%s2 + $0x38] sm:$0xff]
    %v743 = vld [vmem:[%s5 + $0x8] sm:$0x1]
    %v744 = vperm.slane %v743, 0
    %v746 = vsel %vm208, %v737, 0
    %v749 = vsel %vm208, %v738, 0
    %751 = vmatpush.msra.mxu0 0.0
    %752 = vmatpush.msra.mxu0 0.0
    %753 = vmatpush.msra.mxu0 0.0
    %754 = vmatpush.msra.mxu0 0.0
    %755 = vmatpush.msra.mxu0 0.0
    %756 = vmatpush.msra.mxu0 0.0
    %757 = vmatpush.msra.mxu0 0.0
    %758 = vmatpush.msra.mxu0 0.0
    %759 = vmatpush.msra.mxu0 0.0
    %760 = vmatpush.msra.mxu0 0.0
    %761 = vmatpush.msra.mxu0 0.0
    %762 = vmatpush.msra.mxu0 0.0
    %763 = vmatpush.msra.mxu0 %v742
    %764 = vmatpush.msra.mxu0 %v741
    %765 = vmatpush.msra.mxu0 %v740
    %766 = vmatpush.msra.mxu0 %v739
    %767 = vmatmul.f32.gmra.mxu0 %v746
    %v768 = vpop.f32.mrf.mxu0
    %v769 = vadd.f32 %v744, %v768
    %770 = vmatmul.f32.gmra.mxu0 %v749
    %v771 = vpop.f32.mrf.mxu0
    %v772 = vadd.f32 %v744, %v771
    %773 = vdwg.mxu0
    %v774 = vmul.f32 %v769, %v247
    %v775 = vmul.f32 %v772, %v249
    %v776 = vmul.f32 %v769, %v251
    %v777 = vmul.f32 %v772, %v253
    %v778 = vmul.f32 %v769, %v255
    %v779 = vmul.f32 %v772, %v257
    %v780 = vmul.f32 %v769, %v259
    %v781 = vmul.f32 %v772, %v261
    %v782 = vmul.f32 %v769, %v279
    %v783 = vmul.f32 %v772, %v281
    %v784 = vmul.f32 %v769, %v283
    %v785 = vmul.f32 %v772, %v285
    %v786 = vmul.f32 %v769, %v287
    %v787 = vmul.f32 %v772, %v289
    %v788 = vmul.f32 %v769, %v291
    %v789 = vmul.f32 %v772, %v293
    %798 = vrot.lane.b32.xlu0 %v774, 96
    %v799 = vpop.permute.xlu0 %798
    %800 = vrot.lane.b32.xlu0 %v775, 96
    %v801 = vpop.permute.xlu0 %800
    %802 = vrot.lane.b32.xlu0 %v776, 96
    %v803 = vpop.permute.xlu0 %802
    %804 = vrot.lane.b32.xlu0 %v777, 96
    %v805 = vpop.permute.xlu0 %804
    %806 = vrot.lane.b32.xlu0 %v778, 96
    %v807 = vpop.permute.xlu0 %806
    %808 = vrot.lane.b32.xlu0 %v779, 96
    %v809 = vpop.permute.xlu0 %808
    %810 = vrot.lane.b32.xlu0 %v780, 96
    %v811 = vpop.permute.xlu0 %810
    %812 = vrot.lane.b32.xlu0 %v781, 96
    %v813 = vpop.permute.xlu0 %812
    %v815 = vsel %vm208, %v769, 0
    %v818 = vsel %vm208, %v772, 0
    %v820 = vsel %vm208, %v799, 0
    %v822 = vsel %vm208, %v801, 0
    %v824 = vsel %vm208, %v803, 0
    %v826 = vsel %vm208, %v805, 0
    %v828 = vsel %vm208, %v807, 0
    %v830 = vsel %vm208, %v809, 0
    %v832 = vsel %vm208, %v811, 0
    %v834 = vsel %vm208, %v813, 0
    %836 = vmatpush.xpose.msra.mxu0 0.0
    %837 = vmatpush.xpose.msra.mxu0 0.0
    %838 = vmatpush.xpose.msra.mxu0 0.0
    %839 = vmatpush.xpose.msra.mxu0 0.0
    %840 = vmatpush.xpose.msra.mxu0 0.0
    %841 = vmatpush.xpose.msra.mxu0 0.0
    %842 = vmatpush.xpose.msra.mxu0 0.0
    %843 = vmatpush.xpose.msra.mxu0 0.0
    %844 = vmatpush.xpose.msra.mxu0 %v834
    %845 = vmatpush.xpose.msra.mxu0 %v832
    %846 = vmatpush.xpose.msra.mxu0 %v830
    %847 = vmatpush.xpose.msra.mxu0 %v828
    %848 = vmatpush.xpose.msra.mxu0 %v826
    %849 = vmatpush.xpose.msra.mxu0 %v824
    %850 = vmatpush.xpose.msra.mxu0 %v822
    %851 = vmatpush.xpose.msra.mxu0 %v820
    %852 = vmatmul.f32.gmra.mxu0 %v815
    %v853 = vpop.f32.mrf.mxu0
    %v854 = vadd.f32 %v110, %v853
    %855 = vmatmul.f32.gmra.mxu0 %v818
    %v856 = vpop.f32.mrf.mxu0
    %v857 = vadd.f32 %v111, %v856
    %858 = vdwg.mxu0
    %v859 = vsel %vm160, %v854, -inf
    %860 = vmax.xlane.f32.xlu0 %v859
    %v861 = vpop.xlane.xlu0 %860
    %v862 = vsel %vm160, %v857, -inf
    %863 = vmax.xlane.f32.xlu0 %v862
    %v864 = vpop.xlane.xlu0 %863
    %v865 = vsub.f32 %v854, %v861
    %v866 = vsub.f32 %v857, %v864
    %v867 = vmul.f32 %v865, 1.442695
    %v868 = vpow.pop %v867
    %v869 = vmul.f32 %v866, 1.442695
    %v870 = vpow.pop %v869
    %v872 = vsel %vm160, %v868, 0
    %v875 = vsel %vm160, %v870, 0
    %877 = vmatpush.msra.mxu0 0.0
    %878 = vmatpush.msra.mxu0 0.0
    %879 = vmatpush.msra.mxu0 0.0
    %880 = vmatpush.msra.mxu0 0.0
    %881 = vmatpush.msra.mxu0 0.0
    %882 = vmatpush.msra.mxu0 0.0
    %883 = vmatpush.msra.mxu0 0.0
    %884 = vmatpush.msra.mxu0 0.0
    %885 = vmatpush.msra.mxu0 %v91
    %886 = vmatpush.msra.mxu0 %v90
    %887 = vmatpush.msra.mxu0 %v89
    %888 = vmatpush.msra.mxu0 %v88
    %889 = vmatpush.msra.mxu0 %v87
    %890 = vmatpush.msra.mxu0 %v86
    %891 = vmatpush.msra.mxu0 %v85
    %892 = vmatpush.msra.mxu0 %v84
    %893 = vmatmul.f32.gmra.mxu0 %v872
    %v894 = vpop.f32.mrf.mxu0
    %v895 = vadd.f32 0.0, %v894
    %896 = vmatmul.f32.gmra.mxu0 %v875
    %v897 = vpop.f32.mrf.mxu0
    %v898 = vadd.f32 0.0, %v897
    %899 = vdwg.mxu0
    %908 = vrot.lane.b32.xlu0 %v782, 64
    %v909 = vpop.permute.xlu0 %908
    %910 = vrot.lane.b32.xlu0 %v783, 64
    %v911 = vpop.permute.xlu0 %910
    %912 = vrot.lane.b32.xlu0 %v784, 64
    %v913 = vpop.permute.xlu0 %912
    %914 = vrot.lane.b32.xlu0 %v785, 64
    %v915 = vpop.permute.xlu0 %914
    %916 = vrot.lane.b32.xlu0 %v786, 64
    %v917 = vpop.permute.xlu0 %916
    %918 = vrot.lane.b32.xlu0 %v787, 64
    %v919 = vpop.permute.xlu0 %918
    %920 = vrot.lane.b32.xlu0 %v788, 64
    %v921 = vpop.permute.xlu0 %920
    %922 = vrot.lane.b32.xlu0 %v789, 64
    %v923 = vpop.permute.xlu0 %922
    %932 = vmatpush.msra.mxu0 0.0
    %933 = vmatpush.msra.mxu0 0.0
    %934 = vmatpush.msra.mxu0 0.0
    %935 = vmatpush.msra.mxu0 0.0
    %936 = vmatpush.msra.mxu0 0.0
    %937 = vmatpush.msra.mxu0 0.0
    %938 = vmatpush.msra.mxu0 0.0
    %939 = vmatpush.msra.mxu0 0.0
    %940 = vmatpush.msra.mxu0 %v923
    %941 = vmatpush.msra.mxu0 %v921
    %942 = vmatpush.msra.mxu0 %v919
    %943 = vmatpush.msra.mxu0 %v917
    %944 = vmatpush.msra.mxu0 %v915
    %945 = vmatpush.msra.mxu0 %v913
    %946 = vmatpush.msra.mxu0 %v911
    %947 = vmatpush.msra.mxu0 %v909
    %948 = vmatmul.f32.gmra.mxu0 %v872
    %v949 = vpop.f32.mrf.mxu0
    %v950 = vadd.f32 0.0, %v949
    %951 = vmatmul.f32.gmra.mxu0 %v875
    %v952 = vpop.f32.mrf.mxu0
    %v953 = vadd.f32 0.0, %v952
    %954 = vdwg.mxu0
    %v956 = vsel %vm475, %v895, 0
    %v959 = vsel %vm475, %v898, 0
    %961 = vmatpush.msra.mxu0 0.0
    %962 = vmatpush.msra.mxu0 0.0
    %963 = vmatpush.msra.mxu0 0.0
    %964 = vmatpush.msra.mxu0 0.0
    %965 = vmatpush.msra.mxu0 0.0
    %966 = vmatpush.msra.mxu0 0.0
    %967 = vmatpush.msra.mxu0 0.0
    %968 = vmatpush.msra.mxu0 0.0
    %969 = vmatpush.msra.mxu0 0.0
    %970 = vmatpush.msra.mxu0 0.0
    %971 = vmatpush.msra.mxu0 0.0
    %972 = vmatpush.msra.mxu0 0.0
    %973 = vmatpush.msra.mxu0 0.0
    %974 = vmatpush.msra.mxu0 0.0
    %975 = vmatpush.msra.mxu0 0.0
    %976 = vmatpush.msra.mxu0 %v484
    %977 = vmatmul.f32.gmra.mxu0 %v956
    %v978 = vpop.f32.mrf.mxu0
    %v979 = vadd.f32 0.0, %v978
    %980 = vmatmul.f32.gmra.mxu0 %v959
    %v981 = vpop.f32.mrf.mxu0
    %v982 = vadd.f32 0.0, %v981
    %983 = vdwg.mxu0
    %v984 = vrcp.pop %v979
    %v985 = vrcp.pop %v982
    %v986 = vmul.f32 %v950, %v984
    %v987 = vmul.f32 %v953, %v985
    %v988 = vld [vmem:[%s4 + $0x60] sm:$0xff]
    %v989 = vld [vmem:[%s4 + $0x68] sm:$0xff]
    %v990 = vld [vmem:[%s4 + $0x70] sm:$0xff]
    %v991 = vld [vmem:[%s4 + $0x78] sm:$0xff]
    %v992 = vld [vmem:[%s5 + $0x9] sm:$0x1]
    %v993 = vperm.slane %v992, 0
    %v995 = vsel %vm208, %v986, 0
    %v998 = vsel %vm208, %v987, 0
    %1000 = vmatpush.msra.mxu0 0.0
    %1001 = vmatpush.msra.mxu0 0.0
    %1002 = vmatpush.msra.mxu0 0.0
    %1003 = vmatpush.msra.mxu0 0.0
    %1004 = vmatpush.msra.mxu0 0.0
    %1005 = vmatpush.msra.mxu0 0.0
    %1006 = vmatpush.msra.mxu0 0.0
    %1007 = vmatpush.msra.mxu0 0.0
    %1008 = vmatpush.msra.mxu0 0.0
    %1009 = vmatpush.msra.mxu0 0.0
    %1010 = vmatpush.msra.mxu0 0.0
    %1011 = vmatpush.msra.mxu0 0.0
    %1012 = vmatpush.msra.mxu0 %v991
    %1013 = vmatpush.msra.mxu0 %v990
    %1014 = vmatpush.msra.mxu0 %v989
    %1015 = vmatpush.msra.mxu0 %v988
    %1016 = vmatmul.f32.gmra.mxu0 %v995
    %v1017 = vpop.f32.mrf.mxu0
    %v1018 = vadd.f32 %v993, %v1017
    %1019 = vmatmul.f32.gmra.mxu0 %v998
    %v1020 = vpop.f32.mrf.mxu0
    %v1021 = vadd.f32 %v993, %v1020
    %1022 = vdwg.mxu0
    %v1023 = vadd.f32 %v737, %v1018
    %v1024 = vadd.f32 %v738, %v1021
    %v1025 = vsel %vm208, %v1023, 0.0
    %1026 = vadd.xlane.f32.xlu0 %v1025
    %v1027 = vpop.xlane.xlu0 %1026
    %v1028 = vsel %vm208, %v1024, 0.0
    %1029 = vadd.xlane.f32.xlu0 %v1028
    %v1030 = vpop.xlane.xlu0 %1029
    %v1031 = vmul.f32 %v1027, %v562
    %v1032 = vmul.f32 %v1030, %v562
    %v1033 = vsub.f32 %v1023, %v1031
    %v1034 = vsub.f32 %v1024, %v1032
    %v1035 = vmul.f32 %v1033, %v1033
    %v1036 = vmul.f32 %v1034, %v1034
    %v1037 = vsel %vm208, %v1035, 0.0
    %1038 = vadd.xlane.f32.xlu0 %v1037
    %v1039 = vpop.xlane.xlu0 %1038
    %v1040 = vsel %vm208, %v1036, 0.0
    %1041 = vadd.xlane.f32.xlu0 %v1040
    %v1042 = vpop.xlane.xlu0 %1041
    %v1043 = vmul.f32 %v1039, %v562
    %v1044 = vmul.f32 %v1042, %v562
    %v1045 = vadd.f32 %v1043, 1e-05
    %v1046 = vadd.f32 %v1044, 1e-05
    %v1047 = vrsqrt.pop %v1045
    %v1048 = vmul.f32 %v1047, %v1045
    %v1049 = vmul.f32 %v1048, %v1047
    %v1050 = vmul.f32 0.5, %v1049
    %v1051 = vsub.f32 1.5, %v1050
    %v1052 = vmul.f32 %v1047, %v1051
    %vm1053 = vweird.f32 %v1045
    %vm1054 = vweird.f32 %v1047
    %vm1055 = vmor %vm1053, %vm1054
    %v1056 = vsel %vm1055, %v1047, %v1052
    %v1057 = vrsqrt.pop %v1046
    %v1058 = vmul.f32 %v1057, %v1046
    %v1059 = vmul.f32 %v1058, %v1057
    %v1060 = vmul.f32 0.5, %v1059
    %v1061 = vsub.f32 1.5, %v1060
    %v1062 = vmul.f32 %v1057, %v1061
    %vm1063 = vweird.f32 %v1046
    %vm1064 = vweird.f32 %v1057
    %vm1065 = vmor %vm1063, %vm1064
    %v1066 = vsel %vm1065, %v1057, %v1062
    %v1067 = vmul.f32 %v1033, %v1056
    %v1068 = vmul.f32 %v1034, %v1066
    %v1069 = vld [vmem:[%s5 + $0xc] sm:$0x1]
    %v1070 = vperm.slane %v1069, 0
    %v1071 = vmul.f32 %v1067, %v1070
    %v1072 = vmul.f32 %v1068, %v1070
    %v1073 = vld [vmem:[%s5 + $0xd] sm:$0x1]
    %v1074 = vperm.slane %v1073, 0
    %v1075 = vadd.f32 %v1071, %v1074
    %v1076 = vadd.f32 %v1072, %v1074
    %v1077 = vld [vmem:[%s3 + $0x20] sm:$0xff]
    %v1078 = vld [vmem:[%s3 + $0x28] sm:$0xff]
    %v1079 = vld [vmem:[%s3 + $0x30] sm:$0xff]
    %v1080 = vld [vmem:[%s3 + $0x38] sm:$0xff]
    %v1081 = vld [vmem:[%s5 + $0xa] sm:$0x1]
    %v1082 = vperm.slane %v1081, 0
    %v1084 = vsel %vm208, %v1075, 0
    %v1087 = vsel %vm208, %v1076, 0
    %1089 = vmatpush.msra.mxu0 0.0
    %1090 = vmatpush.msra.mxu0 0.0
    %1091 = vmatpush.msra.mxu0 0.0
    %1092 = vmatpush.msra.mxu0 0.0
    %1093 = vmatpush.msra.mxu0 0.0
    %1094 = vmatpush.msra.mxu0 0.0
    %1095 = vmatpush.msra.mxu0 0.0
    %1096 = vmatpush.msra.mxu0 0.0
    %1097 = vmatpush.msra.mxu0 0.0
    %1098 = vmatpush.msra.mxu0 0.0
    %1099 = vmatpush.msra.mxu0 0.0
    %1100 = vmatpush.msra.mxu0 0.0
    %1101 = vmatpush.msra.mxu0 %v1080
    %1102 = vmatpush.msra.mxu0 %v1079
    %1103 = vmatpush.msra.mxu0 %v1078
    %1104 = vmatpush.msra.mxu0 %v1077
    %1105 = vmatmul.f32.gmra.mxu0 %v1084
    %v1106 = vpop.f32.mrf.mxu0
    %v1107 = vadd.f32 %v1082, %v1106
    %1108 = vmatmul.f32.gmra.mxu0 %v1087
    %v1109 = vpop.f32.mrf.mxu0
    %v1110 = vadd.f32 %v1082, %v1109
    %1111 = vdwg.mxu0
    %v1112 = vmax.f32 %v1107, 0.0
    %v1113 = vmax.f32 %v1110, 0.0
    %v1114 = vld [vmem:[%s4 + $0x140] sm:$0xff]
    %v1115 = vld [vmem:[%s4 + $0x148] sm:$0xff]
    %v1116 = vld [vmem:[%s4 + $0x150] sm:$0xff]
    %v1117 = vld [vmem:[%s4 + $0x158] sm:$0xff]
    %v1118 = vld [vmem:[%s4 + $0x160] sm:$0xff]
    %v1119 = vld [vmem:[%s4 + $0x168] sm:$0xff]
    %v1120 = vld [vmem:[%s4 + $0x170] sm:$0xff]
    %v1121 = vld [vmem:[%s4 + $0x178] sm:$0xff]
    %v1122 = vld [vmem:[%s5 + $0xb] sm:$0x1]
    %v1123 = vperm.slane %v1122, 0
    %v1125 = vsel %vm160, %v1112, 0
    %v1128 = vsel %vm160, %v1113, 0
    %1130 = vmatpush.msra.mxu0 0.0
    %1131 = vmatpush.msra.mxu0 0.0
    %1132 = vmatpush.msra.mxu0 0.0
    %1133 = vmatpush.msra.mxu0 0.0
    %1134 = vmatpush.msra.mxu0 0.0
    %1135 = vmatpush.msra.mxu0 0.0
    %1136 = vmatpush.msra.mxu0 0.0
    %1137 = vmatpush.msra.mxu0 0.0
    %1138 = vmatpush.msra.mxu0 %v1121
    %1139 = vmatpush.msra.mxu0 %v1120
    %1140 = vmatpush.msra.mxu0 %v1119
    %1141 = vmatpush.msra.mxu0 %v1118
    %1142 = vmatpush.msra.mxu0 %v1117
    %1143 = vmatpush.msra.mxu0 %v1116
    %1144 = vmatpush.msra.mxu0 %v1115
    %1145 = vmatpush.msra.mxu0 %v1114
    %1146 = vmatmul.f32.gmra.mxu0 %v1125
    %v1147 = vpop.f32.mrf.mxu0
    %v1148 = vadd.f32 %v1123, %v1147
    %1149 = vmatmul.f32.gmra.mxu0 %v1128
    %v1150 = vpop.f32.mrf.mxu0
    %v1151 = vadd.f32 %v1123, %v1150
    %1152 = vdwg.mxu0
    %v1153 = vadd.f32 %v1075, %v1148
    %v1154 = vadd.f32 %v1076, %v1151
    %v1155 = vsel %vm208, %v1153, 0.0
    %1156 = vadd.xlane.f32.xlu0 %v1155
    %v1157 = vpop.xlane.xlu0 %1156
    %v1158 = vsel %vm208, %v1154, 0.0
    %1159 = vadd.xlane.f32.xlu0 %v1158
    %v1160 = vpop.xlane.xlu0 %1159
    %v1161 = vmul.f32 %v1157, %v562
    %v1162 = vmul.f32 %v1160, %v562
    %v1163 = vsub.f32 %v1153, %v1161
    %v1164 = vsub.f32 %v1154, %v1162
    %v1165 = vmul.f32 %v1163, %v1163
    %v1166 = vmul.f32 %v1164, %v1164
    %v1167 = vsel %vm208, %v1165, 0.0
    %1168 = vadd.xlane.f32.xlu0 %v1167
    %v1169 = vpop.xlane.xlu0 %1168
    %v1170 = vsel %vm208, %v1166, 0.0
    %1171 = vadd.xlane.f32.xlu0 %v1170
    %v1172 = vpop.xlane.xlu0 %1171
    %v1173 = vmul.f32 %v1169, %v562
    %v1174 = vmul.f32 %v1172, %v562
    %v1175 = vadd.f32 %v1173, 1e-05
    %v1176 = vadd.f32 %v1174, 1e-05
    %v1177 = vrsqrt.pop %v1175
    %v1178 = vmul.f32 %v1177, %v1175
    %v1179 = vmul.f32 %v1178, %v1177
    %v1180 = vmul.f32 0.5, %v1179
    %v1181 = vsub.f32 1.5, %v1180
    %v1182 = vmul.f32 %v1177, %v1181
    %vm1183 = vweird.f32 %v1175
    %vm1184 = vweird.f32 %v1177
    %vm1185 = vmor %vm1183, %vm1184
    %v1186 = vsel %vm1185, %v1177, %v1182
    %v1187 = vrsqrt.pop %v1176
    %v1188 = vmul.f32 %v1187, %v1176
    %v1189 = vmul.f32 %v1188, %v1187
    %v1190 = vmul.f32 0.5, %v1189
    %v1191 = vsub.f32 1.5, %v1190
    %v1192 = vmul.f32 %v1187, %v1191
    %vm1193 = vweird.f32 %v1176
    %vm1194 = vweird.f32 %v1187
    %vm1195 = vmor %vm1193, %vm1194
    %v1196 = vsel %vm1195, %v1187, %v1192
    %v1197 = vmul.f32 %v1163, %v1186
    %v1198 = vmul.f32 %v1164, %v1196
    %v1199 = vld [vmem:[%s5 + $0xe] sm:$0x1]
    %v1200 = vperm.slane %v1199, 0
    %v1201 = vmul.f32 %v1197, %v1200
    %v1202 = vmul.f32 %v1198, %v1200
    %v1203 = vld [vmem:[%s5 + $0xf] sm:$0x1]
    %v1204 = vperm.slane %v1203, 0
    %v1205 = vadd.f32 %v1201, %v1204
    %v1206 = vadd.f32 %v1202, %v1204
    %v1207 = vsel %vm208, %v1205, 0.0
    %1208 = vadd.xlane.f32.xlu0 %v1207
    %v1209 = vpop.xlane.xlu0 %1208
    %v1210 = vsel %vm208, %v1206, 0.0
    %1211 = vadd.xlane.f32.xlu0 %v1210
    %v1212 = vpop.xlane.xlu0 %1211
    %v1213 = vmul.f32 %v1209, %v562
    %v1214 = vmul.f32 %v1212, %v562
    %v1215 = vsub.f32 %v1205, %v1213
    %v1216 = vsub.f32 %v1206, %v1214
    %v1217 = vmul.f32 %v1215, %v1215
    %v1218 = vmul.f32 %v1216, %v1216
    %v1219 = vsel %vm208, %v1217, 0.0
    %1220 = vadd.xlane.f32.xlu0 %v1219
    %v1221 = vpop.xlane.xlu0 %1220
    %v1222 = vsel %vm208, %v1218, 0.0
    %1223 = vadd.xlane.f32.xlu0 %v1222
    %v1224 = vpop.xlane.xlu0 %1223
    %v1225 = vmul.f32 %v1221, %v562
    %v1226 = vmul.f32 %v1224, %v562
    %v1227 = vadd.f32 %v1225, 1e-05
    %v1228 = vadd.f32 %v1226, 1e-05
    %v1229 = vrsqrt.pop %v1227
    %v1230 = vmul.f32 %v1229, %v1227
    %v1231 = vmul.f32 %v1230, %v1229
    %v1232 = vmul.f32 0.5, %v1231
    %v1233 = vsub.f32 1.5, %v1232
    %v1234 = vmul.f32 %v1229, %v1233
    %vm1235 = vweird.f32 %v1227
    %vm1236 = vweird.f32 %v1229
    %vm1237 = vmor %vm1235, %vm1236
    %v1238 = vsel %vm1237, %v1229, %v1234
    %v1239 = vrsqrt.pop %v1228
    %v1240 = vmul.f32 %v1239, %v1228
    %v1241 = vmul.f32 %v1240, %v1239
    %v1242 = vmul.f32 0.5, %v1241
    %v1243 = vsub.f32 1.5, %v1242
    %v1244 = vmul.f32 %v1239, %v1243
    %vm1245 = vweird.f32 %v1228
    %vm1246 = vweird.f32 %v1239
    %vm1247 = vmor %vm1245, %vm1246
    %v1248 = vsel %vm1247, %v1239, %v1244
    %v1249 = vmul.f32 %v1215, %v1238
    %v1250 = vmul.f32 %v1216, %v1248
    %v1251 = vld [vmem:[%s5 + $0x28] sm:$0x1]
    %v1252 = vperm.slane %v1251, 0
    %v1253 = vmul.f32 %v1249, %v1252
    %v1254 = vmul.f32 %v1250, %v1252
    %v1255 = vld [vmem:[%s5 + $0x29] sm:$0x1]
    %v1256 = vperm.slane %v1255, 0
    %v1257 = vadd.f32 %v1253, %v1256
    %v1258 = vadd.f32 %v1254, %v1256
    %v1259 = vld [vmem:[%s2 + $0x40] sm:$0xff]
    %v1260 = vld [vmem:[%s2 + $0x48] sm:$0xff]
    %v1261 = vld [vmem:[%s2 + $0x50] sm:$0xff]
    %v1262 = vld [vmem:[%s2 + $0x58] sm:$0xff]
    %v1263 = vld [vmem:[%s5 + $0x10] sm:$0x1]
    %v1264 = vperm.slane %v1263, 0
    %v1266 = vsel %vm208, %v197, 0
    %v1269 = vsel %vm208, %v200, 0
    %1271 = vmatpush.msra.mxu0 0.0
    %1272 = vmatpush.msra.mxu0 0.0
    %1273 = vmatpush.msra.mxu0 0.0
    %1274 = vmatpush.msra.mxu0 0.0
    %1275 = vmatpush.msra.mxu0 0.0
    %1276 = vmatpush.msra.mxu0 0.0
    %1277 = vmatpush.msra.mxu0 0.0
    %1278 = vmatpush.msra.mxu0 0.0
    %1279 = vmatpush.msra.mxu0 0.0
    %1280 = vmatpush.msra.mxu0 0.0
    %1281 = vmatpush.msra.mxu0 0.0
    %1282 = vmatpush.msra.mxu0 0.0
    %1283 = vmatpush.msra.mxu0 %v1262
    %1284 = vmatpush.msra.mxu0 %v1261
    %1285 = vmatpush.msra.mxu0 %v1260
    %1286 = vmatpush.msra.mxu0 %v1259
    %1287 = vmatmul.f32.gmra.mxu0 %v1266
    %v1288 = vpop.f32.mrf.mxu0
    %v1289 = vadd.f32 %v1264, %v1288
    %1290 = vmatmul.f32.gmra.mxu0 %v1269
    %v1291 = vpop.f32.mrf.mxu0
    %v1292 = vadd.f32 %v1264, %v1291
    %1293 = vdwg.mxu0
    %v1294 = vmul.f32 %v1289, %v247
    %v1295 = vmul.f32 %v1292, %v249
    %v1296 = vmul.f32 %v1289, %v251
    %v1297 = vmul.f32 %v1292, %v253
    %v1298 = vmul.f32 %v1289, %v255
    %v1299 = vmul.f32 %v1292, %v257
    %v1300 = vmul.f32 %v1289, %v259
    %v1301 = vmul.f32 %v1292, %v261
    %v1302 = vmul.f32 %v1289, %v279
    %v1303 = vmul.f32 %v1292, %v281
    %v1304 = vmul.f32 %v1289, %v283
    %v1305 = vmul.f32 %v1292, %v285
    %v1306 = vmul.f32 %v1289, %v287
    %v1307 = vmul.f32 %v1292, %v289
    %v1308 = vmul.f32 %v1289, %v291
    %v1309 = vmul.f32 %v1292, %v293
    %1318 = vrot.lane.b32.xlu0 %v1294, 96
    %v1319 = vpop.permute.xlu0 %1318
    %1320 = vrot.lane.b32.xlu0 %v1295, 96
    %v1321 = vpop.permute.xlu0 %1320
    %1322 = vrot.lane.b32.xlu0 %v1296, 96
    %v1323 = vpop.permute.xlu0 %1322
    %1324 = vrot.lane.b32.xlu0 %v1297, 96
    %v1325 = vpop.permute.xlu0 %1324
    %1326 = vrot.lane.b32.xlu0 %v1298, 96
    %v1327 = vpop.permute.xlu0 %1326
    %1328 = vrot.lane.b32.xlu0 %v1299, 96
    %v1329 = vpop.permute.xlu0 %1328
    %1330 = vrot.lane.b32.xlu0 %v1300, 96
    %v1331 = vpop.permute.xlu0 %1330
    %1332 = vrot.lane.b32.xlu0 %v1301, 96
    %v1333 = vpop.permute.xlu0 %1332
    %v1335 = vsel %vm208, %v1289, 0
    %v1338 = vsel %vm208, %v1292, 0
    %v1340 = vsel %vm208, %v1319, 0
    %v1342 = vsel %vm208, %v1321, 0
    %v1344 = vsel %vm208, %v1323, 0
    %v1346 = vsel %vm208, %v1325, 0
    %v1348 = vsel %vm208, %v1327, 0
    %v1350 = vsel %vm208, %v1329, 0
    %v1352 = vsel %vm208, %v1331, 0
    %v1354 = vsel %vm208, %v1333, 0
    %1356 = vmatpush.xpose.msra.mxu0 0.0
    %1357 = vmatpush.xpose.msra.mxu0 0.0
    %1358 = vmatpush.xpose.msra.mxu0 0.0
    %1359 = vmatpush.xpose.msra.mxu0 0.0
    %1360 = vmatpush.xpose.msra.mxu0 0.0
    %1361 = vmatpush.xpose.msra.mxu0 0.0
    %1362 = vmatpush.xpose.msra.mxu0 0.0
    %1363 = vmatpush.xpose.msra.mxu0 0.0
    %1364 = vmatpush.xpose.msra.mxu0 %v1354
    %1365 = vmatpush.xpose.msra.mxu0 %v1352
    %1366 = vmatpush.xpose.msra.mxu0 %v1350
    %1367 = vmatpush.xpose.msra.mxu0 %v1348
    %1368 = vmatpush.xpose.msra.mxu0 %v1346
    %1369 = vmatpush.xpose.msra.mxu0 %v1344
    %1370 = vmatpush.xpose.msra.mxu0 %v1342
    %1371 = vmatpush.xpose.msra.mxu0 %v1340
    %1372 = vmatmul.f32.gmra.mxu0 %v1335
    %v1373 = vpop.f32.mrf.mxu0
    %v1374 = vadd.f32 %v118, %v1373
    %1375 = vmatmul.f32.gmra.mxu0 %v1338
    %v1376 = vpop.f32.mrf.mxu0
    %v1377 = vadd.f32 %v119, %v1376
    %1378 = vdwg.mxu0
    %v1379 = vsel %vm160, %v1374, -inf
    %1380 = vmax.xlane.f32.xlu0 %v1379
    %v1381 = vpop.xlane.xlu0 %1380
    %v1382 = vsel %vm160, %v1377, -inf
    %1383 = vmax.xlane.f32.xlu0 %v1382
    %v1384 = vpop.xlane.xlu0 %1383
    %v1385 = vsub.f32 %v1374, %v1381
    %v1386 = vsub.f32 %v1377, %v1384
    %v1387 = vmul.f32 %v1385, 1.442695
    %v1388 = vpow.pop %v1387
    %v1389 = vmul.f32 %v1386, 1.442695
    %v1390 = vpow.pop %v1389
    %v1392 = vsel %vm160, %v1388, 0
    %v1395 = vsel %vm160, %v1390, 0
    %1397 = vmatpush.msra.mxu0 0.0
    %1398 = vmatpush.msra.mxu0 0.0
    %1399 = vmatpush.msra.mxu0 0.0
    %1400 = vmatpush.msra.mxu0 0.0
    %1401 = vmatpush.msra.mxu0 0.0
    %1402 = vmatpush.msra.mxu0 0.0
    %1403 = vmatpush.msra.mxu0 0.0
    %1404 = vmatpush.msra.mxu0 0.0
    %1405 = vmatpush.msra.mxu0 %v91
    %1406 = vmatpush.msra.mxu0 %v90
    %1407 = vmatpush.msra.mxu0 %v89
    %1408 = vmatpush.msra.mxu0 %v88
    %1409 = vmatpush.msra.mxu0 %v87
    %1410 = vmatpush.msra.mxu0 %v86
    %1411 = vmatpush.msra.mxu0 %v85
    %1412 = vmatpush.msra.mxu0 %v84
    %1413 = vmatmul.f32.gmra.mxu0 %v1392
    %v1414 = vpop.f32.mrf.mxu0
    %v1415 = vadd.f32 0.0, %v1414
    %1416 = vmatmul.f32.gmra.mxu0 %v1395
    %v1417 = vpop.f32.mrf.mxu0
    %v1418 = vadd.f32 0.0, %v1417
    %1419 = vdwg.mxu0
    %1428 = vrot.lane.b32.xlu0 %v1302, 64
    %v1429 = vpop.permute.xlu0 %1428
    %1430 = vrot.lane.b32.xlu0 %v1303, 64
    %v1431 = vpop.permute.xlu0 %1430
    %1432 = vrot.lane.b32.xlu0 %v1304, 64
    %v1433 = vpop.permute.xlu0 %1432
    %1434 = vrot.lane.b32.xlu0 %v1305, 64
    %v1435 = vpop.permute.xlu0 %1434
    %1436 = vrot.lane.b32.xlu0 %v1306, 64
    %v1437 = vpop.permute.xlu0 %1436
    %1438 = vrot.lane.b32.xlu0 %v1307, 64
    %v1439 = vpop.permute.xlu0 %1438
    %1440 = vrot.lane.b32.xlu0 %v1308, 64
    %v1441 = vpop.permute.xlu0 %1440
    %1442 = vrot.lane.b32.xlu0 %v1309, 64
    %v1443 = vpop.permute.xlu0 %1442
    %1452 = vmatpush.msra.mxu0 0.0
    %1453 = vmatpush.msra.mxu0 0.0
    %1454 = vmatpush.msra.mxu0 0.0
    %1455 = vmatpush.msra.mxu0 0.0
    %1456 = vmatpush.msra.mxu0 0.0
    %1457 = vmatpush.msra.mxu0 0.0
    %1458 = vmatpush.msra.mxu0 0.0
    %1459 = vmatpush.msra.mxu0 0.0
    %1460 = vmatpush.msra.mxu0 %v1443
    %1461 = vmatpush.msra.mxu0 %v1441
    %1462 = vmatpush.msra.mxu0 %v1439
    %1463 = vmatpush.msra.mxu0 %v1437
    %1464 = vmatpush.msra.mxu0 %v1435
    %1465 = vmatpush.msra.mxu0 %v1433
    %1466 = vmatpush.msra.mxu0 %v1431
    %1467 = vmatpush.msra.mxu0 %v1429
    %1468 = vmatmul.f32.gmra.mxu0 %v1392
    %v1469 = vpop.f32.mrf.mxu0
    %v1470 = vadd.f32 0.0, %v1469
    %1471 = vmatmul.f32.gmra.mxu0 %v1395
    %v1472 = vpop.f32.mrf.mxu0
    %v1473 = vadd.f32 0.0, %v1472
    %1474 = vdwg.mxu0
    %v1476 = vsel %vm475, %v1415, 0
    %v1479 = vsel %vm475, %v1418, 0
    %1481 = vmatpush.msra.mxu0 0.0
    %1482 = vmatpush.msra.mxu0 0.0
    %1483 = vmatpush.msra.mxu0 0.0
    %1484 = vmatpush.msra.mxu0 0.0
    %1485 = vmatpush.msra.mxu0 0.0
    %1486 = vmatpush.msra.mxu0 0.0
    %1487 = vmatpush.msra.mxu0 0.0
    %1488 = vmatpush.msra.mxu0 0.0
    %1489 = vmatpush.msra.mxu0 0.0
    %1490 = vmatpush.msra.mxu0 0.0
    %1491 = vmatpush.msra.mxu0 0.0
    %1492 = vmatpush.msra.mxu0 0.0
    %1493 = vmatpush.msra.mxu0 0.0
    %1494 = vmatpush.msra.mxu0 0.0
    %1495 = vmatpush.msra.mxu0 0.0
    %1496 = vmatpush.msra.mxu0 %v484
    %1497 = vmatmul.f32.gmra.mxu0 %v1476
    %v1498 = vpop.f32.mrf.mxu0
    %v1499 = vadd.f32 0.0, %v1498
    %1500 = vmatmul.f32.gmra.mxu0 %v1479
    %v1501 = vpop.f32.mrf.mxu0
    %v1502 = vadd.f32 0.0, %v1501
    %1503 = vdwg.mxu0
    %v1504 = vrcp.pop %v1499
    %v1505 = vrcp.pop %v1502
    %v1506 = vmul.f32 %v1470, %v1504
    %v1507 = vmul.f32 %v1473, %v1505
    %v1508 = vld [vmem:[%s4 + $0x80] sm:$0xff]
    %v1509 = vld [vmem:[%s4 + $0x88] sm:$0xff]
    %v1510 = vld [vmem:[%s4 + $0x90] sm:$0xff]
    %v1511 = vld [vmem:[%s4 + $0x98] sm:$0xff]
    %v1512 = vld [vmem:[%s5 + $0x11] sm:$0x1]
    %v1513 = vperm.slane %v1512, 0
    %v1515 = vsel %vm208, %v1506, 0
    %v1518 = vsel %vm208, %v1507, 0
    %1520 = vmatpush.msra.mxu0 0.0
    %1521 = vmatpush.msra.mxu0 0.0
    %1522 = vmatpush.msra.mxu0 0.0
    %1523 = vmatpush.msra.mxu0 0.0
    %1524 = vmatpush.msra.mxu0 0.0
    %1525 = vmatpush.msra.mxu0 0.0
    %1526 = vmatpush.msra.mxu0 0.0
    %1527 = vmatpush.msra.mxu0 0.0
    %1528 = vmatpush.msra.mxu0 0.0
    %1529 = vmatpush.msra.mxu0 0.0
    %1530 = vmatpush.msra.mxu0 0.0
    %1531 = vmatpush.msra.mxu0 0.0
    %1532 = vmatpush.msra.mxu0 %v1511
    %1533 = vmatpush.msra.mxu0 %v1510
    %1534 = vmatpush.msra.mxu0 %v1509
    %1535 = vmatpush.msra.mxu0 %v1508
    %1536 = vmatmul.f32.gmra.mxu0 %v1515
    %v1537 = vpop.f32.mrf.mxu0
    %v1538 = vadd.f32 %v1513, %v1537
    %1539 = vmatmul.f32.gmra.mxu0 %v1518
    %v1540 = vpop.f32.mrf.mxu0
    %v1541 = vadd.f32 %v1513, %v1540
    %1542 = vdwg.mxu0
    %v1543 = vadd.f32 %v197, %v1538
    %v1544 = vadd.f32 %v200, %v1541
    %v1545 = vsel %vm208, %v1543, 0.0
    %1546 = vadd.xlane.f32.xlu0 %v1545
    %v1547 = vpop.xlane.xlu0 %1546
    %v1548 = vsel %vm208, %v1544, 0.0
    %1549 = vadd.xlane.f32.xlu0 %v1548
    %v1550 = vpop.xlane.xlu0 %1549
    %v1551 = vmul.f32 %v1547, %v562
    %v1552 = vmul.f32 %v1550, %v562
    %v1553 = vsub.f32 %v1543, %v1551
    %v1554 = vsub.f32 %v1544, %v1552
    %v1555 = vmul.f32 %v1553, %v1553
    %v1556 = vmul.f32 %v1554, %v1554
    %v1557 = vsel %vm208, %v1555, 0.0
    %1558 = vadd.xlane.f32.xlu0 %v1557
    %v1559 = vpop.xlane.xlu0 %1558
    %v1560 = vsel %vm208, %v1556, 0.0
    %1561 = vadd.xlane.f32.xlu0 %v1560
    %v1562 = vpop.xlane.xlu0 %1561
    %v1563 = vmul.f32 %v1559, %v562
    %v1564 = vmul.f32 %v1562, %v562
    %v1565 = vadd.f32 %v1563, 1e-05
    %v1566 = vadd.f32 %v1564, 1e-05
    %v1567 = vrsqrt.pop %v1565
    %v1568 = vmul.f32 %v1567, %v1565
    %v1569 = vmul.f32 %v1568, %v1567
    %v1570 = vmul.f32 0.5, %v1569
    %v1571 = vsub.f32 1.5, %v1570
    %v1572 = vmul.f32 %v1567, %v1571
    %vm1573 = vweird.f32 %v1565
    %vm1574 = vweird.f32 %v1567
    %vm1575 = vmor %vm1573, %vm1574
    %v1576 = vsel %vm1575, %v1567, %v1572
    %v1577 = vrsqrt.pop %v1566
    %v1578 = vmul.f32 %v1577, %v1566
    %v1579 = vmul.f32 %v1578, %v1577
    %v1580 = vmul.f32 0.5, %v1579
    %v1581 = vsub.f32 1.5, %v1580
    %v1582 = vmul.f32 %v1577, %v1581
    %vm1583 = vweird.f32 %v1566
    %vm1584 = vweird.f32 %v1577
    %vm1585 = vmor %vm1583, %vm1584
    %v1586 = vsel %vm1585, %v1577, %v1582
    %v1587 = vmul.f32 %v1553, %v1576
    %v1588 = vmul.f32 %v1554, %v1586
    %v1589 = vld [vmem:[%s5 + $0x16] sm:$0x1]
    %v1590 = vperm.slane %v1589, 0
    %v1591 = vmul.f32 %v1587, %v1590
    %v1592 = vmul.f32 %v1588, %v1590
    %v1593 = vld [vmem:[%s5 + $0x17] sm:$0x1]
    %v1594 = vperm.slane %v1593, 0
    %v1595 = vadd.f32 %v1591, %v1594
    %v1596 = vadd.f32 %v1592, %v1594
    %v1597 = vld [vmem:[%s5 + $0x12] sm:$0x1]
    %v1598 = vld [vmem:[%s2 + $0x60] sm:$0xff]
    %v1599 = vld [vmem:[%s2 + $0x68] sm:$0xff]
    %v1600 = vld [vmem:[%s2 + $0x70] sm:$0xff]
    %v1601 = vld [vmem:[%s2 + $0x78] sm:$0xff]
    %v1602 = vperm.slane %v1597, 0
    %v1604 = vsel %vm208, %v1595, 0
    %v1607 = vsel %vm208, %v1596, 0
    %1609 = vmatpush.msra.mxu0 0.0
    %1610 = vmatpush.msra.mxu0 0.0
    %1611 = vmatpush.msra.mxu0 0.0
    %1612 = vmatpush.msra.mxu0 0.0
    %1613 = vmatpush.msra.mxu0 0.0
    %1614 = vmatpush.msra.mxu0 0.0
    %1615 = vmatpush.msra.mxu0 0.0
    %1616 = vmatpush.msra.mxu0 0.0
    %1617 = vmatpush.msra.mxu0 0.0
    %1618 = vmatpush.msra.mxu0 0.0
    %1619 = vmatpush.msra.mxu0 0.0
    %1620 = vmatpush.msra.mxu0 0.0
    %1621 = vmatpush.msra.mxu0 %v1601
    %1622 = vmatpush.msra.mxu0 %v1600
    %1623 = vmatpush.msra.mxu0 %v1599
    %1624 = vmatpush.msra.mxu0 %v1598
    %1625 = vmatmul.f32.gmra.mxu0 %v1604
    %v1626 = vpop.f32.mrf.mxu0
    %v1627 = vadd.f32 %v1602, %v1626
    %1628 = vmatmul.f32.gmra.mxu0 %v1607
    %v1629 = vpop.f32.mrf.mxu0
    %v1630 = vadd.f32 %v1602, %v1629
    %1631 = vdwg.mxu0
    %1636 = vrot.lane.b32.xlu0 %v1598, 96
    %v1637 = vpop.permute.xlu0 %1636
    %1638 = vrot.lane.b32.xlu0 %v1599, 96
    %v1639 = vpop.permute.xlu0 %1638
    %1640 = vrot.lane.b32.xlu0 %v1600, 96
    %v1641 = vpop.permute.xlu0 %1640
    %1642 = vrot.lane.b32.xlu0 %v1601, 96
    %v1643 = vpop.permute.xlu0 %1642
    %1649 = vrot.lane.b32.xlu0 %v1602, 96
    %v1650 = vpop.permute.xlu0 %1649
    %v1653 = vsel %vm208, %v1257, 0
    %v1656 = vsel %vm208, %v1258, 0
    %1658 = vmatpush.msra.mxu0 0.0
    %1659 = vmatpush.msra.mxu0 0.0
    %1660 = vmatpush.msra.mxu0 0.0
    %1661 = vmatpush.msra.mxu0 0.0
    %1662 = vmatpush.msra.mxu0 0.0
    %1663 = vmatpush.msra.mxu0 0.0
    %1664 = vmatpush.msra.mxu0 0.0
    %1665 = vmatpush.msra.mxu0 0.0
    %1666 = vmatpush.msra.mxu0 0.0
    %1667 = vmatpush.msra.mxu0 0.0
    %1668 = vmatpush.msra.mxu0 0.0
    %1669 = vmatpush.msra.mxu0 0.0
    %1670 = vmatpush.msra.mxu0 %v1643
    %1671 = vmatpush.msra.mxu0 %v1641
    %1672 = vmatpush.msra.mxu0 %v1639
    %1673 = vmatpush.msra.mxu0 %v1637
    %1674 = vmatmul.f32.gmra.mxu0 %v1653
    %v1675 = vpop.f32.mrf.mxu0
    %v1676 = vadd.f32 %v1650, %v1675
    %1677 = vmatmul.f32.gmra.mxu0 %v1656
    %v1678 = vpop.f32.mrf.mxu0
    %v1679 = vadd.f32 %v1650, %v1678
    %1680 = vdwg.mxu0
    %v1681 = vmul.f32 %v1676, %v60
    %v1682 = vmul.f32 %v1679, %v61
    %v1683 = vmul.f32 %v1676, %v62
    %v1684 = vmul.f32 %v1679, %v63
    %v1685 = vmul.f32 %v1676, %v64
    %v1686 = vmul.f32 %v1679, %v65
    %v1687 = vmul.f32 %v1676, %v66
    %v1688 = vmul.f32 %v1679, %v67
    %v1689 = vmul.f32 %v1676, %v247
    %v1690 = vmul.f32 %v1679, %v249
    %v1691 = vmul.f32 %v1676, %v251
    %v1692 = vmul.f32 %v1679, %v253
    %v1693 = vmul.f32 %v1676, %v255
    %v1694 = vmul.f32 %v1679, %v257
    %v1695 = vmul.f32 %v1676, %v259
    %v1696 = vmul.f32 %v1679, %v261
    %v1698 = vsel %vm208, %v1627, 0
    %v1701 = vsel %vm208, %v1630, 0
    %v1704 = vsel %vm208, %v1681, 0
    %v1707 = vsel %vm208, %v1682, 0
    %v1710 = vsel %vm208, %v1683, 0
    %v1713 = vsel %vm208, %v1684, 0
    %v1716 = vsel %vm208, %v1685, 0
    %v1719 = vsel %vm208, %v1686, 0
    %v1722 = vsel %vm208, %v1687, 0
    %v1725 = vsel %vm208, %v1688, 0
    %1727 = vmatpush.xpose.msra.mxu0 0.0
    %1728 = vmatpush.xpose.msra.mxu0 0.0
    %1729 = vmatpush.xpose.msra.mxu0 0.0
    %1730 = vmatpush.xpose.msra.mxu0 0.0
    %1731 = vmatpush.xpose.msra.mxu0 0.0
    %1732 = vmatpush.xpose.msra.mxu0 0.0
    %1733 = vmatpush.xpose.msra.mxu0 0.0
    %1734 = vmatpush.xpose.msra.mxu0 0.0
    %1735 = vmatpush.xpose.msra.mxu0 %v1725
    %1736 = vmatpush.xpose.msra.mxu0 %v1722
    %1737 = vmatpush.xpose.msra.mxu0 %v1719
    %1738 = vmatpush.xpose.msra.mxu0 %v1716
    %1739 = vmatpush.xpose.msra.mxu0 %v1713
    %1740 = vmatpush.xpose.msra.mxu0 %v1710
    %1741 = vmatpush.xpose.msra.mxu0 %v1707
    %1742 = vmatpush.xpose.msra.mxu0 %v1704
    %1743 = vmatmul.f32.gmra.mxu0 %v1698
    %v1744 = vpop.f32.mrf.mxu0
    %v1745 = vadd.f32 %v110, %v1744
    %1746 = vmatmul.f32.gmra.mxu0 %v1701
    %v1747 = vpop.f32.mrf.mxu0
    %v1748 = vadd.f32 %v111, %v1747
    %1749 = vdwg.mxu0
    %v1750 = vsel %vm160, %v1745, -inf
    %1751 = vmax.xlane.f32.xlu0 %v1750
    %v1752 = vpop.xlane.xlu0 %1751
    %v1753 = vsel %vm160, %v1748, -inf
    %1754 = vmax.xlane.f32.xlu0 %v1753
    %v1755 = vpop.xlane.xlu0 %1754
    %v1756 = vsub.f32 %v1745, %v1752
    %v1757 = vsub.f32 %v1748, %v1755
    %v1758 = vmul.f32 %v1756, 1.442695
    %v1759 = vpow.pop %v1758
    %v1760 = vmul.f32 %v1757, 1.442695
    %v1761 = vpow.pop %v1760
    %v1763 = vsel %vm160, %v1759, 0
    %v1766 = vsel %vm160, %v1761, 0
    %1768 = vmatpush.msra.mxu0 0.0
    %1769 = vmatpush.msra.mxu0 0.0
    %1770 = vmatpush.msra.mxu0 0.0
    %1771 = vmatpush.msra.mxu0 0.0
    %1772 = vmatpush.msra.mxu0 0.0
    %1773 = vmatpush.msra.mxu0 0.0
    %1774 = vmatpush.msra.mxu0 0.0
    %1775 = vmatpush.msra.mxu0 0.0
    %1776 = vmatpush.msra.mxu0 %v91
    %1777 = vmatpush.msra.mxu0 %v90
    %1778 = vmatpush.msra.mxu0 %v89
    %1779 = vmatpush.msra.mxu0 %v88
    %1780 = vmatpush.msra.mxu0 %v87
    %1781 = vmatpush.msra.mxu0 %v86
    %1782 = vmatpush.msra.mxu0 %v85
    %1783 = vmatpush.msra.mxu0 %v84
    %1784 = vmatmul.f32.gmra.mxu0 %v1763
    %v1785 = vpop.f32.mrf.mxu0
    %v1786 = vadd.f32 0.0, %v1785
    %1787 = vmatmul.f32.gmra.mxu0 %v1766
    %v1788 = vpop.f32.mrf.mxu0
    %v1789 = vadd.f32 0.0, %v1788
    %1790 = vdwg.mxu0
    %1799 = vrot.lane.b32.xlu0 %v1689, 96
    %v1800 = vpop.permute.xlu0 %1799
    %1801 = vrot.lane.b32.xlu0 %v1690, 96
    %v1802 = vpop.permute.xlu0 %1801
    %1803 = vrot.lane.b32.xlu0 %v1691, 96
    %v1804 = vpop.permute.xlu0 %1803
    %1805 = vrot.lane.b32.xlu0 %v1692, 96
    %v1806 = vpop.permute.xlu0 %1805
    %1807 = vrot.lane.b32.xlu0 %v1693, 96
    %v1808 = vpop.permute.xlu0 %1807
    %1809 = vrot.lane.b32.xlu0 %v1694, 96
    %v1810 = vpop.permute.xlu0 %1809
    %1811 = vrot.lane.b32.xlu0 %v1695, 96
    %v1812 = vpop.permute.xlu0 %1811
    %1813 = vrot.lane.b32.xlu0 %v1696, 96
    %v1814 = vpop.permute.xlu0 %1813
    %1823 = vmatpush.msra.mxu0 0.0
    %1824 = vmatpush.msra.mxu0 0.0
    %1825 = vmatpush.msra.mxu0 0.0
    %1826 = vmatpush.msra.mxu0 0.0
    %1827 = vmatpush.msra.mxu0 0.0
    %1828 = vmatpush.msra.mxu0 0.0
    %1829 = vmatpush.msra.mxu0 0.0
    %1830 = vmatpush.msra.mxu0 0.0
    %1831 = vmatpush.msra.mxu0 %v1814
    %1832 = vmatpush.msra.mxu0 %v1812
    %1833 = vmatpush.msra.mxu0 %v1810
    %1834 = vmatpush.msra.mxu0 %v1808
    %1835 = vmatpush.msra.mxu0 %v1806
    %1836 = vmatpush.msra.mxu0 %v1804
    %1837 = vmatpush.msra.mxu0 %v1802
    %1838 = vmatpush.msra.mxu0 %v1800
    %1839 = vmatmul.f32.gmra.mxu0 %v1763
    %v1840 = vpop.f32.mrf.mxu0
    %v1841 = vadd.f32 0.0, %v1840
    %1842 = vmatmul.f32.gmra.mxu0 %v1766
    %v1843 = vpop.f32.mrf.mxu0
    %v1844 = vadd.f32 0.0, %v1843
    %1845 = vdwg.mxu0
    %v1847 = vsel %vm475, %v1786, 0
    %v1850 = vsel %vm475, %v1789, 0
    %1852 = vmatpush.msra.mxu0 0.0
    %1853 = vmatpush.msra.mxu0 0.0
    %1854 = vmatpush.msra.mxu0 0.0
    %1855 = vmatpush.msra.mxu0 0.0
    %1856 = vmatpush.msra.mxu0 0.0
    %1857 = vmatpush.msra.mxu0 0.0
    %1858 = vmatpush.msra.mxu0 0.0
    %1859 = vmatpush.msra.mxu0 0.0
    %1860 = vmatpush.msra.mxu0 0.0
    %1861 = vmatpush.msra.mxu0 0.0
    %1862 = vmatpush.msra.mxu0 0.0
    %1863 = vmatpush.msra.mxu0 0.0
    %1864 = vmatpush.msra.mxu0 0.0
    %1865 = vmatpush.msra.mxu0 0.0
    %1866 = vmatpush.msra.mxu0 0.0
    %1867 = vmatpush.msra.mxu0 %v484
    %1868 = vmatmul.f32.gmra.mxu0 %v1847
    %v1869 = vpop.f32.mrf.mxu0
    %v1870 = vadd.f32 0.0, %v1869
    %1871 = vmatmul.f32.gmra.mxu0 %v1850
    %v1872 = vpop.f32.mrf.mxu0
    %v1873 = vadd.f32 0.0, %v1872
    %1874 = vdwg.mxu0
    %v1875 = vrcp.pop %v1870
    %v1876 = vrcp.pop %v1873
    %v1877 = vmul.f32 %v1841, %v1875
    %v1878 = vmul.f32 %v1844, %v1876
    %v1879 = vld [vmem:[%s4 + $0xa0] sm:$0xff]
    %v1880 = vld [vmem:[%s4 + $0xa8] sm:$0xff]
    %v1881 = vld [vmem:[%s4 + $0xb0] sm:$0xff]
    %v1882 = vld [vmem:[%s4 + $0xb8] sm:$0xff]
    %v1883 = vld [vmem:[%s5 + $0x13] sm:$0x1]
    %v1884 = vperm.slane %v1883, 0
    %v1886 = vsel %vm208, %v1877, 0
    %v1889 = vsel %vm208, %v1878, 0
    %1891 = vmatpush.msra.mxu0 0.0
    %1892 = vmatpush.msra.mxu0 0.0
    %1893 = vmatpush.msra.mxu0 0.0
    %1894 = vmatpush.msra.mxu0 0.0
    %1895 = vmatpush.msra.mxu0 0.0
    %1896 = vmatpush.msra.mxu0 0.0
    %1897 = vmatpush.msra.mxu0 0.0
    %1898 = vmatpush.msra.mxu0 0.0
    %1899 = vmatpush.msra.mxu0 0.0
    %1900 = vmatpush.msra.mxu0 0.0
    %1901 = vmatpush.msra.mxu0 0.0
    %1902 = vmatpush.msra.mxu0 0.0
    %1903 = vmatpush.msra.mxu0 %v1882
    %1904 = vmatpush.msra.mxu0 %v1881
    %1905 = vmatpush.msra.mxu0 %v1880
    %1906 = vmatpush.msra.mxu0 %v1879
    %1907 = vmatmul.f32.gmra.mxu0 %v1886
    %v1908 = vpop.f32.mrf.mxu0
    %v1909 = vadd.f32 %v1884, %v1908
    %1910 = vmatmul.f32.gmra.mxu0 %v1889
    %v1911 = vpop.f32.mrf.mxu0
    %v1912 = vadd.f32 %v1884, %v1911
    %1913 = vdwg.mxu0
    %v1914 = vadd.f32 %v1595, %v1909
    %v1915 = vadd.f32 %v1596, %v1912
    %v1916 = vsel %vm208, %v1914, 0.0
    %1917 = vadd.xlane.f32.xlu0 %v1916
    %v1918 = vpop.xlane.xlu0 %1917
    %v1919 = vsel %vm208, %v1915, 0.0
    %1920 = vadd.xlane.f32.xlu0 %v1919
    %v1921 = vpop.xlane.xlu0 %1920
    %v1922 = vmul.f32 %v1918, %v562
    %v1923 = vmul.f32 %v1921, %v562
    %v1924 = vsub.f32 %v1914, %v1922
    %v1925 = vsub.f32 %v1915, %v1923
    %v1926 = vmul.f32 %v1924, %v1924
    %v1927 = vmul.f32 %v1925, %v1925
    %v1928 = vsel %vm208, %v1926, 0.0
    %1929 = vadd.xlane.f32.xlu0 %v1928
    %v1930 = vpop.xlane.xlu0 %1929
    %v1931 = vsel %vm208, %v1927, 0.0
    %1932 = vadd.xlane.f32.xlu0 %v1931
    %v1933 = vpop.xlane.xlu0 %1932
    %v1934 = vmul.f32 %v1930, %v562
    %v1935 = vmul.f32 %v1933, %v562
    %v1936 = vadd.f32 %v1934, 1e-05
    %v1937 = vadd.f32 %v1935, 1e-05
    %v1938 = vrsqrt.pop %v1936
    %v1939 = vmul.f32 %v1938, %v1936
    %v1940 = vmul.f32 %v1939, %v1938
    %v1941 = vmul.f32 0.5, %v1940
    %v1942 = vsub.f32 1.5, %v1941
    %v1943 = vmul.f32 %v1938, %v1942
    %vm1944 = vweird.f32 %v1936
    %vm1945 = vweird.f32 %v1938
    %vm1946 = vmor %vm1944, %vm1945
    %v1947 = vsel %vm1946, %v1938, %v1943
    %v1948 = vrsqrt.pop %v1937
    %v1949 = vmul.f32 %v1948, %v1937
    %v1950 = vmul.f32 %v1949, %v1948
    %v1951 = vmul.f32 0.5, %v1950
    %v1952 = vsub.f32 1.5, %v1951
    %v1953 = vmul.f32 %v1948, %v1952
    %vm1954 = vweird.f32 %v1937
    %vm1955 = vweird.f32 %v1948
    %vm1956 = vmor %vm1954, %vm1955
    %v1957 = vsel %vm1956, %v1948, %v1953
    %v1958 = vmul.f32 %v1924, %v1947
    %v1959 = vmul.f32 %v1925, %v1957
    %v1960 = vld [vmem:[%s5 + $0x18] sm:$0x1]
    %v1961 = vperm.slane %v1960, 0
    %v1962 = vmul.f32 %v1958, %v1961
    %v1963 = vmul.f32 %v1959, %v1961
    %v1964 = vld [vmem:[%s5 + $0x19] sm:$0x1]
    %v1965 = vperm.slane %v1964, 0
    %v1966 = vadd.f32 %v1962, %v1965
    %v1967 = vadd.f32 %v1963, %v1965
    %v1968 = vld [vmem:[%s3 + $0x40] sm:$0xff]
    %v1969 = vld [vmem:[%s3 + $0x48] sm:$0xff]
    %v1970 = vld [vmem:[%s3 + $0x50] sm:$0xff]
    %v1971 = vld [vmem:[%s3 + $0x58] sm:$0xff]
    %v1972 = vld [vmem:[%s5 + $0x14] sm:$0x1]
    %v1973 = vperm.slane %v1972, 0
    %v1975 = vsel %vm208, %v1966, 0
    %v1978 = vsel %vm208, %v1967, 0
    %1980 = vmatpush.msra.mxu0 0.0
    %1981 = vmatpush.msra.mxu0 0.0
    %1982 = vmatpush.msra.mxu0 0.0
    %1983 = vmatpush.msra.mxu0 0.0
    %1984 = vmatpush.msra.mxu0 0.0
    %1985 = vmatpush.msra.mxu0 0.0
    %1986 = vmatpush.msra.mxu0 0.0
    %1987 = vmatpush.msra.mxu0 0.0
    %1988 = vmatpush.msra.mxu0 0.0
    %1989 = vmatpush.msra.mxu0 0.0
    %1990 = vmatpush.msra.mxu0 0.0
    %1991 = vmatpush.msra.mxu0 0.0
    %1992 = vmatpush.msra.mxu0 %v1971
    %1993 = vmatpush.msra.mxu0 %v1970
    %1994 = vmatpush.msra.mxu0 %v1969
    %1995 = vmatpush.msra.mxu0 %v1968
    %1996 = vmatmul.f32.gmra.mxu0 %v1975
    %v1997 = vpop.f32.mrf.mxu0
    %v1998 = vadd.f32 %v1973, %v1997
    %1999 = vmatmul.f32.gmra.mxu0 %v1978
    %v2000 = vpop.f32.mrf.mxu0
    %v2001 = vadd.f32 %v1973, %v2000
    %2002 = vdwg.mxu0
    %v2003 = vmax.f32 %v1998, 0.0
    %v2004 = vmax.f32 %v2001, 0.0
    %v2005 = vld [vmem:[%s4 + $0x180] sm:$0xff]
    %v2006 = vld [vmem:[%s4 + $0x188] sm:$0xff]
    %v2007 = vld [vmem:[%s4 + $0x190] sm:$0xff]
    %v2008 = vld [vmem:[%s4 + $0x198] sm:$0xff]
    %v2009 = vld [vmem:[%s4 + $0x1a0] sm:$0xff]
    %v2010 = vld [vmem:[%s4 + $0x1a8] sm:$0xff]
    %v2011 = vld [vmem:[%s4 + $0x1b0] sm:$0xff]
    %v2012 = vld [vmem:[%s4 + $0x1b8] sm:$0xff]
    %v2013 = vld [vmem:[%s5 + $0x15] sm:$0x1]
    %v2014 = vperm.slane %v2013, 0
    %v2016 = vsel %vm160, %v2003, 0
    %v2019 = vsel %vm160, %v2004, 0
    %2021 = vmatpush.msra.mxu0 0.0
    %2022 = vmatpush.msra.mxu0 0.0
    %2023 = vmatpush.msra.mxu0 0.0
    %2024 = vmatpush.msra.mxu0 0.0
    %2025 = vmatpush.msra.mxu0 0.0
    %2026 = vmatpush.msra.mxu0 0.0
    %2027 = vmatpush.msra.mxu0 0.0
    %2028 = vmatpush.msra.mxu0 0.0
    %2029 = vmatpush.msra.mxu0 %v2012
    %2030 = vmatpush.msra.mxu0 %v2011
    %2031 = vmatpush.msra.mxu0 %v2010
    %2032 = vmatpush.msra.mxu0 %v2009
    %2033 = vmatpush.msra.mxu0 %v2008
    %2034 = vmatpush.msra.mxu0 %v2007
    %2035 = vmatpush.msra.mxu0 %v2006
    %2036 = vmatpush.msra.mxu0 %v2005
    %2037 = vmatmul.f32.gmra.mxu0 %v2016
    %v2038 = vpop.f32.mrf.mxu0
    %v2039 = vadd.f32 %v2014, %v2038
    %2040 = vmatmul.f32.gmra.mxu0 %v2019
    %v2041 = vpop.f32.mrf.mxu0
    %v2042 = vadd.f32 %v2014, %v2041
    %2043 = vdwg.mxu0
    %v2044 = vadd.f32 %v1966, %v2039
    %v2045 = vadd.f32 %v1967, %v2042
    %v2046 = vsel %vm208, %v2044, 0.0
    %2047 = vadd.xlane.f32.xlu0 %v2046
    %v2048 = vpop.xlane.xlu0 %2047
    %v2049 = vsel %vm208, %v2045, 0.0
    %2050 = vadd.xlane.f32.xlu0 %v2049
    %v2051 = vpop.xlane.xlu0 %2050
    %v2052 = vmul.f32 %v2048, %v562
    %v2053 = vmul.f32 %v2051, %v562
    %v2054 = vsub.f32 %v2044, %v2052
    %v2055 = vsub.f32 %v2045, %v2053
    %v2056 = vmul.f32 %v2054, %v2054
    %v2057 = vmul.f32 %v2055, %v2055
    %v2058 = vsel %vm208, %v2056, 0.0
    %2059 = vadd.xlane.f32.xlu0 %v2058
    %v2060 = vpop.xlane.xlu0 %2059
    %v2061 = vsel %vm208, %v2057, 0.0
    %2062 = vadd.xlane.f32.xlu0 %v2061
    %v2063 = vpop.xlane.xlu0 %2062
    %v2064 = vmul.f32 %v2060, %v562
    %v2065 = vmul.f32 %v2063, %v562
    %v2066 = vadd.f32 %v2064, 1e-05
    %v2067 = vadd.f32 %v2065, 1e-05
    %v2068 = vrsqrt.pop %v2066
    %v2069 = vmul.f32 %v2068, %v2066
    %v2070 = vmul.f32 %v2069, %v2068
    %v2071 = vmul.f32 0.5, %v2070
    %v2072 = vsub.f32 1.5, %v2071
    %v2073 = vmul.f32 %v2068, %v2072
    %vm2074 = vweird.f32 %v2066
    %vm2075 = vweird.f32 %v2068
    %vm2076 = vmor %vm2074, %vm2075
    %v2077 = vsel %vm2076, %v2068, %v2073
    %v2078 = vrsqrt.pop %v2067
    %v2079 = vmul.f32 %v2078, %v2067
    %v2080 = vmul.f32 %v2079, %v2078
    %v2081 = vmul.f32 0.5, %v2080
    %v2082 = vsub.f32 1.5, %v2081
    %v2083 = vmul.f32 %v2078, %v2082
    %vm2084 = vweird.f32 %v2067
    %vm2085 = vweird.f32 %v2078
    %vm2086 = vmor %vm2084, %vm2085
    %v2087 = vsel %vm2086, %v2078, %v2083
    %v2088 = vmul.f32 %v2054, %v2077
    %v2089 = vmul.f32 %v2055, %v2087
    %v2090 = vld [vmem:[%s5 + $0x1a] sm:$0x1]
    %v2091 = vperm.slane %v2090, 0
    %v2092 = vmul.f32 %v2088, %v2091
    %v2093 = vmul.f32 %v2089, %v2091
    %v2094 = vld [vmem:[%s5 + $0x1b] sm:$0x1]
    %v2095 = vperm.slane %v2094, 0
    %v2096 = vadd.f32 %v2092, %v2095
    %v2097 = vadd.f32 %v2093, %v2095
    %v2098 = vld [vmem:[%s2 + $0x80] sm:$0xff]
    %v2099 = vld [vmem:[%s2 + $0x88] sm:$0xff]
    %v2100 = vld [vmem:[%s2 + $0x90] sm:$0xff]
    %v2101 = vld [vmem:[%s2 + $0x98] sm:$0xff]
    %v2102 = vld [vmem:[%s5 + $0x1c] sm:$0x1]
    %v2103 = vperm.slane %v2102, 0
    %v2105 = vsel %vm208, %v2096, 0
    %v2108 = vsel %vm208, %v2097, 0
    %2110 = vmatpush.msra.mxu0 0.0
    %2111 = vmatpush.msra.mxu0 0.0
    %2112 = vmatpush.msra.mxu0 0.0
    %2113 = vmatpush.msra.mxu0 0.0
    %2114 = vmatpush.msra.mxu0 0.0
    %2115 = vmatpush.msra.mxu0 0.0
    %2116 = vmatpush.msra.mxu0 0.0
    %2117 = vmatpush.msra.mxu0 0.0
    %2118 = vmatpush.msra.mxu0 0.0
    %2119 = vmatpush.msra.mxu0 0.0
    %2120 = vmatpush.msra.mxu0 0.0
    %2121 = vmatpush.msra.mxu0 0.0
    %2122 = vmatpush.msra.mxu0 %v2101
    %2123 = vmatpush.msra.mxu0 %v2100
    %2124 = vmatpush.msra.mxu0 %v2099
    %2125 = vmatpush.msra.mxu0 %v2098
    %2126 = vmatmul.f32.gmra.mxu0 %v2105
    %v2127 = vpop.f32.mrf.mxu0
    %v2128 = vadd.f32 %v2103, %v2127
    %2129 = vmatmul.f32.gmra.mxu0 %v2108
    %v2130 = vpop.f32.mrf.mxu0
    %v2131 = vadd.f32 %v2103, %v2130
    %2132 = vdwg.mxu0
    %v2133 = vmul.f32 %v2128, %v247
    %v2134 = vmul.f32 %v2131, %v249
    %v2135 = vmul.f32 %v2128, %v251
    %v2136 = vmul.f32 %v2131, %v253
    %v2137 = vmul.f32 %v2128, %v255
    %v2138 = vmul.f32 %v2131, %v257
    %v2139 = vmul.f32 %v2128, %v259
    %v2140 = vmul.f32 %v2131, %v261
    %v2141 = vmul.f32 %v2128, %v279
    %v2142 = vmul.f32 %v2131, %v281
    %v2143 = vmul.f32 %v2128, %v283
    %v2144 = vmul.f32 %v2131, %v285
    %v2145 = vmul.f32 %v2128, %v287
    %v2146 = vmul.f32 %v2131, %v289
    %v2147 = vmul.f32 %v2128, %v291
    %v2148 = vmul.f32 %v2131, %v293
    %2157 = vrot.lane.b32.xlu0 %v2133, 96
    %v2158 = vpop.permute.xlu0 %2157
    %2159 = vrot.lane.b32.xlu0 %v2134, 96
    %v2160 = vpop.permute.xlu0 %2159
    %2161 = vrot.lane.b32.xlu0 %v2135, 96
    %v2162 = vpop.permute.xlu0 %2161
    %2163 = vrot.lane.b32.xlu0 %v2136, 96
    %v2164 = vpop.permute.xlu0 %2163
    %2165 = vrot.lane.b32.xlu0 %v2137, 96
    %v2166 = vpop.permute.xlu0 %2165
    %2167 = vrot.lane.b32.xlu0 %v2138, 96
    %v2168 = vpop.permute.xlu0 %2167
    %2169 = vrot.lane.b32.xlu0 %v2139, 96
    %v2170 = vpop.permute.xlu0 %2169
    %2171 = vrot.lane.b32.xlu0 %v2140, 96
    %v2172 = vpop.permute.xlu0 %2171
    %v2174 = vsel %vm208, %v2128, 0
    %v2177 = vsel %vm208, %v2131, 0
    %v2179 = vsel %vm208, %v2158, 0
    %v2181 = vsel %vm208, %v2160, 0
    %v2183 = vsel %vm208, %v2162, 0
    %v2185 = vsel %vm208, %v2164, 0
    %v2187 = vsel %vm208, %v2166, 0
    %v2189 = vsel %vm208, %v2168, 0
    %v2191 = vsel %vm208, %v2170, 0
    %v2193 = vsel %vm208, %v2172, 0
    %2195 = vmatpush.xpose.msra.mxu0 0.0
    %2196 = vmatpush.xpose.msra.mxu0 0.0
    %2197 = vmatpush.xpose.msra.mxu0 0.0
    %2198 = vmatpush.xpose.msra.mxu0 0.0
    %2199 = vmatpush.xpose.msra.mxu0 0.0
    %2200 = vmatpush.xpose.msra.mxu0 0.0
    %2201 = vmatpush.xpose.msra.mxu0 0.0
    %2202 = vmatpush.xpose.msra.mxu0 0.0
    %2203 = vmatpush.xpose.msra.mxu0 %v2193
    %2204 = vmatpush.xpose.msra.mxu0 %v2191
    %2205 = vmatpush.xpose.msra.mxu0 %v2189
    %2206 = vmatpush.xpose.msra.mxu0 %v2187
    %2207 = vmatpush.xpose.msra.mxu0 %v2185
    %2208 = vmatpush.xpose.msra.mxu0 %v2183
    %2209 = vmatpush.xpose.msra.mxu0 %v2181
    %2210 = vmatpush.xpose.msra.mxu0 %v2179
    %2211 = vmatmul.f32.gmra.mxu0 %v2174
    %v2212 = vpop.f32.mrf.mxu0
    %v2213 = vadd.f32 %v118, %v2212
    %2214 = vmatmul.f32.gmra.mxu0 %v2177
    %v2215 = vpop.f32.mrf.mxu0
    %v2216 = vadd.f32 %v119, %v2215
    %2217 = vdwg.mxu0
    %v2218 = vsel %vm160, %v2213, -inf
    %2219 = vmax.xlane.f32.xlu0 %v2218
    %v2220 = vpop.xlane.xlu0 %2219
    %v2221 = vsel %vm160, %v2216, -inf
    %2222 = vmax.xlane.f32.xlu0 %v2221
    %v2223 = vpop.xlane.xlu0 %2222
    %v2224 = vsub.f32 %v2213, %v2220
    %v2225 = vsub.f32 %v2216, %v2223
    %v2226 = vmul.f32 %v2224, 1.442695
    %v2227 = vpow.pop %v2226
    %v2228 = vmul.f32 %v2225, 1.442695
    %v2229 = vpow.pop %v2228
    %v2231 = vsel %vm160, %v2227, 0
    %v2234 = vsel %vm160, %v2229, 0
    %2236 = vmatpush.msra.mxu0 0.0
    %2237 = vmatpush.msra.mxu0 0.0
    %2238 = vmatpush.msra.mxu0 0.0
    %2239 = vmatpush.msra.mxu0 0.0
    %2240 = vmatpush.msra.mxu0 0.0
    %2241 = vmatpush.msra.mxu0 0.0
    %2242 = vmatpush.msra.mxu0 0.0
    %2243 = vmatpush.msra.mxu0 0.0
    %2244 = vmatpush.msra.mxu0 %v91
    %2245 = vmatpush.msra.mxu0 %v90
    %2246 = vmatpush.msra.mxu0 %v89
    %2247 = vmatpush.msra.mxu0 %v88
    %2248 = vmatpush.msra.mxu0 %v87
    %2249 = vmatpush.msra.mxu0 %v86
    %2250 = vmatpush.msra.mxu0 %v85
    %2251 = vmatpush.msra.mxu0 %v84
    %2252 = vmatmul.f32.gmra.mxu0 %v2231
    %v2253 = vpop.f32.mrf.mxu0
    %v2254 = vadd.f32 0.0, %v2253
    %2255 = vmatmul.f32.gmra.mxu0 %v2234
    %v2256 = vpop.f32.mrf.mxu0
    %v2257 = vadd.f32 0.0, %v2256
    %2258 = vdwg.mxu0
    %2267 = vrot.lane.b32.xlu0 %v2141, 64
    %v2268 = vpop.permute.xlu0 %2267
    %2269 = vrot.lane.b32.xlu0 %v2142, 64
    %v2270 = vpop.permute.xlu0 %2269
    %2271 = vrot.lane.b32.xlu0 %v2143, 64
    %v2272 = vpop.permute.xlu0 %2271
    %2273 = vrot.lane.b32.xlu0 %v2144, 64
    %v2274 = vpop.permute.xlu0 %2273
    %2275 = vrot.lane.b32.xlu0 %v2145, 64
    %v2276 = vpop.permute.xlu0 %2275
    %2277 = vrot.lane.b32.xlu0 %v2146, 64
    %v2278 = vpop.permute.xlu0 %2277
    %2279 = vrot.lane.b32.xlu0 %v2147, 64
    %v2280 = vpop.permute.xlu0 %2279
    %2281 = vrot.lane.b32.xlu0 %v2148, 64
    %v2282 = vpop.permute.xlu0 %2281
    %2291 = vmatpush.msra.mxu0 0.0
    %2292 = vmatpush.msra.mxu0 0.0
    %2293 = vmatpush.msra.mxu0 0.0
    %2294 = vmatpush.msra.mxu0 0.0
    %2295 = vmatpush.msra.mxu0 0.0
    %2296 = vmatpush.msra.mxu0 0.0
    %2297 = vmatpush.msra.mxu0 0.0
    %2298 = vmatpush.msra.mxu0 0.0
    %2299 = vmatpush.msra.mxu0 %v2282
    %2300 = vmatpush.msra.mxu0 %v2280
    %2301 = vmatpush.msra.mxu0 %v2278
    %2302 = vmatpush.msra.mxu0 %v2276
    %2303 = vmatpush.msra.mxu0 %v2274
    %2304 = vmatpush.msra.mxu0 %v2272
    %2305 = vmatpush.msra.mxu0 %v2270
    %2306 = vmatpush.msra.mxu0 %v2268
    %2307 = vmatmul.f32.gmra.mxu0 %v2231
    %v2308 = vpop.f32.mrf.mxu0
    %v2309 = vadd.f32 0.0, %v2308
    %2310 = vmatmul.f32.gmra.mxu0 %v2234
    %v2311 = vpop.f32.mrf.mxu0
    %v2312 = vadd.f32 0.0, %v2311
    %2313 = vdwg.mxu0
    %v2315 = vsel %vm475, %v2254, 0
    %v2318 = vsel %vm475, %v2257, 0
    %2320 = vmatpush.msra.mxu0 0.0
    %2321 = vmatpush.msra.mxu0 0.0
    %2322 = vmatpush.msra.mxu0 0.0
    %2323 = vmatpush.msra.mxu0 0.0
    %2324 = vmatpush.msra.mxu0 0.0
    %2325 = vmatpush.msra.mxu0 0.0
    %2326 = vmatpush.msra.mxu0 0.0
    %2327 = vmatpush.msra.mxu0 0.0
    %2328 = vmatpush.msra.mxu0 0.0
    %2329 = vmatpush.msra.mxu0 0.0
    %2330 = vmatpush.msra.mxu0 0.0
    %2331 = vmatpush.msra.mxu0 0.0
    %2332 = vmatpush.msra.mxu0 0.0
    %2333 = vmatpush.msra.mxu0 0.0
    %2334 = vmatpush.msra.mxu0 0.0
    %2335 = vmatpush.msra.mxu0 %v484
    %2336 = vmatmul.f32.gmra.mxu0 %v2315
    %v2337 = vpop.f32.mrf.mxu0
    %v2338 = vadd.f32 0.0, %v2337
    %2339 = vmatmul.f32.gmra.mxu0 %v2318
    %v2340 = vpop.f32.mrf.mxu0
    %v2341 = vadd.f32 0.0, %v2340
    %2342 = vdwg.mxu0
    %v2343 = vrcp.pop %v2338
    %v2344 = vrcp.pop %v2341
    %v2345 = vmul.f32 %v2309, %v2343
    %v2346 = vmul.f32 %v2312, %v2344
    %v2347 = vld [vmem:[%s4 + $0xc0] sm:$0xff]
    %v2348 = vld [vmem:[%s4 + $0xc8] sm:$0xff]
    %v2349 = vld [vmem:[%s4 + $0xd0] sm:$0xff]
    %v2350 = vld [vmem:[%s4 + $0xd8] sm:$0xff]
    %v2351 = vld [vmem:[%s5 + $0x1d] sm:$0x1]
    %v2352 = vperm.slane %v2351, 0
    %v2354 = vsel %vm208, %v2345, 0
    %v2357 = vsel %vm208, %v2346, 0
    %2359 = vmatpush.msra.mxu0 0.0
    %2360 = vmatpush.msra.mxu0 0.0
    %2361 = vmatpush.msra.mxu0 0.0
    %2362 = vmatpush.msra.mxu0 0.0
    %2363 = vmatpush.msra.mxu0 0.0
    %2364 = vmatpush.msra.mxu0 0.0
    %2365 = vmatpush.msra.mxu0 0.0
    %2366 = vmatpush.msra.mxu0 0.0
    %2367 = vmatpush.msra.mxu0 0.0
    %2368 = vmatpush.msra.mxu0 0.0
    %2369 = vmatpush.msra.mxu0 0.0
    %2370 = vmatpush.msra.mxu0 0.0
    %2371 = vmatpush.msra.mxu0 %v2350
    %2372 = vmatpush.msra.mxu0 %v2349
    %2373 = vmatpush.msra.mxu0 %v2348
    %2374 = vmatpush.msra.mxu0 %v2347
    %2375 = vmatmul.f32.gmra.mxu0 %v2354
    %v2376 = vpop.f32.mrf.mxu0
    %v2377 = vadd.f32 %v2352, %v2376
    %2378 = vmatmul.f32.gmra.mxu0 %v2357
    %v2379 = vpop.f32.mrf.mxu0
    %v2380 = vadd.f32 %v2352, %v2379
    %2381 = vdwg.mxu0
    %v2382 = vadd.f32 %v2096, %v2377
    %v2383 = vadd.f32 %v2097, %v2380
    %v2384 = vsel %vm208, %v2382, 0.0
    %2385 = vadd.xlane.f32.xlu0 %v2384
    %v2386 = vpop.xlane.xlu0 %2385
    %v2387 = vsel %vm208, %v2383, 0.0
    %2388 = vadd.xlane.f32.xlu0 %v2387
    %v2389 = vpop.xlane.xlu0 %2388
    %v2390 = vmul.f32 %v2386, %v562
    %v2391 = vmul.f32 %v2389, %v562
    %v2392 = vsub.f32 %v2382, %v2390
    %v2393 = vsub.f32 %v2383, %v2391
    %v2394 = vmul.f32 %v2392, %v2392
    %v2395 = vmul.f32 %v2393, %v2393
    %v2396 = vsel %vm208, %v2394, 0.0
    %2397 = vadd.xlane.f32.xlu0 %v2396
    %v2398 = vpop.xlane.xlu0 %2397
    %v2399 = vsel %vm208, %v2395, 0.0
    %2400 = vadd.xlane.f32.xlu0 %v2399
    %v2401 = vpop.xlane.xlu0 %2400
    %v2402 = vmul.f32 %v2398, %v562
    %v2403 = vmul.f32 %v2401, %v562
    %v2404 = vadd.f32 %v2402, 1e-05
    %v2405 = vadd.f32 %v2403, 1e-05
    %v2406 = vrsqrt.pop %v2404
    %v2407 = vmul.f32 %v2406, %v2404
    %v2408 = vmul.f32 %v2407, %v2406
    %v2409 = vmul.f32 0.5, %v2408
    %v2410 = vsub.f32 1.5, %v2409
    %v2411 = vmul.f32 %v2406, %v2410
    %vm2412 = vweird.f32 %v2404
    %vm2413 = vweird.f32 %v2406
    %vm2414 = vmor %vm2412, %vm2413
    %v2415 = vsel %vm2414, %v2406, %v2411
    %v2416 = vrsqrt.pop %v2405
    %v2417 = vmul.f32 %v2416, %v2405
    %v2418 = vmul.f32 %v2417, %v2416
    %v2419 = vmul.f32 0.5, %v2418
    %v2420 = vsub.f32 1.5, %v2419
    %v2421 = vmul.f32 %v2416, %v2420
    %vm2422 = vweird.f32 %v2405
    %vm2423 = vweird.f32 %v2416
    %vm2424 = vmor %vm2422, %vm2423
    %v2425 = vsel %vm2424, %v2416, %v2421
    %v2426 = vmul.f32 %v2392, %v2415
    %v2427 = vmul.f32 %v2393, %v2425
    %v2428 = vld [vmem:[%s5 + $0x22] sm:$0x1]
    %v2429 = vperm.slane %v2428, 0
    %v2430 = vmul.f32 %v2426, %v2429
    %v2431 = vmul.f32 %v2427, %v2429
    %v2432 = vld [vmem:[%s5 + $0x23] sm:$0x1]
    %v2433 = vperm.slane %v2432, 0
    %v2434 = vadd.f32 %v2430, %v2433
    %v2435 = vadd.f32 %v2431, %v2433
    %v2436 = vld [vmem:[%s5 + $0x1e] sm:$0x1]
    %v2437 = vld [vmem:[%s2 + $0xa0] sm:$0xff]
    %v2438 = vld [vmem:[%s2 + $0xa8] sm:$0xff]
    %v2439 = vld [vmem:[%s2 + $0xb0] sm:$0xff]
    %v2440 = vld [vmem:[%s2 + $0xb8] sm:$0xff]
    %v2441 = vperm.slane %v2436, 0
    %v2443 = vsel %vm208, %v2434, 0
    %v2446 = vsel %vm208, %v2435, 0
    %2448 = vmatpush.msra.mxu0 0.0
    %2449 = vmatpush.msra.mxu0 0.0
    %2450 = vmatpush.msra.mxu0 0.0
    %2451 = vmatpush.msra.mxu0 0.0
    %2452 = vmatpush.msra.mxu0 0.0
    %2453 = vmatpush.msra.mxu0 0.0
    %2454 = vmatpush.msra.mxu0 0.0
    %2455 = vmatpush.msra.mxu0 0.0
    %2456 = vmatpush.msra.mxu0 0.0
    %2457 = vmatpush.msra.mxu0 0.0
    %2458 = vmatpush.msra.mxu0 0.0
    %2459 = vmatpush.msra.mxu0 0.0
    %2460 = vmatpush.msra.mxu0 %v2440
    %2461 = vmatpush.msra.mxu0 %v2439
    %2462 = vmatpush.msra.mxu0 %v2438
    %2463 = vmatpush.msra.mxu0 %v2437
    %2464 = vmatmul.f32.gmra.mxu0 %v2443
    %v2465 = vpop.f32.mrf.mxu0
    %v2466 = vadd.f32 %v2441, %v2465
    %2467 = vmatmul.f32.gmra.mxu0 %v2446
    %v2468 = vpop.f32.mrf.mxu0
    %v2469 = vadd.f32 %v2441, %v2468
    %2470 = vdwg.mxu0
    %2475 = vrot.lane.b32.xlu0 %v2437, 96
    %v2476 = vpop.permute.xlu0 %2475
    %2477 = vrot.lane.b32.xlu0 %v2438, 96
    %v2478 = vpop.permute.xlu0 %2477
    %2479 = vrot.lane.b32.xlu0 %v2439, 96
    %v2480 = vpop.permute.xlu0 %2479
    %2481 = vrot.lane.b32.xlu0 %v2440, 96
    %v2482 = vpop.permute.xlu0 %2481
    %2488 = vrot.lane.b32.xlu0 %v2441, 96
    %v2489 = vpop.permute.xlu0 %2488
    %2491 = vmatpush.msra.mxu0 0.0
    %2492 = vmatpush.msra.mxu0 0.0
    %2493 = vmatpush.msra.mxu0 0.0
    %2494 = vmatpush.msra.mxu0 0.0
    %2495 = vmatpush.msra.mxu0 0.0
    %2496 = vmatpush.msra.mxu0 0.0
    %2497 = vmatpush.msra.mxu0 0.0
    %2498 = vmatpush.msra.mxu0 0.0
    %2499 = vmatpush.msra.mxu0 0.0
    %2500 = vmatpush.msra.mxu0 0.0
    %2501 = vmatpush.msra.mxu0 0.0
    %2502 = vmatpush.msra.mxu0 0.0
    %2503 = vmatpush.msra.mxu0 %v2482
    %2504 = vmatpush.msra.mxu0 %v2480
    %2505 = vmatpush.msra.mxu0 %v2478
    %2506 = vmatpush.msra.mxu0 %v2476
    %2507 = vmatmul.f32.gmra.mxu0 %v1653
    %v2508 = vpop.f32.mrf.mxu0
    %v2509 = vadd.f32 %v2489, %v2508
    %2510 = vmatmul.f32.gmra.mxu0 %v1656
    %v2511 = vpop.f32.mrf.mxu0
    %v2512 = vadd.f32 %v2489, %v2511
    %2513 = vdwg.mxu0
    %v2514 = vmul.f32 %v2509, %v60
    %v2515 = vmul.f32 %v2512, %v61
    %v2516 = vmul.f32 %v2509, %v62
    %v2517 = vmul.f32 %v2512, %v63
    %v2518 = vmul.f32 %v2509, %v64
    %v2519 = vmul.f32 %v2512, %v65
    %v2520 = vmul.f32 %v2509, %v66
    %v2521 = vmul.f32 %v2512, %v67
    %v2522 = vmul.f32 %v2509, %v247
    %v2523 = vmul.f32 %v2512, %v249
    %v2524 = vmul.f32 %v2509, %v251
    %v2525 = vmul.f32 %v2512, %v253
    %v2526 = vmul.f32 %v2509, %v255
    %v2527 = vmul.f32 %v2512, %v257
    %v2528 = vmul.f32 %v2509, %v259
    %v2529 = vmul.f32 %v2512, %v261
    %v2531 = vsel %vm208, %v2466, 0
    %v2534 = vsel %vm208, %v2469, 0
    %v2537 = vsel %vm208, %v2514, 0
    %v2540 = vsel %vm208, %v2515, 0
    %v2543 = vsel %vm208, %v2516, 0
    %v2546 = vsel %vm208, %v2517, 0
    %v2549 = vsel %vm208, %v2518, 0
    %v2552 = vsel %vm208, %v2519, 0
    %v2555 = vsel %vm208, %v2520, 0
    %v2558 = vsel %vm208, %v2521, 0
    %2560 = vmatpush.xpose.msra.mxu0 0.0
    %2561 = vmatpush.xpose.msra.mxu0 0.0
    %2562 = vmatpush.xpose.msra.mxu0 0.0
    %2563 = vmatpush.xpose.msra.mxu0 0.0
    %2564 = vmatpush.xpose.msra.mxu0 0.0
    %2565 = vmatpush.xpose.msra.mxu0 0.0
    %2566 = vmatpush.xpose.msra.mxu0 0.0
    %2567 = vmatpush.xpose.msra.mxu0 0.0
    %2568 = vmatpush.xpose.msra.mxu0 %v2558
    %2569 = vmatpush.xpose.msra.mxu0 %v2555
    %2570 = vmatpush.xpose.msra.mxu0 %v2552
    %2571 = vmatpush.xpose.msra.mxu0 %v2549
    %2572 = vmatpush.xpose.msra.mxu0 %v2546
    %2573 = vmatpush.xpose.msra.mxu0 %v2543
    %2574 = vmatpush.xpose.msra.mxu0 %v2540
    %2575 = vmatpush.xpose.msra.mxu0 %v2537
    %2576 = vmatmul.f32.gmra.mxu0 %v2531
    %v2577 = vpop.f32.mrf.mxu0
    %v2578 = vadd.f32 %v110, %v2577
    %2579 = vmatmul.f32.gmra.mxu0 %v2534
    %v2580 = vpop.f32.mrf.mxu0
    %v2581 = vadd.f32 %v111, %v2580
    %2582 = vdwg.mxu0
    %v2583 = vsel %vm160, %v2578, -inf
    %2584 = vmax.xlane.f32.xlu0 %v2583
    %v2585 = vpop.xlane.xlu0 %2584
    %v2586 = vsel %vm160, %v2581, -inf
    %2587 = vmax.xlane.f32.xlu0 %v2586
    %v2588 = vpop.xlane.xlu0 %2587
    %v2589 = vsub.f32 %v2578, %v2585
    %v2590 = vsub.f32 %v2581, %v2588
    %v2591 = vmul.f32 %v2589, 1.442695
    %v2592 = vpow.pop %v2591
    %v2593 = vmul.f32 %v2590, 1.442695
    %v2594 = vpow.pop %v2593
    %v2596 = vsel %vm160, %v2592, 0
    %v2599 = vsel %vm160, %v2594, 0
    %2601 = vmatpush.msra.mxu0 0.0
    %2602 = vmatpush.msra.mxu0 0.0
    %2603 = vmatpush.msra.mxu0 0.0
    %2604 = vmatpush.msra.mxu0 0.0
    %2605 = vmatpush.msra.mxu0 0.0
    %2606 = vmatpush.msra.mxu0 0.0
    %2607 = vmatpush.msra.mxu0 0.0
    %2608 = vmatpush.msra.mxu0 0.0
    %2609 = vmatpush.msra.mxu0 %v91
    %2610 = vmatpush.msra.mxu0 %v90
    %2611 = vmatpush.msra.mxu0 %v89
    %2612 = vmatpush.msra.mxu0 %v88
    %2613 = vmatpush.msra.mxu0 %v87
    %2614 = vmatpush.msra.mxu0 %v86
    %2615 = vmatpush.msra.mxu0 %v85
    %2616 = vmatpush.msra.mxu0 %v84
    %2617 = vmatmul.f32.gmra.mxu0 %v2596
    %v2618 = vpop.f32.mrf.mxu0
    %v2619 = vadd.f32 0.0, %v2618
    %2620 = vmatmul.f32.gmra.mxu0 %v2599
    %v2621 = vpop.f32.mrf.mxu0
    %v2622 = vadd.f32 0.0, %v2621
    %2623 = vdwg.mxu0
    %2632 = vrot.lane.b32.xlu0 %v2522, 96
    %v2633 = vpop.permute.xlu0 %2632
    %2634 = vrot.lane.b32.xlu0 %v2523, 96
    %v2635 = vpop.permute.xlu0 %2634
    %2636 = vrot.lane.b32.xlu0 %v2524, 96
    %v2637 = vpop.permute.xlu0 %2636
    %2638 = vrot.lane.b32.xlu0 %v2525, 96
    %v2639 = vpop.permute.xlu0 %2638
    %2640 = vrot.lane.b32.xlu0 %v2526, 96
    %v2641 = vpop.permute.xlu0 %2640
    %2642 = vrot.lane.b32.xlu0 %v2527, 96
    %v2643 = vpop.permute.xlu0 %2642
    %2644 = vrot.lane.b32.xlu0 %v2528, 96
    %v2645 = vpop.permute.xlu0 %2644
    %2646 = vrot.lane.b32.xlu0 %v2529, 96
    %v2647 = vpop.permute.xlu0 %2646
    %2656 = vmatpush.msra.mxu0 0.0
    %2657 = vmatpush.msra.mxu0 0.0
    %2658 = vmatpush.msra.mxu0 0.0
    %2659 = vmatpush.msra.mxu0 0.0
    %2660 = vmatpush.msra.mxu0 0.0
    %2661 = vmatpush.msra.mxu0 0.0
    %2662 = vmatpush.msra.mxu0 0.0
    %2663 = vmatpush.msra.mxu0 0.0
    %2664 = vmatpush.msra.mxu0 %v2647
    %2665 = vmatpush.msra.mxu0 %v2645
    %2666 = vmatpush.msra.mxu0 %v2643
    %2667 = vmatpush.msra.mxu0 %v2641
    %2668 = vmatpush.msra.mxu0 %v2639
    %2669 = vmatpush.msra.mxu0 %v2637
    %2670 = vmatpush.msra.mxu0 %v2635
    %2671 = vmatpush.msra.mxu0 %v2633
    %2672 = vmatmul.f32.gmra.mxu0 %v2596
    %v2673 = vpop.f32.mrf.mxu0
    %v2674 = vadd.f32 0.0, %v2673
    %2675 = vmatmul.f32.gmra.mxu0 %v2599
    %v2676 = vpop.f32.mrf.mxu0
    %v2677 = vadd.f32 0.0, %v2676
    %2678 = vdwg.mxu0
    %v2680 = vsel %vm475, %v2619, 0
    %v2683 = vsel %vm475, %v2622, 0
    %2685 = vmatpush.msra.mxu0 0.0
    %2686 = vmatpush.msra.mxu0 0.0
    %2687 = vmatpush.msra.mxu0 0.0
    %2688 = vmatpush.msra.mxu0 0.0
    %2689 = vmatpush.msra.mxu0 0.0
    %2690 = vmatpush.msra.mxu0 0.0
    %2691 = vmatpush.msra.mxu0 0.0
    %2692 = vmatpush.msra.mxu0 0.0
    %2693 = vmatpush.msra.mxu0 0.0
    %2694 = vmatpush.msra.mxu0 0.0
    %2695 = vmatpush.msra.mxu0 0.0
    %2696 = vmatpush.msra.mxu0 0.0
    %2697 = vmatpush.msra.mxu0 0.0
    %2698 = vmatpush.msra.mxu0 0.0
    %2699 = vmatpush.msra.mxu0 0.0
    %2700 = vmatpush.msra.mxu0 %v484
    %2701 = vmatmul.f32.gmra.mxu0 %v2680
    %v2702 = vpop.f32.mrf.mxu0
    %v2703 = vadd.f32 0.0, %v2702
    %2704 = vmatmul.f32.gmra.mxu0 %v2683
    %v2705 = vpop.f32.mrf.mxu0
    %v2706 = vadd.f32 0.0, %v2705
    %2707 = vdwg.mxu0
    %v2708 = vrcp.pop %v2703
    %v2709 = vrcp.pop %v2706
    %v2710 = vmul.f32 %v2674, %v2708
    %v2711 = vmul.f32 %v2677, %v2709
    %v2712 = vld [vmem:[%s4 + $0xe0] sm:$0xff]
    %v2713 = vld [vmem:[%s4 + $0xe8] sm:$0xff]
    %v2714 = vld [vmem:[%s4 + $0xf0] sm:$0xff]
    %v2715 = vld [vmem:[%s4 + $0xf8] sm:$0xff]
    %v2716 = vld [vmem:[%s5 + $0x1f] sm:$0x1]
    %v2717 = vperm.slane %v2716, 0
    %v2719 = vsel %vm208, %v2710, 0
    %v2722 = vsel %vm208, %v2711, 0
    %2724 = vmatpush.msra.mxu0 0.0
    %2725 = vmatpush.msra.mxu0 0.0
    %2726 = vmatpush.msra.mxu0 0.0
    %2727 = vmatpush.msra.mxu0 0.0
    %2728 = vmatpush.msra.mxu0 0.0
    %2729 = vmatpush.msra.mxu0 0.0
    %2730 = vmatpush.msra.mxu0 0.0
    %2731 = vmatpush.msra.mxu0 0.0
    %2732 = vmatpush.msra.mxu0 0.0
    %2733 = vmatpush.msra.mxu0 0.0
    %2734 = vmatpush.msra.mxu0 0.0
    %2735 = vmatpush.msra.mxu0 0.0
    %2736 = vmatpush.msra.mxu0 %v2715
    %2737 = vmatpush.msra.mxu0 %v2714
    %2738 = vmatpush.msra.mxu0 %v2713
    %2739 = vmatpush.msra.mxu0 %v2712
    %2740 = vmatmul.f32.gmra.mxu0 %v2719
    %v2741 = vpop.f32.mrf.mxu0
    %v2742 = vadd.f32 %v2717, %v2741
    %2743 = vmatmul.f32.gmra.mxu0 %v2722
    %v2744 = vpop.f32.mrf.mxu0
    %v2745 = vadd.f32 %v2717, %v2744
    %2746 = vdwg.mxu0
    %v2747 = vadd.f32 %v2434, %v2742
    %v2748 = vadd.f32 %v2435, %v2745
    %v2749 = vsel %vm208, %v2747, 0.0
    %2750 = vadd.xlane.f32.xlu0 %v2749
    %v2751 = vpop.xlane.xlu0 %2750
    %v2752 = vsel %vm208, %v2748, 0.0
    %2753 = vadd.xlane.f32.xlu0 %v2752
    %v2754 = vpop.xlane.xlu0 %2753
    %v2755 = vmul.f32 %v2751, %v562
    %v2756 = vmul.f32 %v2754, %v562
    %v2757 = vsub.f32 %v2747, %v2755
    %v2758 = vsub.f32 %v2748, %v2756
    %v2759 = vmul.f32 %v2757, %v2757
    %v2760 = vmul.f32 %v2758, %v2758
    %v2761 = vsel %vm208, %v2759, 0.0
    %2762 = vadd.xlane.f32.xlu0 %v2761
    %v2763 = vpop.xlane.xlu0 %2762
    %v2764 = vsel %vm208, %v2760, 0.0
    %2765 = vadd.xlane.f32.xlu0 %v2764
    %v2766 = vpop.xlane.xlu0 %2765
    %v2767 = vmul.f32 %v2763, %v562
    %v2768 = vmul.f32 %v2766, %v562
    %v2769 = vadd.f32 %v2767, 1e-05
    %v2770 = vadd.f32 %v2768, 1e-05
    %v2771 = vrsqrt.pop %v2769
    %v2772 = vmul.f32 %v2771, %v2769
    %v2773 = vmul.f32 %v2772, %v2771
    %v2774 = vmul.f32 0.5, %v2773
    %v2775 = vsub.f32 1.5, %v2774
    %v2776 = vmul.f32 %v2771, %v2775
    %vm2777 = vweird.f32 %v2769
    %vm2778 = vweird.f32 %v2771
    %vm2779 = vmor %vm2777, %vm2778
    %v2780 = vsel %vm2779, %v2771, %v2776
    %v2781 = vrsqrt.pop %v2770
    %v2782 = vmul.f32 %v2781, %v2770
    %v2783 = vmul.f32 %v2782, %v2781
    %v2784 = vmul.f32 0.5, %v2783
    %v2785 = vsub.f32 1.5, %v2784
    %v2786 = vmul.f32 %v2781, %v2785
    %vm2787 = vweird.f32 %v2770
    %vm2788 = vweird.f32 %v2781
    %vm2789 = vmor %vm2787, %vm2788
    %v2790 = vsel %vm2789, %v2781, %v2786
    %v2791 = vmul.f32 %v2757, %v2780
    %v2792 = vmul.f32 %v2758, %v2790
    %v2793 = vld [vmem:[%s5 + $0x24] sm:$0x1]
    %v2794 = vperm.slane %v2793, 0
    %v2795 = vmul.f32 %v2791, %v2794
    %v2796 = vmul.f32 %v2792, %v2794
    %v2797 = vld [vmem:[%s5 + $0x25] sm:$0x1]
    %v2798 = vperm.slane %v2797, 0
    %v2799 = vadd.f32 %v2795, %v2798
    %v2800 = vadd.f32 %v2796, %v2798
    %v2801 = vld [vmem:[%s3 + $0x60] sm:$0xff]
    %v2802 = vld [vmem:[%s3 + $0x68] sm:$0xff]
    %v2803 = vld [vmem:[%s3 + $0x70] sm:$0xff]
    %v2804 = vld [vmem:[%s3 + $0x78] sm:$0xff]
    %v2805 = vld [vmem:[%s5 + $0x20] sm:$0x1]
    %v2806 = vperm.slane %v2805, 0
    %v2808 = vsel %vm208, %v2799, 0
    %v2811 = vsel %vm208, %v2800, 0
    %2813 = vmatpush.msra.mxu0 0.0
    %2814 = vmatpush.msra.mxu0 0.0
    %2815 = vmatpush.msra.mxu0 0.0
    %2816 = vmatpush.msra.mxu0 0.0
    %2817 = vmatpush.msra.mxu0 0.0
    %2818 = vmatpush.msra.mxu0 0.0
    %2819 = vmatpush.msra.mxu0 0.0
    %2820 = vmatpush.msra.mxu0 0.0
    %2821 = vmatpush.msra.mxu0 0.0
    %2822 = vmatpush.msra.mxu0 0.0
    %2823 = vmatpush.msra.mxu0 0.0
    %2824 = vmatpush.msra.mxu0 0.0
    %2825 = vmatpush.msra.mxu0 %v2804
    %2826 = vmatpush.msra.mxu0 %v2803
    %2827 = vmatpush.msra.mxu0 %v2802
    %2828 = vmatpush.msra.mxu0 %v2801
    %2829 = vmatmul.f32.gmra.mxu0 %v2808
    %v2830 = vpop.f32.mrf.mxu0
    %v2831 = vadd.f32 %v2806, %v2830
    %2832 = vmatmul.f32.gmra.mxu0 %v2811
    %v2833 = vpop.f32.mrf.mxu0
    %v2834 = vadd.f32 %v2806, %v2833
    %2835 = vdwg.mxu0
    %v2836 = vmax.f32 %v2831, 0.0
    %v2837 = vmax.f32 %v2834, 0.0
    %v2838 = vld [vmem:[%s4 + $0x1c0] sm:$0xff]
    %v2839 = vld [vmem:[%s4 + $0x1c8] sm:$0xff]
    %v2840 = vld [vmem:[%s4 + $0x1d0] sm:$0xff]
    %v2841 = vld [vmem:[%s4 + $0x1d8] sm:$0xff]
    %v2842 = vld [vmem:[%s4 + $0x1e0] sm:$0xff]
    %v2843 = vld [vmem:[%s4 + $0x1e8] sm:$0xff]
    %v2844 = vld [vmem:[%s4 + $0x1f0] sm:$0xff]
    %v2845 = vld [vmem:[%s4 + $0x1f8] sm:$0xff]
    %v2846 = vld [vmem:[%s5 + $0x21] sm:$0x1]
    %v2847 = vperm.slane %v2846, 0
    %v2849 = vsel %vm160, %v2836, 0
    %v2852 = vsel %vm160, %v2837, 0
    %2854 = vmatpush.msra.mxu0 0.0
    %2855 = vmatpush.msra.mxu0 0.0
    %2856 = vmatpush.msra.mxu0 0.0
    %2857 = vmatpush.msra.mxu0 0.0
    %2858 = vmatpush.msra.mxu0 0.0
    %2859 = vmatpush.msra.mxu0 0.0
    %2860 = vmatpush.msra.mxu0 0.0
    %2861 = vmatpush.msra.mxu0 0.0
    %2862 = vmatpush.msra.mxu0 %v2845
    %2863 = vmatpush.msra.mxu0 %v2844
    %2864 = vmatpush.msra.mxu0 %v2843
    %2865 = vmatpush.msra.mxu0 %v2842
    %2866 = vmatpush.msra.mxu0 %v2841
    %2867 = vmatpush.msra.mxu0 %v2840
    %2868 = vmatpush.msra.mxu0 %v2839
    %2869 = vmatpush.msra.mxu0 %v2838
    %2870 = vmatmul.f32.gmra.mxu0 %v2849
    %v2871 = vpop.f32.mrf.mxu0
    %v2872 = vadd.f32 %v2847, %v2871
    %2873 = vmatmul.f32.gmra.mxu0 %v2852
    %v2874 = vpop.f32.mrf.mxu0
    %v2875 = vadd.f32 %v2847, %v2874
    %2876 = vdwg.mxu0
    %v2877 = vadd.f32 %v2799, %v2872
    %v2878 = vadd.f32 %v2800, %v2875
    %v2879 = vsel %vm208, %v2877, 0.0
    %2880 = vadd.xlane.f32.xlu0 %v2879
    %v2881 = vpop.xlane.xlu0 %2880
    %v2882 = vsel %vm208, %v2878, 0.0
    %2883 = vadd.xlane.f32.xlu0 %v2882
    %v2884 = vpop.xlane.xlu0 %2883
    %v2885 = vmul.f32 %v2881, %v562
    %v2886 = vmul.f32 %v2884, %v562
    %v2887 = vsub.f32 %v2877, %v2885
    %v2888 = vsub.f32 %v2878, %v2886
    %v2889 = vmul.f32 %v2887, %v2887
    %v2890 = vmul.f32 %v2888, %v2888
    %v2891 = vsel %vm208, %v2889, 0.0
    %2892 = vadd.xlane.f32.xlu0 %v2891
    %v2893 = vpop.xlane.xlu0 %2892
    %v2894 = vsel %vm208, %v2890, 0.0
    %2895 = vadd.xlane.f32.xlu0 %v2894
    %v2896 = vpop.xlane.xlu0 %2895
    %v2897 = vmul.f32 %v2893, %v562
    %v2898 = vmul.f32 %v2896, %v562
    %v2899 = vadd.f32 %v2897, 1e-05
    %v2900 = vadd.f32 %v2898, 1e-05
    %v2901 = vrsqrt.pop %v2899
    %v2902 = vmul.f32 %v2901, %v2899
    %v2903 = vmul.f32 %v2902, %v2901
    %v2904 = vmul.f32 0.5, %v2903
    %v2905 = vsub.f32 1.5, %v2904
    %v2906 = vmul.f32 %v2901, %v2905
    %vm2907 = vweird.f32 %v2899
    %vm2908 = vweird.f32 %v2901
    %vm2909 = vmor %vm2907, %vm2908
    %v2910 = vsel %vm2909, %v2901, %v2906
    %v2911 = vrsqrt.pop %v2900
    %v2912 = vmul.f32 %v2911, %v2900
    %v2913 = vmul.f32 %v2912, %v2911
    %v2914 = vmul.f32 0.5, %v2913
    %v2915 = vsub.f32 1.5, %v2914
    %v2916 = vmul.f32 %v2911, %v2915
    %vm2917 = vweird.f32 %v2900
    %vm2918 = vweird.f32 %v2911
    %vm2919 = vmor %vm2917, %vm2918
    %v2920 = vsel %vm2919, %v2911, %v2916
    %v2921 = vmul.f32 %v2887, %v2910
    %v2922 = vmul.f32 %v2888, %v2920
    %v2923 = vld [vmem:[%s5 + $0x26] sm:$0x1]
    %v2924 = vperm.slane %v2923, 0
    %v2925 = vmul.f32 %v2921, %v2924
    %v2926 = vmul.f32 %v2922, %v2924
    %v2927 = vld [vmem:[%s5 + $0x27] sm:$0x1]
    %v2928 = vperm.slane %v2927, 0
    %v2929 = vadd.f32 %v2925, %v2928
    %v2930 = vadd.f32 %v2926, %v2928
    %v2931 = vsel %vm208, %v2929, 0.0
    %2932 = vadd.xlane.f32.xlu0 %v2931
    %v2933 = vpop.xlane.xlu0 %2932
    %v2934 = vsel %vm208, %v2930, 0.0
    %2935 = vadd.xlane.f32.xlu0 %v2934
    %v2936 = vpop.xlane.xlu0 %2935
    %v2937 = vmul.f32 %v2933, %v562
    %v2938 = vmul.f32 %v2936, %v562
    %v2939 = vsub.f32 %v2929, %v2937
    %v2940 = vsub.f32 %v2930, %v2938
    %v2941 = vmul.f32 %v2939, %v2939
    %v2942 = vmul.f32 %v2940, %v2940
    %v2943 = vsel %vm208, %v2941, 0.0
    %2944 = vadd.xlane.f32.xlu0 %v2943
    %v2945 = vpop.xlane.xlu0 %2944
    %v2946 = vsel %vm208, %v2942, 0.0
    %2947 = vadd.xlane.f32.xlu0 %v2946
    %v2948 = vpop.xlane.xlu0 %2947
    %v2949 = vmul.f32 %v2945, %v562
    %v2950 = vmul.f32 %v2948, %v562
    %v2951 = vadd.f32 %v2949, 1e-05
    %v2952 = vadd.f32 %v2950, 1e-05
    %v2953 = vrsqrt.pop %v2951
    %v2954 = vmul.f32 %v2953, %v2951
    %v2955 = vmul.f32 %v2954, %v2953
    %v2956 = vmul.f32 0.5, %v2955
    %v2957 = vsub.f32 1.5, %v2956
    %v2958 = vmul.f32 %v2953, %v2957
    %vm2959 = vweird.f32 %v2951
    %vm2960 = vweird.f32 %v2953
    %vm2961 = vmor %vm2959, %vm2960
    %v2962 = vsel %vm2961, %v2953, %v2958
    %v2963 = vrsqrt.pop %v2952
    %v2964 = vmul.f32 %v2963, %v2952
    %v2965 = vmul.f32 %v2964, %v2963
    %v2966 = vmul.f32 0.5, %v2965
    %v2967 = vsub.f32 1.5, %v2966
    %v2968 = vmul.f32 %v2963, %v2967
    %vm2969 = vweird.f32 %v2952
    %vm2970 = vweird.f32 %v2963
    %vm2971 = vmor %vm2969, %vm2970
    %v2972 = vsel %vm2971, %v2963, %v2968
    %v2973 = vmul.f32 %v2939, %v2962
    %v2974 = vmul.f32 %v2940, %v2972
    %v2975 = vld [vmem:[%s5 + $0x2a] sm:$0x1]
    %v2976 = vperm.slane %v2975, 0
    %v2977 = vmul.f32 %v2973, %v2976
    %v2978 = vmul.f32 %v2974, %v2976
    %v2979 = vld [vmem:[%s5 + $0x2b] sm:$0x1]
    %v2980 = vperm.slane %v2979, 0
    %v2981 = vadd.f32 %v2977, %v2980
    %v2982 = vadd.f32 %v2978, %v2980
    %v2983 = vld [vmem:[%s3 + $0x80] sm:$0xff]
    %v2984 = vld [vmem:[%s3 + $0x88] sm:$0xff]
    %v2985 = vld [vmem:[%s3 + $0x90] sm:$0xff]
    %v2986 = vld [vmem:[%s3 + $0x98] sm:$0xff]
    %v2987 = vld [vmem:[%s5 + $0x2c] sm:$0x1]
    %v2988 = vperm.slane %v2987, 0
    %v2990 = vsel %vm208, %v2981, 0
    %v2993 = vsel %vm208, %v2982, 0
    %2995 = vmatpush.msra.mxu0 0.0
    %2996 = vmatpush.msra.mxu0 0.0
    %2997 = vmatpush.msra.mxu0 0.0
    %2998 = vmatpush.msra.mxu0 0.0
    %2999 = vmatpush.msra.mxu0 0.0
    %3000 = vmatpush.msra.mxu0 0.0
    %3001 = vmatpush.msra.mxu0 0.0
    %3002 = vmatpush.msra.mxu0 0.0
    %3003 = vmatpush.msra.mxu0 0.0
    %3004 = vmatpush.msra.mxu0 0.0
    %3005 = vmatpush.msra.mxu0 0.0
    %3006 = vmatpush.msra.mxu0 0.0
    %3007 = vmatpush.msra.mxu0 %v2986
    %3008 = vmatpush.msra.mxu0 %v2985
    %3009 = vmatpush.msra.mxu0 %v2984
    %3010 = vmatpush.msra.mxu0 %v2983
    %3011 = vmatmul.f32.gmra.mxu0 %v2990
    %v3012 = vpop.f32.mrf.mxu0
    %v3013 = vadd.f32 %v2988, %v3012
    %3014 = vmatmul.f32.gmra.mxu0 %v2993
    %v3015 = vpop.f32.mrf.mxu0
    %v3016 = vadd.f32 %v2988, %v3015
    %3017 = vdwg.mxu0
    %v3018 = vsel %vm160, %v3013, -inf
    %3019 = vmax.xlane.f32.xlu0 %v3018
    %v3020 = vpop.xlane.xlu0 %3019
    %v3021 = vsel %vm160, %v3016, -inf
    %3022 = vmax.xlane.f32.xlu0 %v3021
    %v3023 = vpop.xlane.xlu0 %3022
    %v3024 = vsub.f32 %v3013, %v3020
    %v3025 = vsub.f32 %v3016, %v3023
    %v3026 = vmul.f32 %v3024, 1.442695
    %v3027 = vpow.pop %v3026
    %v3028 = vmul.f32 %v3025, 1.442695
    %v3029 = vpow.pop %v3028
    %v3030 = vsel %vm160, %v3027, 0.0
    %3031 = vadd.xlane.f32.xlu0 %v3030
    %v3032 = vpop.xlane.xlu0 %3031
    %v3033 = vsel %vm160, %v3029, 0.0
    %3034 = vadd.xlane.f32.xlu0 %v3033
    %v3035 = vpop.xlane.xlu0 %3034
    %v3036 = vlog2.pop %v3032
    %v3037 = vmul.f32 %v3036, 0.6931472
    %v3038 = vlog2.pop %v3035
    %v3039 = vmul.f32 %v3038, 0.6931472
    %v3040 = vadd.f32 %v3037, %v3020
    %v3041 = vadd.f32 %v3039, %v3023
    %v3042 = vsub.f32 %v3013, %v3040
    %v3043 = vsub.f32 %v3016, %v3041
    %3044 = vst.msk [vmem:[#allocation2] sm:$0xff] %vm160, %v3042
    %3045 = vst.msk [vmem:[#allocation2 + $0x8] sm:$0xff] %vm160, %v3043
    // Predicated region
    $region26: #{frt_forward.1} parent=1 // pred_check
      _
    $region27: #{frt_forward.1} parent=1 // pred_check_branch
      %3047 = sbr.rel (0) target = $region29
    $region28: #{frt_forward.1} parent=1 // pred_region
      %3049 = vsyncadd [#allocation3], 0
      %s3050 = sshll.u32 [#allocation2], 4
      %s3051 = int_to_ptr.vmem [resolvable:$true] %s3050
      %s3052 = sshll.u32 %s6, 4
      %s3053 = int_to_ptr.hbm [resolvable:$true] %s3052
      %3058 = dma.vmem_to_hbm [thread:$0]  %s3051, 256, %s3053, [#allocation3], 128, 128, 8
    $region29: #{frt_forward.1} parent=1 // pred_fallthru
      _
    // Predicated region
    $region30: #{frt_forward.1} parent=1 // pred_check
      _
    $region31: #{frt_forward.1} parent=1 // pred_check_branch
      %3060 = sbr.rel (0) target = $region33
    $region32: #{frt_forward.1} parent=1 // pred_region
      %3062 = dma.done [#allocation3], 256
    $region33: #{frt_forward.1} parent=1 // pred_fallthru
      _
    %3063 = vsyncpa [#allocation3], 1

</llo_original>
